<compile_context>
chip_gen: v7x
topology: tpu7x:2x2x1
jax: 0.10.0
libtpu: 0.0.40
codegen_flags: <defaults>
</compile_context>

<pallas_src>
import functools
import itertools

import jax
import jax.numpy as jnp
from jax.experimental import pallas as pl
from jax.experimental.pallas import tpu as pltpu


def _round_up(x, m):
    return (x + m - 1) // m * m


# ----------------------------- Pallas kernel --------------------------------
def _upconv_kernel(x_ref, w_ref, o_ref, patch_ref, *, offsets, c_in, k_taps,
                   l_out):
    """One sample per grid step; all parities & output channels in ONE matmul.

    x_ref:     (1, C_in, L_in)  zero-padded original-res volume, spatially
                                flattened with padded-grid strides (lane axis).
    w_ref:     (R, K_pad)       parity-decomposed effective weights (+ bias
                                column, + zero pad columns), R = 8*C_out.
    o_ref:     (1, R, L_out)    lane-dense output rows (L_out % 128 == 0).
    patch_ref: (K_pad, L_out)   VMEM scratch: im2col patch, K stacked as
                                27 taps x C_in, then 1 ones-row (bias), then
                                zero rows up to a multiple of 8.
    """
    # 1) Assemble the im2col patch: 27 static-offset tap slices stacked on the
    #    contraction axis.  Offsets are compile-time constants (no dynamic lane
    #    starts).
    for s, off in enumerate(offsets):
        patch_ref[pl.ds(s * c_in, c_in), :] = x_ref[0, :, pl.ds(off, l_out)]

    # Bias row (ones) + zero pad rows.  Rewritten every step: scratch is
    # uninitialized VMEM and per-core under megacore splitting, and this is
    # only a handful of rows.
    k_pad = patch_ref.shape[0]
    patch_ref[pl.ds(k_taps, 1), :] = jnp.ones((1, l_out), jnp.float32)
    n_zero = k_pad - k_taps - 1
    if n_zero > 0:
        patch_ref[pl.ds(k_taps + 1, n_zero), :] = jnp.zeros(
            (n_zero, l_out), jnp.float32)

    # 2) One K~=(27*C_in+1) MXU matmul produces all 8 parities and all output
    #    channels (bias included via the ones-row / bias column).
    o_ref[0] = jnp.dot(w_ref[...], patch_ref[...],
                       preferred_element_type=jnp.float32,
                       precision=jax.lax.Precision.HIGHEST)


# ------------------------------- Wrapper -------------------------------------
def upsample_checker_forward(x, weight, bias, *, scale_factor, kernel_size,
                             conv_padding, stride):
    """x: (N, C_in, D, H, W) f32. weight: (C_out, C_in, 3, 3, 3). bias: (C_out,)."""
    assert (scale_factor == 2 and kernel_size == 3 and conv_padding == 1
            and stride == 1), (
        "kernel implements the dimension-preserving config of the module "
        "(scale=2, k=3, stride=1, conv padding=1)")
    n, c_in, d, h, w = x.shape
    c_out = weight.shape[0]
    dp, hp, wp = d + 2, h + 2, w + 2
    hw = hp * wp

    # ---- geometry: lane-dense output width, tap offsets, input over-pad so
    # every tap slice stays in bounds with a SINGLE jnp.pad.
    l_out = _round_up(d * hw, 128)               # lane-dense output width
    max_off = 2 * hw + 2 * wp + 2                # largest tap offset
    l_needed = max_off + l_out
    extra_d = max(0, -(-(l_needed - dp * hw) // hw))
    dp_ext = dp + extra_d
    l_in = dp_ext * hw                           # equals full array dim

    xflat = jnp.pad(
        x.astype(jnp.float32),
        ((0, 0), (0, 0), (1, 1 + extra_d), (1, 1), (1, 1)),
    ).reshape(n, c_in, l_in)

    # ---- weights: fold the nearest-x2 upsample into the conv.  Along one axis
    # with output parity p, the 3-tap kernel [w0,w1,w2] on the upsampled signal
    # equals a 2-tap kernel on the padded original signal xp:
    #   p=0 (out 2m):   w0*xp[m]        + (w1+w2)*xp[m+1]
    #   p=1 (out 2m+1): (w0+w1)*xp[m+1] + w2*xp[m+2]
    # M[p, s, k] maps original conv tap k to original-grid shift s for parity p.
    m_tr = jnp.array([[[1., 0., 0.], [0., 1., 1.], [0., 0., 0.]],
                      [[0., 0., 0.], [1., 1., 0.], [0., 0., 1.]]],
                     dtype=jnp.float32)
    w_eff = jnp.einsum('adk,bel,cfm,oiklm->abcdefoi',
                       m_tr, m_tr, m_tr, weight.astype(jnp.float32))
    r_rows = 8 * c_out
    k_taps = 27 * c_in
    k_pad = _round_up(k_taps + 1, 8)             # + bias row, sublane-aligned
    # Row order r = co*8 + parity (keeps parity dims adjacent to spatial dims
    # in the epilogue transpose).  Column order = tap s (sd,sh,sw) * C_in + ci.
    w_mat = w_eff.transpose(6, 0, 1, 2, 3, 4, 5, 7).reshape(r_rows, k_taps)
    bias_col = jnp.repeat(bias.astype(jnp.float32), 8).reshape(r_rows, 1)
    w_big = jnp.concatenate(
        [w_mat, bias_col,
         jnp.zeros((r_rows, k_pad - k_taps - 1), jnp.float32)], axis=1)

    offsets = tuple(sd * hw + sh * wp + sw
                    for sd, sh, sw in itertools.product(range(3), repeat=3))

    kernel = functools.partial(_upconv_kernel, offsets=offsets, c_in=c_in,
                               k_taps=k_taps, l_out=l_out)
    out_rows = pl.pallas_call(
        kernel,
        out_shape=jax.ShapeDtypeStruct((n, r_rows, l_out), jnp.float32),
        grid=(n,),
        in_specs=[
            pl.BlockSpec((1, c_in, l_in), lambda ni: (ni, 0, 0)),
            pl.BlockSpec((r_rows, k_pad), lambda ni: (0, 0)),
        ],
        out_specs=pl.BlockSpec((1, r_rows, l_out), lambda ni: (ni, 0, 0)),
        scratch_shapes=[pltpu.VMEM((k_pad, l_out), jnp.float32)],
        compiler_params=pltpu.CompilerParams(
            dimension_semantics=("parallel",)),
    )(xflat, w_big)

    # ---- epilogue: pure layout (lane-dense slab -> NCDHW), no compute.
    # rows r = co*8 + (pd*4 + ph*2 + pw) ; lanes l = dd*hw + hh*wp + ww.
    tmp = out_rows[:, :, :d * hw].reshape(n, c_out, 2, 2, 2, d, hp, wp)
    tmp = tmp[..., :h, :w]                       # drop invalid pad columns
    out = tmp.transpose(0, 1, 5, 2, 6, 3, 7, 4).reshape(
        n, c_out, 2 * d, 2 * h, 2 * w)
    return out


# ------------------------------ Reference ------------------------------------
def _reference(x, weight, bias, *, scale_factor, conv_padding):
    up = jnp.repeat(x, scale_factor, axis=2)
    up = jnp.repeat(up, scale_factor, axis=3)
    up = jnp.repeat(up, scale_factor, axis=4)
    out = jax.lax.conv_general_dilated(
        up, weight, window_strides=(1, 1, 1),
        padding=[(conv_padding, conv_padding)] * 3,
        dimension_numbers=("NCDHW", "OIDHW", "NCDHW"),
        precision=jax.lax.Precision.HIGHEST)
    return out + bias.reshape(1, -1, 1, 1, 1)


if __name__ == "__main__":
    # Module hyper-parameters (dimension-preserving config from the docstring;
    # reflection pad is never applied in forward(), conv padding=1 used).
    scale_factor = 2
    channels = 4
    ch_mult = 2
    kernel_size = 3
    conv_padding = 1
    stride = 1

    key = jax.random.PRNGKey(0)
    kx, kw, kb = jax.random.split(key, 3)

    # Small input: (N, C, D, H, W) = (2, 4, 8, 8, 8)
    x = jax.random.normal(kx, (2, channels, 8, 8, 8), dtype=jnp.float32)
    c_out = channels // ch_mult
    weight = 0.1 * jax.random.normal(
        kw, (c_out, channels, kernel_size, kernel_size, kernel_size),
        dtype=jnp.float32)
    bias = 0.1 * jax.random.normal(kb, (c_out,), dtype=jnp.float32)

    fwd = jax.jit(functools.partial(
        upsample_checker_forward, scale_factor=scale_factor,
        kernel_size=kernel_size, conv_padding=conv_padding, stride=stride))
    out = fwd(x, weight, bias)
    out = jax.block_until_ready(out)

    ref = _reference(x, weight, bias, scale_factor=scale_factor,
                     conv_padding=conv_padding)
    assert out.shape == (2, c_out, 16, 16, 16), out.shape
    err = float(jnp.max(jnp.abs(out - ref)))
    assert err < 1e-4, err

    print("KERNEL_OK")
</pallas_src>

<mosaic_0001>
module attributes {stable_mosaic.version = 11 : i64} {
  func.func @_upconv_kernel(%arg0: i32, %arg1: memref<1x4x1200xf32, #tpu.memory_space<vmem>>, %arg2: memref<16x112xf32, #tpu.memory_space<vmem>>, %arg3: memref<1x16x896xf32, #tpu.memory_space<vmem>>, %arg4: memref<112x896xf32, #tpu.memory_space<vmem>>) attributes {dimension_semantics = [#tpu.dimension_semantics<parallel>], iteration_bounds = array<i64: 2>, scalar_prefetch = 0 : i64, scratch_operands = 1 : i64, tpu.core_type = #tpu.core_type<tc>, window_params = [{transform_indices = @transform_0, window_bounds = array<i64: 1, 4, 1200>}, {pipeline_mode = #tpu.pipeline_mode<synchronous>, transform_indices = @transform_1, window_bounds = array<i64: 16, 112>}, {transform_indices = @transform_2, window_bounds = array<i64: 1, 16, 896>}]} {
    %c0 = arith.constant 0 : index
    %c0_0 = arith.constant 0 : index
    %c0_1 = arith.constant 0 : index
    %0 = vector.load %arg1[%c0, %c0_0, %c0_1] : memref<1x4x1200xf32, #tpu.memory_space<vmem>>, vector<1x4x896xf32>
    %1 = vector.shape_cast %0 : vector<1x4x896xf32> to vector<4x896xf32>
    %c0_2 = arith.constant 0 : index
    %c0_3 = arith.constant 0 : index
    %2 = vector.load %arg4[%c0_2, %c0_3] : memref<112x896xf32, #tpu.memory_space<vmem>>, vector<4x896xf32>
    tpu.vector_store %arg4[%c0_2, %c0_3], %1 {strides = array<i32>} : memref<112x896xf32, #tpu.memory_space<vmem>>, vector<4x896xf32>,
    %c0_4 = arith.constant 0 : index
    %c0_5 = arith.constant 0 : index
    %c1 = arith.constant 1 : index
    %3 = vector.load %arg1[%c0_4, %c0_5, %c1] : memref<1x4x1200xf32, #tpu.memory_space<vmem>>, vector<1x4x896xf32>
    %4 = vector.shape_cast %3 : vector<1x4x896xf32> to vector<4x896xf32>
    %c4 = arith.constant 4 : index
    %c0_6 = arith.constant 0 : index
    %5 = vector.load %arg4[%c4, %c0_6] : memref<112x896xf32, #tpu.memory_space<vmem>>, vector<4x896xf32>
    tpu.vector_store %arg4[%c4, %c0_6], %4 {strides = array<i32>} : memref<112x896xf32, #tpu.memory_space<vmem>>, vector<4x896xf32>,
    %c0_7 = arith.constant 0 : index
    %c0_8 = arith.constant 0 : index
    %c2 = arith.constant 2 : index
    %6 = vector.load %arg1[%c0_7, %c0_8, %c2] : memref<1x4x1200xf32, #tpu.memory_space<vmem>>, vector<1x4x896xf32>
    %7 = vector.shape_cast %6 : vector<1x4x896xf32> to vector<4x896xf32>
    %c8 = arith.constant 8 : index
    %c0_9 = arith.constant 0 : index
    %8 = vector.load %arg4[%c8, %c0_9] : memref<112x896xf32, #tpu.memory_space<vmem>>, vector<4x896xf32>
    tpu.vector_store %arg4[%c8, %c0_9], %7 {strides = array<i32>} : memref<112x896xf32, #tpu.memory_space<vmem>>, vector<4x896xf32>,
    %c0_10 = arith.constant 0 : index
    %c0_11 = arith.constant 0 : index
    %c10 = arith.constant 10 : index
    %9 = vector.load %arg1[%c0_10, %c0_11, %c10] : memref<1x4x1200xf32, #tpu.memory_space<vmem>>, vector<1x4x896xf32>
    %10 = vector.shape_cast %9 : vector<1x4x896xf32> to vector<4x896xf32>
    %c12 = arith.constant 12 : index
    %c0_12 = arith.constant 0 : index
    %11 = vector.load %arg4[%c12, %c0_12] : memref<112x896xf32, #tpu.memory_space<vmem>>, vector<4x896xf32>
    tpu.vector_store %arg4[%c12, %c0_12], %10 {strides = array<i32>} : memref<112x896xf32, #tpu.memory_space<vmem>>, vector<4x896xf32>,
    %c0_13 = arith.constant 0 : index
    %c0_14 = arith.constant 0 : index
    %c11 = arith.constant 11 : index
    %12 = vector.load %arg1[%c0_13, %c0_14, %c11] : memref<1x4x1200xf32, #tpu.memory_space<vmem>>, vector<1x4x896xf32>
    %13 = vector.shape_cast %12 : vector<1x4x896xf32> to vector<4x896xf32>
    %c16 = arith.constant 16 : index
    %c0_15 = arith.constant 0 : index
    %14 = vector.load %arg4[%c16, %c0_15] : memref<112x896xf32, #tpu.memory_space<vmem>>, vector<4x896xf32>
    tpu.vector_store %arg4[%c16, %c0_15], %13 {strides = array<i32>} : memref<112x896xf32, #tpu.memory_space<vmem>>, vector<4x896xf32>,
    %c0_16 = arith.constant 0 : index
    %c0_17 = arith.constant 0 : index
    %c12_18 = arith.constant 12 : index
    %15 = vector.load %arg1[%c0_16, %c0_17, %c12_18] : memref<1x4x1200xf32, #tpu.memory_space<vmem>>, vector<1x4x896xf32>
    %16 = vector.shape_cast %15 : vector<1x4x896xf32> to vector<4x896xf32>
    %c20 = arith.constant 20 : index
    %c0_19 = arith.constant 0 : index
    %17 = vector.load %arg4[%c20, %c0_19] : memref<112x896xf32, #tpu.memory_space<vmem>>, vector<4x896xf32>
    tpu.vector_store %arg4[%c20, %c0_19], %16 {strides = array<i32>} : memref<112x896xf32, #tpu.memory_space<vmem>>, vector<4x896xf32>,
    %c0_20 = arith.constant 0 : index
    %c0_21 = arith.constant 0 : index
    %c20_22 = arith.constant 20 : index
    %18 = vector.load %arg1[%c0_20, %c0_21, %c20_22] : memref<1x4x1200xf32, #tpu.memory_space<vmem>>, vector<1x4x896xf32>
    %19 = vector.shape_cast %18 : vector<1x4x896xf32> to vector<4x896xf32>
    %c24 = arith.constant 24 : index
    %c0_23 = arith.constant 0 : index
    %20 = vector.load %arg4[%c24, %c0_23] : memref<112x896xf32, #tpu.memory_space<vmem>>, vector<4x896xf32>
    tpu.vector_store %arg4[%c24, %c0_23], %19 {strides = array<i32>} : memref<112x896xf32, #tpu.memory_space<vmem>>, vector<4x896xf32>,
    %c0_24 = arith.constant 0 : index
    %c0_25 = arith.constant 0 : index
    %c21 = arith.constant 21 : index
    %21 = vector.load %arg1[%c0_24, %c0_25, %c21] : memref<1x4x1200xf32, #tpu.memory_space<vmem>>, vector<1x4x896xf32>
    %22 = vector.shape_cast %21 : vector<1x4x896xf32> to vector<4x896xf32>
    %c28 = arith.constant 28 : index
    %c0_26 = arith.constant 0 : index
    %23 = vector.load %arg4[%c28, %c0_26] : memref<112x896xf32, #tpu.memory_space<vmem>>, vector<4x896xf32>
    tpu.vector_store %arg4[%c28, %c0_26], %22 {strides = array<i32>} : memref<112x896xf32, #tpu.memory_space<vmem>>, vector<4x896xf32>,
    %c0_27 = arith.constant 0 : index
    %c0_28 = arith.constant 0 : index
    %c22 = arith.constant 22 : index
    %24 = vector.load %arg1[%c0_27, %c0_28, %c22] : memref<1x4x1200xf32, #tpu.memory_space<vmem>>, vector<1x4x896xf32>
    %25 = vector.shape_cast %24 : vector<1x4x896xf32> to vector<4x896xf32>
    %c32 = arith.constant 32 : index
    %c0_29 = arith.constant 0 : index
    %26 = vector.load %arg4[%c32, %c0_29] : memref<112x896xf32, #tpu.memory_space<vmem>>, vector<4x896xf32>
    tpu.vector_store %arg4[%c32, %c0_29], %25 {strides = array<i32>} : memref<112x896xf32, #tpu.memory_space<vmem>>, vector<4x896xf32>,
    %c0_30 = arith.constant 0 : index
    %c0_31 = arith.constant 0 : index
    %c100 = arith.constant 100 : index
    %27 = vector.load %arg1[%c0_30, %c0_31, %c100] : memref<1x4x1200xf32, #tpu.memory_space<vmem>>, vector<1x4x896xf32>
    %28 = vector.shape_cast %27 : vector<1x4x896xf32> to vector<4x896xf32>
    %c36 = arith.constant 36 : index
    %c0_32 = arith.constant 0 : index
    %29 = vector.load %arg4[%c36, %c0_32] : memref<112x896xf32, #tpu.memory_space<vmem>>, vector<4x896xf32>
    tpu.vector_store %arg4[%c36, %c0_32], %28 {strides = array<i32>} : memref<112x896xf32, #tpu.memory_space<vmem>>, vector<4x896xf32>,
    %c0_33 = arith.constant 0 : index
    %c0_34 = arith.constant 0 : index
    %c101 = arith.constant 101 : index
    %30 = vector.load %arg1[%c0_33, %c0_34, %c101] : memref<1x4x1200xf32, #tpu.memory_space<vmem>>, vector<1x4x896xf32>
    %31 = vector.shape_cast %30 : vector<1x4x896xf32> to vector<4x896xf32>
    %c40 = arith.constant 40 : index
    %c0_35 = arith.constant 0 : index
    %32 = vector.load %arg4[%c40, %c0_35] : memref<112x896xf32, #tpu.memory_space<vmem>>, vector<4x896xf32>
    tpu.vector_store %arg4[%c40, %c0_35], %31 {strides = array<i32>} : memref<112x896xf32, #tpu.memory_space<vmem>>, vector<4x896xf32>,
    %c0_36 = arith.constant 0 : index
    %c0_37 = arith.constant 0 : index
    %c102 = arith.constant 102 : index
    %33 = vector.load %arg1[%c0_36, %c0_37, %c102] : memref<1x4x1200xf32, #tpu.memory_space<vmem>>, vector<1x4x896xf32>
    %34 = vector.shape_cast %33 : vector<1x4x896xf32> to vector<4x896xf32>
    %c44 = arith.constant 44 : index
    %c0_38 = arith.constant 0 : index
    %35 = vector.load %arg4[%c44, %c0_38] : memref<112x896xf32, #tpu.memory_space<vmem>>, vector<4x896xf32>
    tpu.vector_store %arg4[%c44, %c0_38], %34 {strides = array<i32>} : memref<112x896xf32, #tpu.memory_space<vmem>>, vector<4x896xf32>,
    %c0_39 = arith.constant 0 : index
    %c0_40 = arith.constant 0 : index
    %c110 = arith.constant 110 : index
    %36 = vector.load %arg1[%c0_39, %c0_40, %c110] : memref<1x4x1200xf32, #tpu.memory_space<vmem>>, vector<1x4x896xf32>
    %37 = vector.shape_cast %36 : vector<1x4x896xf32> to vector<4x896xf32>
    %c48 = arith.constant 48 : index
    %c0_41 = arith.constant 0 : index
    %38 = vector.load %arg4[%c48, %c0_41] : memref<112x896xf32, #tpu.memory_space<vmem>>, vector<4x896xf32>
    tpu.vector_store %arg4[%c48, %c0_41], %37 {strides = array<i32>} : memref<112x896xf32, #tpu.memory_space<vmem>>, vector<4x896xf32>,
    %c0_42 = arith.constant 0 : index
    %c0_43 = arith.constant 0 : index
    %c111 = arith.constant 111 : index
    %39 = vector.load %arg1[%c0_42, %c0_43, %c111] : memref<1x4x1200xf32, #tpu.memory_space<vmem>>, vector<1x4x896xf32>
    %40 = vector.shape_cast %39 : vector<1x4x896xf32> to vector<4x896xf32>
    %c52 = arith.constant 52 : index
    %c0_44 = arith.constant 0 : index
    %41 = vector.load %arg4[%c52, %c0_44] : memref<112x896xf32, #tpu.memory_space<vmem>>, vector<4x896xf32>
    tpu.vector_store %arg4[%c52, %c0_44], %40 {strides = array<i32>} : memref<112x896xf32, #tpu.memory_space<vmem>>, vector<4x896xf32>,
    %c0_45 = arith.constant 0 : index
    %c0_46 = arith.constant 0 : index
    %c112 = arith.constant 112 : index
    %42 = vector.load %arg1[%c0_45, %c0_46, %c112] : memref<1x4x1200xf32, #tpu.memory_space<vmem>>, vector<1x4x896xf32>
    %43 = vector.shape_cast %42 : vector<1x4x896xf32> to vector<4x896xf32>
    %c56 = arith.constant 56 : index
    %c0_47 = arith.constant 0 : index
    %44 = vector.load %arg4[%c56, %c0_47] : memref<112x896xf32, #tpu.memory_space<vmem>>, vector<4x896xf32>
    tpu.vector_store %arg4[%c56, %c0_47], %43 {strides = array<i32>} : memref<112x896xf32, #tpu.memory_space<vmem>>, vector<4x896xf32>,
    %c0_48 = arith.constant 0 : index
    %c0_49 = arith.constant 0 : index
    %c120 = arith.constant 120 : index
    %45 = vector.load %arg1[%c0_48, %c0_49, %c120] : memref<1x4x1200xf32, #tpu.memory_space<vmem>>, vector<1x4x896xf32>
    %46 = vector.shape_cast %45 : vector<1x4x896xf32> to vector<4x896xf32>
    %c60 = arith.constant 60 : index
    %c0_50 = arith.constant 0 : index
    %47 = vector.load %arg4[%c60, %c0_50] : memref<112x896xf32, #tpu.memory_space<vmem>>, vector<4x896xf32>
    tpu.vector_store %arg4[%c60, %c0_50], %46 {strides = array<i32>} : memref<112x896xf32, #tpu.memory_space<vmem>>, vector<4x896xf32>,
    %c0_51 = arith.constant 0 : index
    %c0_52 = arith.constant 0 : index
    %c121 = arith.constant 121 : index
    %48 = vector.load %arg1[%c0_51, %c0_52, %c121] : memref<1x4x1200xf32, #tpu.memory_space<vmem>>, vector<1x4x896xf32>
    %49 = vector.shape_cast %48 : vector<1x4x896xf32> to vector<4x896xf32>
    %c64 = arith.constant 64 : index
    %c0_53 = arith.constant 0 : index
    %50 = vector.load %arg4[%c64, %c0_53] : memref<112x896xf32, #tpu.memory_space<vmem>>, vector<4x896xf32>
    tpu.vector_store %arg4[%c64, %c0_53], %49 {strides = array<i32>} : memref<112x896xf32, #tpu.memory_space<vmem>>, vector<4x896xf32>,
    %c0_54 = arith.constant 0 : index
    %c0_55 = arith.constant 0 : index
    %c122 = arith.constant 122 : index
    %51 = vector.load %arg1[%c0_54, %c0_55, %c122] : memref<1x4x1200xf32, #tpu.memory_space<vmem>>, vector<1x4x896xf32>
    %52 = vector.shape_cast %51 : vector<1x4x896xf32> to vector<4x896xf32>
    %c68 = arith.constant 68 : index
    %c0_56 = arith.constant 0 : index
    %53 = vector.load %arg4[%c68, %c0_56] : memref<112x896xf32, #tpu.memory_space<vmem>>, vector<4x896xf32>
    tpu.vector_store %arg4[%c68, %c0_56], %52 {strides = array<i32>} : memref<112x896xf32, #tpu.memory_space<vmem>>, vector<4x896xf32>,
    %c0_57 = arith.constant 0 : index
    %c0_58 = arith.constant 0 : index
    %c200 = arith.constant 200 : index
    %54 = vector.load %arg1[%c0_57, %c0_58, %c200] : memref<1x4x1200xf32, #tpu.memory_space<vmem>>, vector<1x4x896xf32>
    %55 = vector.shape_cast %54 : vector<1x4x896xf32> to vector<4x896xf32>
    %c72 = arith.constant 72 : index
    %c0_59 = arith.constant 0 : index
    %56 = vector.load %arg4[%c72, %c0_59] : memref<112x896xf32, #tpu.memory_space<vmem>>, vector<4x896xf32>
    tpu.vector_store %arg4[%c72, %c0_59], %55 {strides = array<i32>} : memref<112x896xf32, #tpu.memory_space<vmem>>, vector<4x896xf32>,
    %c0_60 = arith.constant 0 : index
    %c0_61 = arith.constant 0 : index
    %c201 = arith.constant 201 : index
    %57 = vector.load %arg1[%c0_60, %c0_61, %c201] : memref<1x4x1200xf32, #tpu.memory_space<vmem>>, vector<1x4x896xf32>
    %58 = vector.shape_cast %57 : vector<1x4x896xf32> to vector<4x896xf32>
    %c76 = arith.constant 76 : index
    %c0_62 = arith.constant 0 : index
    %59 = vector.load %arg4[%c76, %c0_62] : memref<112x896xf32, #tpu.memory_space<vmem>>, vector<4x896xf32>
    tpu.vector_store %arg4[%c76, %c0_62], %58 {strides = array<i32>} : memref<112x896xf32, #tpu.memory_space<vmem>>, vector<4x896xf32>,
    %c0_63 = arith.constant 0 : index
    %c0_64 = arith.constant 0 : index
    %c202 = arith.constant 202 : index
    %60 = vector.load %arg1[%c0_63, %c0_64, %c202] : memref<1x4x1200xf32, #tpu.memory_space<vmem>>, vector<1x4x896xf32>
    %61 = vector.shape_cast %60 : vector<1x4x896xf32> to vector<4x896xf32>
    %c80 = arith.constant 80 : index
    %c0_65 = arith.constant 0 : index
    %62 = vector.load %arg4[%c80, %c0_65] : memref<112x896xf32, #tpu.memory_space<vmem>>, vector<4x896xf32>
    tpu.vector_store %arg4[%c80, %c0_65], %61 {strides = array<i32>} : memref<112x896xf32, #tpu.memory_space<vmem>>, vector<4x896xf32>,
    %c0_66 = arith.constant 0 : index
    %c0_67 = arith.constant 0 : index
    %c210 = arith.constant 210 : index
    %63 = vector.load %arg1[%c0_66, %c0_67, %c210] : memref<1x4x1200xf32, #tpu.memory_space<vmem>>, vector<1x4x896xf32>
    %64 = vector.shape_cast %63 : vector<1x4x896xf32> to vector<4x896xf32>
    %c84 = arith.constant 84 : index
    %c0_68 = arith.constant 0 : index
    %65 = vector.load %arg4[%c84, %c0_68] : memref<112x896xf32, #tpu.memory_space<vmem>>, vector<4x896xf32>
    tpu.vector_store %arg4[%c84, %c0_68], %64 {strides = array<i32>} : memref<112x896xf32, #tpu.memory_space<vmem>>, vector<4x896xf32>,
    %c0_69 = arith.constant 0 : index
    %c0_70 = arith.constant 0 : index
    %c211 = arith.constant 211 : index
    %66 = vector.load %arg1[%c0_69, %c0_70, %c211] : memref<1x4x1200xf32, #tpu.memory_space<vmem>>, vector<1x4x896xf32>
    %67 = vector.shape_cast %66 : vector<1x4x896xf32> to vector<4x896xf32>
    %c88 = arith.constant 88 : index
    %c0_71 = arith.constant 0 : index
    %68 = vector.load %arg4[%c88, %c0_71] : memref<112x896xf32, #tpu.memory_space<vmem>>, vector<4x896xf32>
    tpu.vector_store %arg4[%c88, %c0_71], %67 {strides = array<i32>} : memref<112x896xf32, #tpu.memory_space<vmem>>, vector<4x896xf32>,
    %c0_72 = arith.constant 0 : index
    %c0_73 = arith.constant 0 : index
    %c212 = arith.constant 212 : index
    %69 = vector.load %arg1[%c0_72, %c0_73, %c212] : memref<1x4x1200xf32, #tpu.memory_space<vmem>>, vector<1x4x896xf32>
    %70 = vector.shape_cast %69 : vector<1x4x896xf32> to vector<4x896xf32>
    %c92 = arith.constant 92 : index
    %c0_74 = arith.constant 0 : index
    %71 = vector.load %arg4[%c92, %c0_74] : memref<112x896xf32, #tpu.memory_space<vmem>>, vector<4x896xf32>
    tpu.vector_store %arg4[%c92, %c0_74], %70 {strides = array<i32>} : memref<112x896xf32, #tpu.memory_space<vmem>>, vector<4x896xf32>,
    %c0_75 = arith.constant 0 : index
    %c0_76 = arith.constant 0 : index
    %c220 = arith.constant 220 : index
    %72 = vector.load %arg1[%c0_75, %c0_76, %c220] : memref<1x4x1200xf32, #tpu.memory_space<vmem>>, vector<1x4x896xf32>
    %73 = vector.shape_cast %72 : vector<1x4x896xf32> to vector<4x896xf32>
    %c96 = arith.constant 96 : index
    %c0_77 = arith.constant 0 : index
    %74 = vector.load %arg4[%c96, %c0_77] : memref<112x896xf32, #tpu.memory_space<vmem>>, vector<4x896xf32>
    tpu.vector_store %arg4[%c96, %c0_77], %73 {strides = array<i32>} : memref<112x896xf32, #tpu.memory_space<vmem>>, vector<4x896xf32>,
    %c0_78 = arith.constant 0 : index
    %c0_79 = arith.constant 0 : index
    %c221 = arith.constant 221 : index
    %75 = vector.load %arg1[%c0_78, %c0_79, %c221] : memref<1x4x1200xf32, #tpu.memory_space<vmem>>, vector<1x4x896xf32>
    %76 = vector.shape_cast %75 : vector<1x4x896xf32> to vector<4x896xf32>
    %c100_80 = arith.constant 100 : index
    %c0_81 = arith.constant 0 : index
    %77 = vector.load %arg4[%c100_80, %c0_81] : memref<112x896xf32, #tpu.memory_space<vmem>>, vector<4x896xf32>
    tpu.vector_store %arg4[%c100_80, %c0_81], %76 {strides = array<i32>} : memref<112x896xf32, #tpu.memory_space<vmem>>, vector<4x896xf32>,
    %c0_82 = arith.constant 0 : index
    %c0_83 = arith.constant 0 : index
    %c222 = arith.constant 222 : index
    %78 = vector.load %arg1[%c0_82, %c0_83, %c222] : memref<1x4x1200xf32, #tpu.memory_space<vmem>>, vector<1x4x896xf32>
    %79 = vector.shape_cast %78 : vector<1x4x896xf32> to vector<4x896xf32>
    %c104 = arith.constant 104 : index
    %c0_84 = arith.constant 0 : index
    %80 = vector.load %arg4[%c104, %c0_84] : memref<112x896xf32, #tpu.memory_space<vmem>>, vector<4x896xf32>
    tpu.vector_store %arg4[%c104, %c0_84], %79 {strides = array<i32>} : memref<112x896xf32, #tpu.memory_space<vmem>>, vector<4x896xf32>,
    %cst = arith.constant 1.000000e+00 : f32
    %81 = vector.broadcast %cst : f32 to vector<1x896xf32>
    %c108 = arith.constant 108 : index
    %c0_85 = arith.constant 0 : index
    %82 = vector.load %arg4[%c108, %c0_85] : memref<112x896xf32, #tpu.memory_space<vmem>>, vector<1x896xf32>
    tpu.vector_store %arg4[%c108, %c0_85], %81 {strides = array<i32>} : memref<112x896xf32, #tpu.memory_space<vmem>>, vector<1x896xf32>,
    %cst_86 = arith.constant 0.000000e+00 : f32
    %83 = vector.broadcast %cst_86 : f32 to vector<3x896xf32>
    %c109 = arith.constant 109 : index
    %c0_87 = arith.constant 0 : index
    %84 = vector.load %arg4[%c109, %c0_87] : memref<112x896xf32, #tpu.memory_space<vmem>>, vector<3x896xf32>
    tpu.vector_store %arg4[%c109, %c0_87], %83 {strides = array<i32>} : memref<112x896xf32, #tpu.memory_space<vmem>>, vector<3x896xf32>,
    %c0_88 = arith.constant 0 : index
    %c0_89 = arith.constant 0 : index
    %85 = vector.load %arg2[%c0_88, %c0_89] : memref<16x112xf32, #tpu.memory_space<vmem>>, vector<16x112xf32>
    %c0_90 = arith.constant 0 : index
    %c0_91 = arith.constant 0 : index
    %86 = vector.load %arg4[%c0_90, %c0_91] : memref<112x896xf32, #tpu.memory_space<vmem>>, vector<112x896xf32>
    %cst_92 = arith.constant dense<0.000000e+00> : vector<16x896xf32>
    %87 = tpu.matmul %85, %86, %cst_92 {dimension_numbers = #tpu.dot_dimension_numbers<[1], [0], [0], [1], [0, 0, 1, 1], [], []>, precision = #tpu.contract_precision<fp32>} : vector<16x112xf32>, vector<112x896xf32>, vector<16x896xf32> -> vector<16x896xf32>
    %c0_93 = arith.constant 0 : index
    %c0_94 = arith.constant 0 : index
    %c0_95 = arith.constant 0 : index
    %88 = vector.load %arg3[%c0_93, %c0_94, %c0_95] : memref<1x16x896xf32, #tpu.memory_space<vmem>>, vector<1x16x896xf32>
    %89 = vector.shape_cast %88 : vector<1x16x896xf32> to vector<16x896xf32>
    %90 = vector.shape_cast %87 : vector<16x896xf32> to vector<1x16x896xf32>
    tpu.vector_store %arg3[%c0_93, %c0_94, %c0_95], %90 {strides = array<i32>} : memref<1x16x896xf32, #tpu.memory_space<vmem>>, vector<1x16x896xf32>,
    return
  }
  func.func @transform_0(%arg0: i32) -> (i32, i32, i32) {
    %c0_i32 = arith.constant 0 : i32
    %c0_i32_0 = arith.constant 0 : i32
    %c0_i32_1 = arith.constant 0 : i32
    return %arg0, %c0_i32, %c0_i32_0 : i32, i32, i32
  }
  func.func @transform_1(%arg0: i32) -> (i32, i32) {
    %c0_i32 = arith.constant 0 : i32
    %c0_i32_0 = arith.constant 0 : i32
    %c0_i32_1 = arith.constant 0 : i32
    return %c0_i32, %c0_i32_0 : i32, i32
  }
  func.func @transform_2(%arg0: i32) -> (i32, i32, i32) {
    %c0_i32 = arith.constant 0 : i32
    %c0_i32_0 = arith.constant 0 : i32
    %c0_i32_1 = arith.constant 0 : i32
    return %arg0, %c0_i32, %c0_i32_0 : i32, i32, i32
  }
}

</mosaic_0001>

<llo_original>
// kernel: upsample_checker_forward.1
$region0: #{upsample_checker_forward.1}
  #allocation0 [shape = 'u32[]', space=smem, size = 0x4, offset = 0x4, fixed_abs, tag = 'smem constant byte address 0x4 - core index']
  #allocation1 [shape = 'u32[144,128]{1,0:T(1,128)}', space=vmem, size = 0x12000, scoped, tag = 'internal scratch']
  #allocation2 [shape = 'f32[112,896]{1,0:T(8,128)}', space=vmem, size = 0x62000, scoped, tag = 'scratch operand']
  %s0 = inlined_call_operand.vmem [shape: f32[2,4,1200], index: 0, kind: input, shape index: {}]
  %s1 = inlined_call_operand.vmem [shape: f32[16,112], index: 1, kind: input, shape index: {}]
  %s2 = inlined_call_operand.vmem [shape: f32[2,16,896], index: 2, kind: output, shape index: {}]
  %s3 = sld [smem:[#allocation0]]
  $region41: #{upsample_checker_forward.1} parent=0
    _
  %s5 = ssub.s32 1, %s3
  %s6 = scalar_select 0, %s5, %s3
  loop: start=0, step=1, limit=4
  $region2: #{upsample_checker_forward.1} parent=0 // loop_pre_header
    _
  $region3: #{upsample_checker_forward.1} parent=0 // loop_header
    %s8 = sphi 0, %s12
    %p9 = scmp.ge.s32.totalorder %s8, 4
    %s18 = sphi 0, %s20
    %s21 = sphi 0, %s18
    %s22 = sphi 0, %s21
    %s38 = sphi 0, %s22
    %s42 = sphi 0, %s42
    %s44 = sphi 0, %s42
    %s45 = sphi 0, %s44
    %s59 = sphi 0, %s45
    %s65 = sphi 0, %s67
    %s68 = sphi 0, %s65
    %s69 = sphi 0, %s68
    %s85 = sphi 0, %s69
  $region4: #{upsample_checker_forward.1} parent=0 // loop_header_branch
    %11 = sbr.rel (%p9) target = $region8
  $region5: #{upsample_checker_forward.1} parent=0 // loop_body
    %s13 = ssub.s32 %s8, 1
    %s14 = ssub.s32 %s8, 2
    %s15 = sadd.s32 %s8, 1
    %s16 = ssub.s32 %s8, %s15
    %p17 = scmp.eq.s32.totalorder %s16, 0
    %s19 = sadd.s32 %s18, 1
    %s20 = scalar_select %p17, %s18, %s19
    %p23 = pneg %p17
    %p24 = scmp.eq.s32.totalorder %s8, 1
    %p25 = por %p23, %p24
    %p26 = scmp.ne.s32.totalorder %s18, %s21
    %p27 = scmp.eq.s32.totalorder %s8, 0
    %p28 = por %p26, %p27
    %p29 = scmp.ne.s32.totalorder %s18, %s21
    %p30 = scmp.eq.s32.totalorder %s13, 1
    %p31 = por %p29, %p30
    %p32 = scmp.ne.s32.totalorder %s21, %s22
    %p33 = scmp.eq.s32.totalorder %s13, 0
    %p34 = por %p32, %p33
    %p35 = scmp.ne.s32.totalorder %s21, %s22
    %p36 = scmp.eq.s32.totalorder %s14, 1
    %p37 = por %p35, %p36
    %p39 = scmp.ne.s32.totalorder %s22, %s38
    %p40 = scmp.eq.s32.totalorder %s14, 0
    %p41 = por %p39, %p40
    %s43 = sadd.s32 %s42, 1
    %p46 = scmp.eq.s32.totalorder %s8, 1
    %p47 = scmp.ne.s32.totalorder %s42, %s44
    %p48 = scmp.eq.s32.totalorder %s8, 0
    %p49 = por %p47, %p48
    %p50 = scmp.ne.s32.totalorder %s42, %s44
    %p51 = scmp.eq.s32.totalorder %s13, 1
    %p52 = por %p50, %p51
    %p53 = scmp.ne.s32.totalorder %s44, %s45
    %p54 = scmp.eq.s32.totalorder %s13, 0
    %p55 = por %p53, %p54
    %p56 = scmp.ne.s32.totalorder %s44, %s45
    %p57 = scmp.eq.s32.totalorder %s14, 1
    %p58 = por %p56, %p57
    %p60 = scmp.ne.s32.totalorder %s45, %s59
    %p61 = scmp.eq.s32.totalorder %s14, 0
    %p62 = por %p60, %p61
    %s63 = ssub.s32 %s8, %s15
    %p64 = scmp.eq.s32.totalorder %s63, 0
    %s66 = sadd.s32 %s65, 1
    %s67 = scalar_select %p64, %s65, %s66
    %p70 = pneg %p64
    %p71 = scmp.eq.s32.totalorder %s8, 1
    %p72 = por %p70, %p71
    %p73 = scmp.ne.s32.totalorder %s65, %s68
    %p74 = scmp.eq.s32.totalorder %s8, 0
    %p75 = por %p73, %p74
    %p76 = scmp.ne.s32.totalorder %s65, %s68
    %p77 = scmp.eq.s32.totalorder %s13, 1
    %p78 = por %p76, %p77
    %p79 = scmp.ne.s32.totalorder %s68, %s69
    %p80 = scmp.eq.s32.totalorder %s13, 0
    %p81 = por %p79, %p80
    %p82 = scmp.ne.s32.totalorder %s68, %s69
    %p83 = scmp.eq.s32.totalorder %s14, 1
    %p84 = por %p82, %p83
    %p86 = scmp.ne.s32.totalorder %s69, %s85
    %p87 = scmp.eq.s32.totalorder %s14, 0
    %p88 = por %p86, %p87
    %p89 = scmp.le.s32.totalorder 1, %s8
    %p90 = scmp.lt.s32.totalorder %s8, 3
    %p91 = pnand %p89, %p90
    %p92 = pneg %p91
    // Predicated region
    $region9: #{upsample_checker_forward.1} parent=5 // pred_check
      _
    $region10: #{upsample_checker_forward.1} parent=5 // pred_check_branch
      %94 = sbr.rel (%p91) target = $region12
    $region11: #{upsample_checker_forward.1} parent=5 // pred_region
      %s95 = ssub.s32 %s8, 1
      // Predicated region
      $region13: #{upsample_checker_forward.1} parent=11 // pred_check
        %p96 = pneg %p55
      $region14: #{upsample_checker_forward.1} parent=11 // pred_check_branch
        %98 = sbr.rel (%p96) target = $region16
      $region15: #{upsample_checker_forward.1} parent=11 // pred_region
        _
      $region16: #{upsample_checker_forward.1} parent=11 // pred_fallthru
        _
    $region12: #{upsample_checker_forward.1} parent=5 // pred_fallthru
      _
    %p99 = scmp.lt.s32.totalorder %s8, 2
    // Predicated region
    $region17: #{upsample_checker_forward.1} parent=5 // pred_check
      %p100 = pneg %p99
    $region18: #{upsample_checker_forward.1} parent=5 // pred_check_branch
      %102 = sbr.rel (%p100) target = $region20
    $region19: #{upsample_checker_forward.1} parent=5 // pred_region
      // Predicated region
      $region21: #{upsample_checker_forward.1} parent=19 // pred_check
        %p103 = pneg %p28
      $region22: #{upsample_checker_forward.1} parent=19 // pred_check_branch
        %105 = sbr.rel (%p103) target = $region24
      $region23: #{upsample_checker_forward.1} parent=19 // pred_region
        %p106 = scmp.lt.s32.totalorder %s8, 1
        %s107 = scalar_select %p106, %s8, 1
        %s108 = smul.addr %s107, 10
        %s109 = smul.addr %s108, 4
        %s110 = scalar_lea.vmem %s0, %s109
      $region24: #{upsample_checker_forward.1} parent=19 // pred_fallthru
        _
    $region20: #{upsample_checker_forward.1} parent=5 // pred_fallthru
      _
    %p111 = scmp.le.s32.totalorder 1, %s8
    %p112 = scmp.lt.s32.totalorder %s8, 3
    %p113 = pnand %p111, %p112
    %p114 = pneg %p113
    // Predicated region
    $region25: #{upsample_checker_forward.1} parent=5 // pred_check
      _
    $region26: #{upsample_checker_forward.1} parent=5 // pred_check_branch
      %116 = sbr.rel (%p113) target = $region28
    $region27: #{upsample_checker_forward.1} parent=5 // pred_region
      %s117 = ssub.s32 %s8, 1
      %p118 = scmp.lt.s32.totalorder %s13, 1
      %s119 = scalar_select %p118, %s13, 1
      %s120 = smul.addr %s119, 10
      %s121 = smul.addr %s120, 4
      %s122 = scalar_lea.vmem %s0, %s121
      %p123 = pneg %p34
      %p124 = pneg %p31
      %p125 = pneg %p55
      %p126 = pneg %p52
      %p127 = pneg %p81
      %p128 = pneg %p78
      %p129 = scmp.lt.s32.totalorder %s13, 1
      %s130 = scalar_select %p129, %s13, 1
      %s131 = smul.addr %s130, 14
      %s132 = smul.addr %s131, 8
      %s133 = scalar_lea.vmem %s2, %s132
      %p134 = scmp.lt.s32.totalorder %s13, 1
      %s135 = scalar_select %p134, %s13, 1
      %s136 = smul.addr %s135, 10
      %s137 = smul.addr %s136, 4
      %s138 = scalar_lea.vmem %s0, %s137
      %p139 = scmp.lt.s32.totalorder %s13, 1
      %s140 = scalar_select %p139, %s13, 1
      %s141 = smul.addr %s140, 14
      %s142 = smul.addr %s141, 8
      %s143 = scalar_lea.vmem %s2, %s142
      %v144 = vld [vmem:[%s138] sm:$0xff]
      %v145 = vld [vmem:[%s138 + $0x8] sm:$0xff]
      %v146 = vld [vmem:[%s138 + $0x10] sm:$0xff]
      %v147 = vld [vmem:[%s138 + $0x18] sm:$0xf]
      %v151 = vcombine.high %v144, %v144
      %v152 = vcombine.high %v145, %v145
      %v153 = vcombine.high %v146, %v146
      %157 = vst [vmem:[#allocation2] sm:$0xf] %v144
      %158 = vst [vmem:[#allocation2 + $0x8] sm:$0xf] %v151
      %159 = vst [vmem:[#allocation2 + $0x10] sm:$0xf] %v145
      %160 = vst [vmem:[#allocation2 + $0x18] sm:$0xf] %v152
      %161 = vst [vmem:[#allocation2 + $0x20] sm:$0xf] %v146
      %162 = vst [vmem:[#allocation2 + $0x28] sm:$0xf] %v153
      %163 = vst [vmem:[#allocation2 + $0x30] sm:$0xf] %v147
      %v164 = vld [vmem:[%s138] sm:$0xff]
      %v165 = vld [vmem:[%s138 + $0x8] sm:$0xff]
      %v166 = vld [vmem:[%s138 + $0x10] sm:$0xff]
      %v167 = vld [vmem:[%s138 + $0x18] sm:$0xff]
      %v172 = vcombine.low %v164, %v164
      %v173 = vcombine.low %v165, %v165
      %v174 = vcombine.low %v166, %v166
      %v175 = vcombine.low %v167, %v167
      %176 = vrot.lane.b32.xlu0 %v172, 127
      %v177 = vpop.permute.xlu0 %176
      %178 = vrot.lane.b32.xlu0 %v164, 127
      %v179 = vpop.permute.xlu0 %178
      %180 = vrot.lane.b32.xlu0 %v173, 127
      %v181 = vpop.permute.xlu0 %180
      %182 = vrot.lane.b32.xlu0 %v165, 127
      %v183 = vpop.permute.xlu0 %182
      %184 = vrot.lane.b32.xlu0 %v174, 127
      %v185 = vpop.permute.xlu0 %184
      %186 = vrot.lane.b32.xlu0 %v166, 127
      %v187 = vpop.permute.xlu0 %186
      %188 = vrot.lane.b32.xlu0 %v175, 127
      %v189 = vpop.permute.xlu0 %188
      %190 = vrot.lane.b32.xlu0 %v167, 127
      %v191 = vpop.permute.xlu0 %190
      %vm192 = vcmask 1039360
      %v193 = vsel %vm192, %v177, %v179
      %v194 = vsel %vm192, %v179, %v181
      %v195 = vsel %vm192, %v181, %v183
      %v196 = vsel %vm192, %v183, %v185
      %v197 = vsel %vm192, %v185, %v187
      %v198 = vsel %vm192, %v187, %v189
      %v199 = vsel %vm192, %v189, %v191
      %207 = vst [vmem:[#allocation2] sm:$0xf0] %v193
      %208 = vst [vmem:[#allocation2 + $0x8] sm:$0xf0] %v194
      %209 = vst [vmem:[#allocation2 + $0x10] sm:$0xf0] %v195
      %210 = vst [vmem:[#allocation2 + $0x18] sm:$0xf0] %v196
      %211 = vst [vmem:[#allocation2 + $0x20] sm:$0xf0] %v197
      %212 = vst [vmem:[#allocation2 + $0x28] sm:$0xf0] %v198
      %213 = vst [vmem:[#allocation2 + $0x30] sm:$0xf0] %v199
      %v214 = vld [vmem:[%s138] sm:$0xff]
      %v215 = vld [vmem:[%s138 + $0x8] sm:$0xff]
      %v216 = vld [vmem:[%s138 + $0x10] sm:$0xff]
      %v217 = vld [vmem:[%s138 + $0x18] sm:$0xff]
      %v222 = vcombine.high %v214, %v214
      %v223 = vcombine.high %v215, %v215
      %v224 = vcombine.high %v216, %v216
      %v225 = vcombine.high %v217, %v217
      %226 = vrot.lane.b32.xlu0 %v214, 126
      %v227 = vpop.permute.xlu0 %226
      %228 = vrot.lane.b32.xlu0 %v222, 126
      %v229 = vpop.permute.xlu0 %228
      %230 = vrot.lane.b32.xlu0 %v215, 126
      %v231 = vpop.permute.xlu0 %230
      %232 = vrot.lane.b32.xlu0 %v223, 126
      %v233 = vpop.permute.xlu0 %232
      %234 = vrot.lane.b32.xlu0 %v216, 126
      %v235 = vpop.permute.xlu0 %234
      %236 = vrot.lane.b32.xlu0 %v224, 126
      %v237 = vpop.permute.xlu0 %236
      %238 = vrot.lane.b32.xlu0 %v217, 126
      %v239 = vpop.permute.xlu0 %238
      %240 = vrot.lane.b32.xlu0 %v225, 126
      %v241 = vpop.permute.xlu0 %240
      %vm242 = vcmask 1031168
      %v243 = vsel %vm242, %v227, %v229
      %v244 = vsel %vm242, %v229, %v231
      %v245 = vsel %vm242, %v231, %v233
      %v246 = vsel %vm242, %v233, %v235
      %v247 = vsel %vm242, %v235, %v237
      %v248 = vsel %vm242, %v237, %v239
      %v249 = vsel %vm242, %v239, %v241
      %257 = vst [vmem:[#allocation2 + $0x38] sm:$0xf] %v243
      %258 = vst [vmem:[#allocation2 + $0x40] sm:$0xf] %v244
      %259 = vst [vmem:[#allocation2 + $0x48] sm:$0xf] %v245
      %260 = vst [vmem:[#allocation2 + $0x50] sm:$0xf] %v246
      %261 = vst [vmem:[#allocation2 + $0x58] sm:$0xf] %v247
      %262 = vst [vmem:[#allocation2 + $0x60] sm:$0xf] %v248
      %263 = vst [vmem:[#allocation2 + $0x68] sm:$0xf] %v249
      %v264 = vld [vmem:[%s138] sm:$0xff]
      %v265 = vld [vmem:[%s138 + $0x8] sm:$0xff]
      %v266 = vld [vmem:[%s138 + $0x10] sm:$0xff]
      %v267 = vld [vmem:[%s138 + $0x18] sm:$0xff]
      %v272 = vcombine.low %v264, %v264
      %v273 = vcombine.low %v265, %v265
      %v274 = vcombine.low %v266, %v266
      %v275 = vcombine.low %v267, %v267
      %276 = vrot.lane.b32.xlu0 %v272, 118
      %v277 = vpop.permute.xlu0 %276
      %278 = vrot.lane.b32.xlu0 %v264, 118
      %v279 = vpop.permute.xlu0 %278
      %280 = vrot.lane.b32.xlu0 %v273, 118
      %v281 = vpop.permute.xlu0 %280
      %282 = vrot.lane.b32.xlu0 %v265, 118
      %v283 = vpop.permute.xlu0 %282
      %284 = vrot.lane.b32.xlu0 %v274, 118
      %v285 = vpop.permute.xlu0 %284
      %286 = vrot.lane.b32.xlu0 %v266, 118
      %v287 = vpop.permute.xlu0 %286
      %288 = vrot.lane.b32.xlu0 %v275, 118
      %v289 = vpop.permute.xlu0 %288
      %290 = vrot.lane.b32.xlu0 %v267, 118
      %v291 = vpop.permute.xlu0 %290
      %vm292 = vcmask 965632
      %v293 = vsel %vm292, %v277, %v279
      %v294 = vsel %vm292, %v279, %v281
      %v295 = vsel %vm292, %v281, %v283
      %v296 = vsel %vm292, %v283, %v285
      %v297 = vsel %vm292, %v285, %v287
      %v298 = vsel %vm292, %v287, %v289
      %v299 = vsel %vm292, %v289, %v291
      %307 = vst [vmem:[#allocation2 + $0x38] sm:$0xf0] %v293
      %308 = vst [vmem:[#allocation2 + $0x40] sm:$0xf0] %v294
      %309 = vst [vmem:[#allocation2 + $0x48] sm:$0xf0] %v295
      %310 = vst [vmem:[#allocation2 + $0x50] sm:$0xf0] %v296
      %311 = vst [vmem:[#allocation2 + $0x58] sm:$0xf0] %v297
      %312 = vst [vmem:[#allocation2 + $0x60] sm:$0xf0] %v298
      %313 = vst [vmem:[#allocation2 + $0x68] sm:$0xf0] %v299
      %v314 = vld [vmem:[%s138] sm:$0xff]
      %v315 = vld [vmem:[%s138 + $0x8] sm:$0xff]
      %v316 = vld [vmem:[%s138 + $0x10] sm:$0xff]
      %v317 = vld [vmem:[%s138 + $0x18] sm:$0xff]
      %v322 = vcombine.high %v314, %v314
      %v323 = vcombine.high %v315, %v315
      %v324 = vcombine.high %v316, %v316
      %v325 = vcombine.high %v317, %v317
      %326 = vrot.lane.b32.xlu0 %v314, 117
      %v327 = vpop.permute.xlu0 %326
      %328 = vrot.lane.b32.xlu0 %v322, 117
      %v329 = vpop.permute.xlu0 %328
      %330 = vrot.lane.b32.xlu0 %v315, 117
      %v331 = vpop.permute.xlu0 %330
      %332 = vrot.lane.b32.xlu0 %v323, 117
      %v333 = vpop.permute.xlu0 %332
      %334 = vrot.lane.b32.xlu0 %v316, 117
      %v335 = vpop.permute.xlu0 %334
      %336 = vrot.lane.b32.xlu0 %v324, 117
      %v337 = vpop.permute.xlu0 %336
      %338 = vrot.lane.b32.xlu0 %v317, 117
      %v339 = vpop.permute.xlu0 %338
      %340 = vrot.lane.b32.xlu0 %v325, 117
      %v341 = vpop.permute.xlu0 %340
      %vm342 = vcmask 957440
      %v343 = vsel %vm342, %v327, %v329
      %v344 = vsel %vm342, %v329, %v331
      %v345 = vsel %vm342, %v331, %v333
      %v346 = vsel %vm342, %v333, %v335
      %v347 = vsel %vm342, %v335, %v337
      %v348 = vsel %vm342, %v337, %v339
      %v349 = vsel %vm342, %v339, %v341
      %357 = vst [vmem:[#allocation2 + $0x70] sm:$0xf] %v343
      %358 = vst [vmem:[#allocation2 + $0x78] sm:$0xf] %v344
      %359 = vst [vmem:[#allocation2 + $0x80] sm:$0xf] %v345
      %360 = vst [vmem:[#allocation2 + $0x88] sm:$0xf] %v346
      %361 = vst [vmem:[#allocation2 + $0x90] sm:$0xf] %v347
      %362 = vst [vmem:[#allocation2 + $0x98] sm:$0xf] %v348
      %363 = vst [vmem:[#allocation2 + $0xa0] sm:$0xf] %v349
      %v364 = vld [vmem:[%s138] sm:$0xff]
      %v365 = vld [vmem:[%s138 + $0x8] sm:$0xff]
      %v366 = vld [vmem:[%s138 + $0x10] sm:$0xff]
      %v367 = vld [vmem:[%s138 + $0x18] sm:$0xff]
      %v372 = vcombine.low %v364, %v364
      %v373 = vcombine.low %v365, %v365
      %v374 = vcombine.low %v366, %v366
      %v375 = vcombine.low %v367, %v367
      %376 = vrot.lane.b32.xlu0 %v372, 116
      %v377 = vpop.permute.xlu0 %376
      %378 = vrot.lane.b32.xlu0 %v364, 116
      %v379 = vpop.permute.xlu0 %378
      %380 = vrot.lane.b32.xlu0 %v373, 116
      %v381 = vpop.permute.xlu0 %380
      %382 = vrot.lane.b32.xlu0 %v365, 116
      %v383 = vpop.permute.xlu0 %382
      %384 = vrot.lane.b32.xlu0 %v374, 116
      %v385 = vpop.permute.xlu0 %384
      %386 = vrot.lane.b32.xlu0 %v366, 116
      %v387 = vpop.permute.xlu0 %386
      %388 = vrot.lane.b32.xlu0 %v375, 116
      %v389 = vpop.permute.xlu0 %388
      %390 = vrot.lane.b32.xlu0 %v367, 116
      %v391 = vpop.permute.xlu0 %390
      %vm392 = vcmask 949248
      %v393 = vsel %vm392, %v377, %v379
      %v394 = vsel %vm392, %v379, %v381
      %v395 = vsel %vm392, %v381, %v383
      %v396 = vsel %vm392, %v383, %v385
      %v397 = vsel %vm392, %v385, %v387
      %v398 = vsel %vm392, %v387, %v389
      %v399 = vsel %vm392, %v389, %v391
      %407 = vst [vmem:[#allocation2 + $0x70] sm:$0xf0] %v393
      %408 = vst [vmem:[#allocation2 + $0x78] sm:$0xf0] %v394
      %409 = vst [vmem:[#allocation2 + $0x80] sm:$0xf0] %v395
      %410 = vst [vmem:[#allocation2 + $0x88] sm:$0xf0] %v396
      %411 = vst [vmem:[#allocation2 + $0x90] sm:$0xf0] %v397
      %412 = vst [vmem:[#allocation2 + $0x98] sm:$0xf0] %v398
      %413 = vst [vmem:[#allocation2 + $0xa0] sm:$0xf0] %v399
      %v414 = vld [vmem:[%s138] sm:$0xff]
      %v415 = vld [vmem:[%s138 + $0x8] sm:$0xff]
      %v416 = vld [vmem:[%s138 + $0x10] sm:$0xff]
      %v417 = vld [vmem:[%s138 + $0x18] sm:$0xff]
      %v422 = vcombine.high %v414, %v414
      %v423 = vcombine.high %v415, %v415
      %v424 = vcombine.high %v416, %v416
      %v425 = vcombine.high %v417, %v417
      %426 = vrot.lane.b32.xlu0 %v414, 108
      %v427 = vpop.permute.xlu0 %426
      %428 = vrot.lane.b32.xlu0 %v422, 108
      %v429 = vpop.permute.xlu0 %428
      %430 = vrot.lane.b32.xlu0 %v415, 108
      %v431 = vpop.permute.xlu0 %430
      %432 = vrot.lane.b32.xlu0 %v423, 108
      %v433 = vpop.permute.xlu0 %432
      %434 = vrot.lane.b32.xlu0 %v416, 108
      %v435 = vpop.permute.xlu0 %434
      %436 = vrot.lane.b32.xlu0 %v424, 108
      %v437 = vpop.permute.xlu0 %436
      %438 = vrot.lane.b32.xlu0 %v417, 108
      %v439 = vpop.permute.xlu0 %438
      %440 = vrot.lane.b32.xlu0 %v425, 108
      %v441 = vpop.permute.xlu0 %440
      %vm442 = vcmask 883712
      %v443 = vsel %vm442, %v427, %v429
      %v444 = vsel %vm442, %v429, %v431
      %v445 = vsel %vm442, %v431, %v433
      %v446 = vsel %vm442, %v433, %v435
      %v447 = vsel %vm442, %v435, %v437
      %v448 = vsel %vm442, %v437, %v439
      %v449 = vsel %vm442, %v439, %v441
      %457 = vst [vmem:[#allocation2 + $0xa8] sm:$0xf] %v443
      %458 = vst [vmem:[#allocation2 + $0xb0] sm:$0xf] %v444
      %459 = vst [vmem:[#allocation2 + $0xb8] sm:$0xf] %v445
      %460 = vst [vmem:[#allocation2 + $0xc0] sm:$0xf] %v446
      %461 = vst [vmem:[#allocation2 + $0xc8] sm:$0xf] %v447
      %462 = vst [vmem:[#allocation2 + $0xd0] sm:$0xf] %v448
      %463 = vst [vmem:[#allocation2 + $0xd8] sm:$0xf] %v449
      %v464 = vld [vmem:[%s138] sm:$0xff]
      %v465 = vld [vmem:[%s138 + $0x8] sm:$0xff]
      %v466 = vld [vmem:[%s138 + $0x10] sm:$0xff]
      %v467 = vld [vmem:[%s138 + $0x18] sm:$0xff]
      %v472 = vcombine.low %v464, %v464
      %v473 = vcombine.low %v465, %v465
      %v474 = vcombine.low %v466, %v466
      %v475 = vcombine.low %v467, %v467
      %476 = vrot.lane.b32.xlu0 %v472, 107
      %v477 = vpop.permute.xlu0 %476
      %478 = vrot.lane.b32.xlu0 %v464, 107
      %v479 = vpop.permute.xlu0 %478
      %480 = vrot.lane.b32.xlu0 %v473, 107
      %v481 = vpop.permute.xlu0 %480
      %482 = vrot.lane.b32.xlu0 %v465, 107
      %v483 = vpop.permute.xlu0 %482
      %484 = vrot.lane.b32.xlu0 %v474, 107
      %v485 = vpop.permute.xlu0 %484
      %486 = vrot.lane.b32.xlu0 %v466, 107
      %v487 = vpop.permute.xlu0 %486
      %488 = vrot.lane.b32.xlu0 %v475, 107
      %v489 = vpop.permute.xlu0 %488
      %490 = vrot.lane.b32.xlu0 %v467, 107
      %v491 = vpop.permute.xlu0 %490
      %vm492 = vcmask 875520
      %v493 = vsel %vm492, %v477, %v479
      %v494 = vsel %vm492, %v479, %v481
      %v495 = vsel %vm492, %v481, %v483
      %v496 = vsel %vm492, %v483, %v485
      %v497 = vsel %vm492, %v485, %v487
      %v498 = vsel %vm492, %v487, %v489
      %v499 = vsel %vm492, %v489, %v491
      %507 = vst [vmem:[#allocation2 + $0xa8] sm:$0xf0] %v493
      %508 = vst [vmem:[#allocation2 + $0xb0] sm:$0xf0] %v494
      %509 = vst [vmem:[#allocation2 + $0xb8] sm:$0xf0] %v495
      %510 = vst [vmem:[#allocation2 + $0xc0] sm:$0xf0] %v496
      %511 = vst [vmem:[#allocation2 + $0xc8] sm:$0xf0] %v497
      %512 = vst [vmem:[#allocation2 + $0xd0] sm:$0xf0] %v498
      %513 = vst [vmem:[#allocation2 + $0xd8] sm:$0xf0] %v499
      %v514 = vld [vmem:[%s138] sm:$0xff]
      %v515 = vld [vmem:[%s138 + $0x8] sm:$0xff]
      %v516 = vld [vmem:[%s138 + $0x10] sm:$0xff]
      %v517 = vld [vmem:[%s138 + $0x18] sm:$0xff]
      %v522 = vcombine.high %v514, %v514
      %v523 = vcombine.high %v515, %v515
      %v524 = vcombine.high %v516, %v516
      %v525 = vcombine.high %v517, %v517
      %526 = vrot.lane.b32.xlu0 %v514, 106
      %v527 = vpop.permute.xlu0 %526
      %528 = vrot.lane.b32.xlu0 %v522, 106
      %v529 = vpop.permute.xlu0 %528
      %530 = vrot.lane.b32.xlu0 %v515, 106
      %v531 = vpop.permute.xlu0 %530
      %532 = vrot.lane.b32.xlu0 %v523, 106
      %v533 = vpop.permute.xlu0 %532
      %534 = vrot.lane.b32.xlu0 %v516, 106
      %v535 = vpop.permute.xlu0 %534
      %536 = vrot.lane.b32.xlu0 %v524, 106
      %v537 = vpop.permute.xlu0 %536
      %538 = vrot.lane.b32.xlu0 %v517, 106
      %v539 = vpop.permute.xlu0 %538
      %540 = vrot.lane.b32.xlu0 %v525, 106
      %v541 = vpop.permute.xlu0 %540
      %vm542 = vcmask 867328
      %v543 = vsel %vm542, %v527, %v529
      %v544 = vsel %vm542, %v529, %v531
      %v545 = vsel %vm542, %v531, %v533
      %v546 = vsel %vm542, %v533, %v535
      %v547 = vsel %vm542, %v535, %v537
      %v548 = vsel %vm542, %v537, %v539
      %v549 = vsel %vm542, %v539, %v541
      %557 = vst [vmem:[#allocation2 + $0xe0] sm:$0xf] %v543
      %558 = vst [vmem:[#allocation2 + $0xe8] sm:$0xf] %v544
      %559 = vst [vmem:[#allocation2 + $0xf0] sm:$0xf] %v545
      %560 = vst [vmem:[#allocation2 + $0xf8] sm:$0xf] %v546
      %561 = vst [vmem:[#allocation2 + $0x100] sm:$0xf] %v547
      %562 = vst [vmem:[#allocation2 + $0x108] sm:$0xf] %v548
      %563 = vst [vmem:[#allocation2 + $0x110] sm:$0xf] %v549
      %v564 = vld [vmem:[%s138] sm:$0xff]
      %v565 = vld [vmem:[%s138 + $0x8] sm:$0xff]
      %v566 = vld [vmem:[%s138 + $0x10] sm:$0xff]
      %v567 = vld [vmem:[%s138 + $0x18] sm:$0xff]
      %v572 = vcombine.low %v564, %v564
      %v573 = vcombine.low %v565, %v565
      %v574 = vcombine.low %v566, %v566
      %v575 = vcombine.low %v567, %v567
      %576 = vrot.lane.b32.xlu0 %v572, 28
      %v577 = vpop.permute.xlu0 %576
      %578 = vrot.lane.b32.xlu0 %v564, 28
      %v579 = vpop.permute.xlu0 %578
      %580 = vrot.lane.b32.xlu0 %v573, 28
      %v581 = vpop.permute.xlu0 %580
      %582 = vrot.lane.b32.xlu0 %v565, 28
      %v583 = vpop.permute.xlu0 %582
      %584 = vrot.lane.b32.xlu0 %v574, 28
      %v585 = vpop.permute.xlu0 %584
      %586 = vrot.lane.b32.xlu0 %v566, 28
      %v587 = vpop.permute.xlu0 %586
      %588 = vrot.lane.b32.xlu0 %v575, 28
      %v589 = vpop.permute.xlu0 %588
      %590 = vrot.lane.b32.xlu0 %v567, 28
      %v591 = vpop.permute.xlu0 %590
      %vm592 = vcmask 228352
      %v593 = vsel %vm592, %v577, %v579
      %v594 = vsel %vm592, %v579, %v581
      %v595 = vsel %vm592, %v581, %v583
      %v596 = vsel %vm592, %v583, %v585
      %v597 = vsel %vm592, %v585, %v587
      %v598 = vsel %vm592, %v587, %v589
      %v599 = vsel %vm592, %v589, %v591
      %607 = vst [vmem:[#allocation2 + $0xe0] sm:$0xf0] %v593
      %608 = vst [vmem:[#allocation2 + $0xe8] sm:$0xf0] %v594
      %609 = vst [vmem:[#allocation2 + $0xf0] sm:$0xf0] %v595
      %610 = vst [vmem:[#allocation2 + $0xf8] sm:$0xf0] %v596
      %611 = vst [vmem:[#allocation2 + $0x100] sm:$0xf0] %v597
      %612 = vst [vmem:[#allocation2 + $0x108] sm:$0xf0] %v598
      %613 = vst [vmem:[#allocation2 + $0x110] sm:$0xf0] %v599
      %v614 = vld [vmem:[%s138] sm:$0xff]
      %v615 = vld [vmem:[%s138 + $0x8] sm:$0xff]
      %v616 = vld [vmem:[%s138 + $0x10] sm:$0xff]
      %v617 = vld [vmem:[%s138 + $0x18] sm:$0xff]
      %v622 = vcombine.high %v614, %v614
      %v623 = vcombine.high %v615, %v615
      %v624 = vcombine.high %v616, %v616
      %v625 = vcombine.high %v617, %v617
      %626 = vrot.lane.b32.xlu0 %v614, 27
      %v627 = vpop.permute.xlu0 %626
      %628 = vrot.lane.b32.xlu0 %v622, 27
      %v629 = vpop.permute.xlu0 %628
      %630 = vrot.lane.b32.xlu0 %v615, 27
      %v631 = vpop.permute.xlu0 %630
      %632 = vrot.lane.b32.xlu0 %v623, 27
      %v633 = vpop.permute.xlu0 %632
      %634 = vrot.lane.b32.xlu0 %v616, 27
      %v635 = vpop.permute.xlu0 %634
      %636 = vrot.lane.b32.xlu0 %v624, 27
      %v637 = vpop.permute.xlu0 %636
      %638 = vrot.lane.b32.xlu0 %v617, 27
      %v639 = vpop.permute.xlu0 %638
      %640 = vrot.lane.b32.xlu0 %v625, 27
      %v641 = vpop.permute.xlu0 %640
      %vm642 = vcmask 220160
      %v643 = vsel %vm642, %v627, %v629
      %v644 = vsel %vm642, %v629, %v631
      %v645 = vsel %vm642, %v631, %v633
      %v646 = vsel %vm642, %v633, %v635
      %v647 = vsel %vm642, %v635, %v637
      %v648 = vsel %vm642, %v637, %v639
      %v649 = vsel %vm642, %v639, %v641
      %657 = vst [vmem:[#allocation2 + $0x118] sm:$0xf] %v643
      %658 = vst [vmem:[#allocation2 + $0x120] sm:$0xf] %v644
      %659 = vst [vmem:[#allocation2 + $0x128] sm:$0xf] %v645
      %660 = vst [vmem:[#allocation2 + $0x130] sm:$0xf] %v646
      %661 = vst [vmem:[#allocation2 + $0x138] sm:$0xf] %v647
      %662 = vst [vmem:[#allocation2 + $0x140] sm:$0xf] %v648
      %663 = vst [vmem:[#allocation2 + $0x148] sm:$0xf] %v649
      %v664 = vld [vmem:[%s138] sm:$0xff]
      %v665 = vld [vmem:[%s138 + $0x8] sm:$0xff]
      %v666 = vld [vmem:[%s138 + $0x10] sm:$0xff]
      %v667 = vld [vmem:[%s138 + $0x18] sm:$0xff]
      %v672 = vcombine.low %v664, %v664
      %v673 = vcombine.low %v665, %v665
      %v674 = vcombine.low %v666, %v666
      %v675 = vcombine.low %v667, %v667
      %676 = vrot.lane.b32.xlu0 %v672, 26
      %v677 = vpop.permute.xlu0 %676
      %678 = vrot.lane.b32.xlu0 %v664, 26
      %v679 = vpop.permute.xlu0 %678
      %680 = vrot.lane.b32.xlu0 %v673, 26
      %v681 = vpop.permute.xlu0 %680
      %682 = vrot.lane.b32.xlu0 %v665, 26
      %v683 = vpop.permute.xlu0 %682
      %684 = vrot.lane.b32.xlu0 %v674, 26
      %v685 = vpop.permute.xlu0 %684
      %686 = vrot.lane.b32.xlu0 %v666, 26
      %v687 = vpop.permute.xlu0 %686
      %688 = vrot.lane.b32.xlu0 %v675, 26
      %v689 = vpop.permute.xlu0 %688
      %690 = vrot.lane.b32.xlu0 %v667, 26
      %v691 = vpop.permute.xlu0 %690
      %vm692 = vcmask 211968
      %v693 = vsel %vm692, %v677, %v679
      %v694 = vsel %vm692, %v679, %v681
      %v695 = vsel %vm692, %v681, %v683
      %v696 = vsel %vm692, %v683, %v685
      %v697 = vsel %vm692, %v685, %v687
      %v698 = vsel %vm692, %v687, %v689
      %v699 = vsel %vm692, %v689, %v691
      %707 = vst [vmem:[#allocation2 + $0x118] sm:$0xf0] %v693
      %708 = vst [vmem:[#allocation2 + $0x120] sm:$0xf0] %v694
      %709 = vst [vmem:[#allocation2 + $0x128] sm:$0xf0] %v695
      %710 = vst [vmem:[#allocation2 + $0x130] sm:$0xf0] %v696
      %711 = vst [vmem:[#allocation2 + $0x138] sm:$0xf0] %v697
      %712 = vst [vmem:[#allocation2 + $0x140] sm:$0xf0] %v698
      %713 = vst [vmem:[#allocation2 + $0x148] sm:$0xf0] %v699
      %v714 = vld [vmem:[%s138] sm:$0xff]
      %v715 = vld [vmem:[%s138 + $0x8] sm:$0xff]
      %v716 = vld [vmem:[%s138 + $0x10] sm:$0xff]
      %v717 = vld [vmem:[%s138 + $0x18] sm:$0xff]
      %v722 = vcombine.high %v714, %v714
      %v723 = vcombine.high %v715, %v715
      %v724 = vcombine.high %v716, %v716
      %v725 = vcombine.high %v717, %v717
      %726 = vrot.lane.b32.xlu0 %v714, 18
      %v727 = vpop.permute.xlu0 %726
      %728 = vrot.lane.b32.xlu0 %v722, 18
      %v729 = vpop.permute.xlu0 %728
      %730 = vrot.lane.b32.xlu0 %v715, 18
      %v731 = vpop.permute.xlu0 %730
      %732 = vrot.lane.b32.xlu0 %v723, 18
      %v733 = vpop.permute.xlu0 %732
      %734 = vrot.lane.b32.xlu0 %v716, 18
      %v735 = vpop.permute.xlu0 %734
      %736 = vrot.lane.b32.xlu0 %v724, 18
      %v737 = vpop.permute.xlu0 %736
      %738 = vrot.lane.b32.xlu0 %v717, 18
      %v739 = vpop.permute.xlu0 %738
      %740 = vrot.lane.b32.xlu0 %v725, 18
      %v741 = vpop.permute.xlu0 %740
      %vm742 = vcmask 146432
      %v743 = vsel %vm742, %v727, %v729
      %v744 = vsel %vm742, %v729, %v731
      %v745 = vsel %vm742, %v731, %v733
      %v746 = vsel %vm742, %v733, %v735
      %v747 = vsel %vm742, %v735, %v737
      %v748 = vsel %vm742, %v737, %v739
      %v749 = vsel %vm742, %v739, %v741
      %757 = vst [vmem:[#allocation2 + $0x150] sm:$0xf] %v743
      %758 = vst [vmem:[#allocation2 + $0x158] sm:$0xf] %v744
      %759 = vst [vmem:[#allocation2 + $0x160] sm:$0xf] %v745
      %760 = vst [vmem:[#allocation2 + $0x168] sm:$0xf] %v746
      %761 = vst [vmem:[#allocation2 + $0x170] sm:$0xf] %v747
      %762 = vst [vmem:[#allocation2 + $0x178] sm:$0xf] %v748
      %763 = vst [vmem:[#allocation2 + $0x180] sm:$0xf] %v749
      %v764 = vld [vmem:[%s138] sm:$0xff]
      %v765 = vld [vmem:[%s138 + $0x8] sm:$0xff]
      %v766 = vld [vmem:[%s138 + $0x10] sm:$0xff]
      %v767 = vld [vmem:[%s138 + $0x18] sm:$0xff]
      %v772 = vcombine.low %v764, %v764
      %v773 = vcombine.low %v765, %v765
      %v774 = vcombine.low %v766, %v766
      %v775 = vcombine.low %v767, %v767
      %776 = vrot.lane.b32.xlu0 %v772, 17
      %v777 = vpop.permute.xlu0 %776
      %778 = vrot.lane.b32.xlu0 %v764, 17
      %v779 = vpop.permute.xlu0 %778
      %780 = vrot.lane.b32.xlu0 %v773, 17
      %v781 = vpop.permute.xlu0 %780
      %782 = vrot.lane.b32.xlu0 %v765, 17
      %v783 = vpop.permute.xlu0 %782
      %784 = vrot.lane.b32.xlu0 %v774, 17
      %v785 = vpop.permute.xlu0 %784
      %786 = vrot.lane.b32.xlu0 %v766, 17
      %v787 = vpop.permute.xlu0 %786
      %788 = vrot.lane.b32.xlu0 %v775, 17
      %v789 = vpop.permute.xlu0 %788
      %790 = vrot.lane.b32.xlu0 %v767, 17
      %v791 = vpop.permute.xlu0 %790
      %vm792 = vcmask 138240
      %v793 = vsel %vm792, %v777, %v779
      %v794 = vsel %vm792, %v779, %v781
      %v795 = vsel %vm792, %v781, %v783
      %v796 = vsel %vm792, %v783, %v785
      %v797 = vsel %vm792, %v785, %v787
      %v798 = vsel %vm792, %v787, %v789
      %v799 = vsel %vm792, %v789, %v791
      %807 = vst [vmem:[#allocation2 + $0x150] sm:$0xf0] %v793
      %808 = vst [vmem:[#allocation2 + $0x158] sm:$0xf0] %v794
      %809 = vst [vmem:[#allocation2 + $0x160] sm:$0xf0] %v795
      %810 = vst [vmem:[#allocation2 + $0x168] sm:$0xf0] %v796
      %811 = vst [vmem:[#allocation2 + $0x170] sm:$0xf0] %v797
      %812 = vst [vmem:[#allocation2 + $0x178] sm:$0xf0] %v798
      %813 = vst [vmem:[#allocation2 + $0x180] sm:$0xf0] %v799
      %v814 = vld [vmem:[%s138] sm:$0xff]
      %v815 = vld [vmem:[%s138 + $0x8] sm:$0xff]
      %v816 = vld [vmem:[%s138 + $0x10] sm:$0xff]
      %v817 = vld [vmem:[%s138 + $0x18] sm:$0xff]
      %v822 = vcombine.high %v814, %v814
      %v823 = vcombine.high %v815, %v815
      %v824 = vcombine.high %v816, %v816
      %v825 = vcombine.high %v817, %v817
      %826 = vrot.lane.b32.xlu0 %v814, 16
      %v827 = vpop.permute.xlu0 %826
      %828 = vrot.lane.b32.xlu0 %v822, 16
      %v829 = vpop.permute.xlu0 %828
      %830 = vrot.lane.b32.xlu0 %v815, 16
      %v831 = vpop.permute.xlu0 %830
      %832 = vrot.lane.b32.xlu0 %v823, 16
      %v833 = vpop.permute.xlu0 %832
      %834 = vrot.lane.b32.xlu0 %v816, 16
      %v835 = vpop.permute.xlu0 %834
      %836 = vrot.lane.b32.xlu0 %v824, 16
      %v837 = vpop.permute.xlu0 %836
      %838 = vrot.lane.b32.xlu0 %v817, 16
      %v839 = vpop.permute.xlu0 %838
      %840 = vrot.lane.b32.xlu0 %v825, 16
      %v841 = vpop.permute.xlu0 %840
      %vm842 = vcmask 130048
      %v843 = vsel %vm842, %v827, %v829
      %v844 = vsel %vm842, %v829, %v831
      %v845 = vsel %vm842, %v831, %v833
      %v846 = vsel %vm842, %v833, %v835
      %v847 = vsel %vm842, %v835, %v837
      %v848 = vsel %vm842, %v837, %v839
      %v849 = vsel %vm842, %v839, %v841
      %857 = vst [vmem:[#allocation2 + $0x188] sm:$0xf] %v843
      %858 = vst [vmem:[#allocation2 + $0x190] sm:$0xf] %v844
      %859 = vst [vmem:[#allocation2 + $0x198] sm:$0xf] %v845
      %860 = vst [vmem:[#allocation2 + $0x1a0] sm:$0xf] %v846
      %861 = vst [vmem:[#allocation2 + $0x1a8] sm:$0xf] %v847
      %862 = vst [vmem:[#allocation2 + $0x1b0] sm:$0xf] %v848
      %863 = vst [vmem:[#allocation2 + $0x1b8] sm:$0xf] %v849
      %v864 = vld [vmem:[%s138] sm:$0xff]
      %v865 = vld [vmem:[%s138 + $0x8] sm:$0xff]
      %v866 = vld [vmem:[%s138 + $0x10] sm:$0xff]
      %v867 = vld [vmem:[%s138 + $0x18] sm:$0xff]
      %v872 = vcombine.low %v864, %v864
      %v873 = vcombine.low %v865, %v865
      %v874 = vcombine.low %v866, %v866
      %v875 = vcombine.low %v867, %v867
      %876 = vrot.lane.b32.xlu0 %v872, 8
      %v877 = vpop.permute.xlu0 %876
      %878 = vrot.lane.b32.xlu0 %v864, 8
      %v879 = vpop.permute.xlu0 %878
      %880 = vrot.lane.b32.xlu0 %v873, 8
      %v881 = vpop.permute.xlu0 %880
      %882 = vrot.lane.b32.xlu0 %v865, 8
      %v883 = vpop.permute.xlu0 %882
      %884 = vrot.lane.b32.xlu0 %v874, 8
      %v885 = vpop.permute.xlu0 %884
      %886 = vrot.lane.b32.xlu0 %v866, 8
      %v887 = vpop.permute.xlu0 %886
      %888 = vrot.lane.b32.xlu0 %v875, 8
      %v889 = vpop.permute.xlu0 %888
      %890 = vrot.lane.b32.xlu0 %v867, 8
      %v891 = vpop.permute.xlu0 %890
      %vm892 = vcmask 64512
      %v893 = vsel %vm892, %v877, %v879
      %v894 = vsel %vm892, %v879, %v881
      %v895 = vsel %vm892, %v881, %v883
      %v896 = vsel %vm892, %v883, %v885
      %v897 = vsel %vm892, %v885, %v887
      %v898 = vsel %vm892, %v887, %v889
      %v899 = vsel %vm892, %v889, %v891
      %907 = vst [vmem:[#allocation2 + $0x188] sm:$0xf0] %v893
      %908 = vst [vmem:[#allocation2 + $0x190] sm:$0xf0] %v894
      %909 = vst [vmem:[#allocation2 + $0x198] sm:$0xf0] %v895
      %910 = vst [vmem:[#allocation2 + $0x1a0] sm:$0xf0] %v896
      %911 = vst [vmem:[#allocation2 + $0x1a8] sm:$0xf0] %v897
      %912 = vst [vmem:[#allocation2 + $0x1b0] sm:$0xf0] %v898
      %913 = vst [vmem:[#allocation2 + $0x1b8] sm:$0xf0] %v899
      %v914 = vld [vmem:[%s138] sm:$0xff]
      %v915 = vld [vmem:[%s138 + $0x8] sm:$0xff]
      %v916 = vld [vmem:[%s138 + $0x10] sm:$0xff]
      %v917 = vld [vmem:[%s138 + $0x18] sm:$0xff]
      %v922 = vcombine.high %v914, %v914
      %v923 = vcombine.high %v915, %v915
      %v924 = vcombine.high %v916, %v916
      %v925 = vcombine.high %v917, %v917
      %926 = vrot.lane.b32.xlu0 %v914, 7
      %v927 = vpop.permute.xlu0 %926
      %928 = vrot.lane.b32.xlu0 %v922, 7
      %v929 = vpop.permute.xlu0 %928
      %930 = vrot.lane.b32.xlu0 %v915, 7
      %v931 = vpop.permute.xlu0 %930
      %932 = vrot.lane.b32.xlu0 %v923, 7
      %v933 = vpop.permute.xlu0 %932
      %934 = vrot.lane.b32.xlu0 %v916, 7
      %v935 = vpop.permute.xlu0 %934
      %936 = vrot.lane.b32.xlu0 %v924, 7
      %v937 = vpop.permute.xlu0 %936
      %938 = vrot.lane.b32.xlu0 %v917, 7
      %v939 = vpop.permute.xlu0 %938
      %940 = vrot.lane.b32.xlu0 %v925, 7
      %v941 = vpop.permute.xlu0 %940
      %vm942 = vcmask 56320
      %v943 = vsel %vm942, %v927, %v929
      %v944 = vsel %vm942, %v929, %v931
      %v945 = vsel %vm942, %v931, %v933
      %v946 = vsel %vm942, %v933, %v935
      %v947 = vsel %vm942, %v935, %v937
      %v948 = vsel %vm942, %v937, %v939
      %v949 = vsel %vm942, %v939, %v941
      %957 = vst [vmem:[#allocation2 + $0x1c0] sm:$0xf] %v943
      %958 = vst [vmem:[#allocation2 + $0x1c8] sm:$0xf] %v944
      %959 = vst [vmem:[#allocation2 + $0x1d0] sm:$0xf] %v945
      %960 = vst [vmem:[#allocation2 + $0x1d8] sm:$0xf] %v946
      %961 = vst [vmem:[#allocation2 + $0x1e0] sm:$0xf] %v947
      %962 = vst [vmem:[#allocation2 + $0x1e8] sm:$0xf] %v948
      %963 = vst [vmem:[#allocation2 + $0x1f0] sm:$0xf] %v949
      %v964 = vld [vmem:[%s138] sm:$0xff]
      %v965 = vld [vmem:[%s138 + $0x8] sm:$0xff]
      %v966 = vld [vmem:[%s138 + $0x10] sm:$0xff]
      %v967 = vld [vmem:[%s138 + $0x18] sm:$0xff]
      %v972 = vcombine.low %v964, %v964
      %v973 = vcombine.low %v965, %v965
      %v974 = vcombine.low %v966, %v966
      %v975 = vcombine.low %v967, %v967
      %976 = vrot.lane.b32.xlu0 %v972, 6
      %v977 = vpop.permute.xlu0 %976
      %978 = vrot.lane.b32.xlu0 %v964, 6
      %v979 = vpop.permute.xlu0 %978
      %980 = vrot.lane.b32.xlu0 %v973, 6
      %v981 = vpop.permute.xlu0 %980
      %982 = vrot.lane.b32.xlu0 %v965, 6
      %v983 = vpop.permute.xlu0 %982
      %984 = vrot.lane.b32.xlu0 %v974, 6
      %v985 = vpop.permute.xlu0 %984
      %986 = vrot.lane.b32.xlu0 %v966, 6
      %v987 = vpop.permute.xlu0 %986
      %988 = vrot.lane.b32.xlu0 %v975, 6
      %v989 = vpop.permute.xlu0 %988
      %990 = vrot.lane.b32.xlu0 %v967, 6
      %v991 = vpop.permute.xlu0 %990
      %vm992 = vcmask 48128
      %v993 = vsel %vm992, %v977, %v979
      %v994 = vsel %vm992, %v979, %v981
      %v995 = vsel %vm992, %v981, %v983
      %v996 = vsel %vm992, %v983, %v985
      %v997 = vsel %vm992, %v985, %v987
      %v998 = vsel %vm992, %v987, %v989
      %v999 = vsel %vm992, %v989, %v991
      %1007 = vst [vmem:[#allocation2 + $0x1c0] sm:$0xf0] %v993
      %1008 = vst [vmem:[#allocation2 + $0x1c8] sm:$0xf0] %v994
      %1009 = vst [vmem:[#allocation2 + $0x1d0] sm:$0xf0] %v995
      %1010 = vst [vmem:[#allocation2 + $0x1d8] sm:$0xf0] %v996
      %1011 = vst [vmem:[#allocation2 + $0x1e0] sm:$0xf0] %v997
      %1012 = vst [vmem:[#allocation2 + $0x1e8] sm:$0xf0] %v998
      %1013 = vst [vmem:[#allocation2 + $0x1f0] sm:$0xf0] %v999
      %v1014 = vld [vmem:[%s138 + $0x4] sm:$0xff]
      %v1015 = vld [vmem:[%s138 + $0xc] sm:$0xff]
      %v1016 = vld [vmem:[%s138 + $0x14] sm:$0xff]
      %v1017 = vld [vmem:[%s138 + $0x1c] sm:$0xff]
      %v1022 = vcombine.high %v1014, %v1014
      %v1023 = vcombine.high %v1015, %v1015
      %v1024 = vcombine.high %v1016, %v1016
      %v1025 = vcombine.high %v1017, %v1017
      %1026 = vrot.lane.b32.xlu0 %v1014, 56
      %v1027 = vpop.permute.xlu0 %1026
      %1028 = vrot.lane.b32.xlu0 %v1022, 56
      %v1029 = vpop.permute.xlu0 %1028
      %1030 = vrot.lane.b32.xlu0 %v1015, 56
      %v1031 = vpop.permute.xlu0 %1030
      %1032 = vrot.lane.b32.xlu0 %v1023, 56
      %v1033 = vpop.permute.xlu0 %1032
      %1034 = vrot.lane.b32.xlu0 %v1016, 56
      %v1035 = vpop.permute.xlu0 %1034
      %1036 = vrot.lane.b32.xlu0 %v1024, 56
      %v1037 = vpop.permute.xlu0 %1036
      %1038 = vrot.lane.b32.xlu0 %v1017, 56
      %v1039 = vpop.permute.xlu0 %1038
      %1040 = vrot.lane.b32.xlu0 %v1025, 56
      %v1041 = vpop.permute.xlu0 %1040
      %vm1042 = vcmask 457728
      %v1043 = vsel %vm1042, %v1027, %v1029
      %v1044 = vsel %vm1042, %v1029, %v1031
      %v1045 = vsel %vm1042, %v1031, %v1033
      %v1046 = vsel %vm1042, %v1033, %v1035
      %v1047 = vsel %vm1042, %v1035, %v1037
      %v1048 = vsel %vm1042, %v1037, %v1039
      %v1049 = vsel %vm1042, %v1039, %v1041
      %1057 = vst [vmem:[#allocation2 + $0x1f8] sm:$0xf] %v1043
      %1058 = vst [vmem:[#allocation2 + $0x200] sm:$0xf] %v1044
      %1059 = vst [vmem:[#allocation2 + $0x208] sm:$0xf] %v1045
      %1060 = vst [vmem:[#allocation2 + $0x210] sm:$0xf] %v1046
      %1061 = vst [vmem:[#allocation2 + $0x218] sm:$0xf] %v1047
      %1062 = vst [vmem:[#allocation2 + $0x220] sm:$0xf] %v1048
      %1063 = vst [vmem:[#allocation2 + $0x228] sm:$0xf] %v1049
      %v1064 = vld [vmem:[%s138 + $0x4] sm:$0xff]
      %v1065 = vld [vmem:[%s138 + $0xc] sm:$0xff]
      %v1066 = vld [vmem:[%s138 + $0x14] sm:$0xff]
      %v1067 = vld [vmem:[%s138 + $0x1c] sm:$0xff]
      %v1072 = vcombine.low %v1064, %v1064
      %v1073 = vcombine.low %v1065, %v1065
      %v1074 = vcombine.low %v1066, %v1066
      %v1075 = vcombine.low %v1067, %v1067
      %1076 = vrot.lane.b32.xlu0 %v1072, 55
      %v1077 = vpop.permute.xlu0 %1076
      %1078 = vrot.lane.b32.xlu0 %v1064, 55
      %v1079 = vpop.permute.xlu0 %1078
      %1080 = vrot.lane.b32.xlu0 %v1073, 55
      %v1081 = vpop.permute.xlu0 %1080
      %1082 = vrot.lane.b32.xlu0 %v1065, 55
      %v1083 = vpop.permute.xlu0 %1082
      %1084 = vrot.lane.b32.xlu0 %v1074, 55
      %v1085 = vpop.permute.xlu0 %1084
      %1086 = vrot.lane.b32.xlu0 %v1066, 55
      %v1087 = vpop.permute.xlu0 %1086
      %1088 = vrot.lane.b32.xlu0 %v1075, 55
      %v1089 = vpop.permute.xlu0 %1088
      %1090 = vrot.lane.b32.xlu0 %v1067, 55
      %v1091 = vpop.permute.xlu0 %1090
      %vm1092 = vcmask 449536
      %v1093 = vsel %vm1092, %v1077, %v1079
      %v1094 = vsel %vm1092, %v1079, %v1081
      %v1095 = vsel %vm1092, %v1081, %v1083
      %v1096 = vsel %vm1092, %v1083, %v1085
      %v1097 = vsel %vm1092, %v1085, %v1087
      %v1098 = vsel %vm1092, %v1087, %v1089
      %v1099 = vsel %vm1092, %v1089, %v1091
      %1107 = vst [vmem:[#allocation2 + $0x1f8] sm:$0xf0] %v1093
      %1108 = vst [vmem:[#allocation2 + $0x200] sm:$0xf0] %v1094
      %1109 = vst [vmem:[#allocation2 + $0x208] sm:$0xf0] %v1095
      %1110 = vst [vmem:[#allocation2 + $0x210] sm:$0xf0] %v1096
      %1111 = vst [vmem:[#allocation2 + $0x218] sm:$0xf0] %v1097
      %1112 = vst [vmem:[#allocation2 + $0x220] sm:$0xf0] %v1098
      %1113 = vst [vmem:[#allocation2 + $0x228] sm:$0xf0] %v1099
      %v1114 = vld [vmem:[%s138 + $0x4] sm:$0xff]
      %v1115 = vld [vmem:[%s138 + $0xc] sm:$0xff]
      %v1116 = vld [vmem:[%s138 + $0x14] sm:$0xff]
      %v1117 = vld [vmem:[%s138 + $0x1c] sm:$0xff]
      %v1122 = vcombine.high %v1114, %v1114
      %v1123 = vcombine.high %v1115, %v1115
      %v1124 = vcombine.high %v1116, %v1116
      %v1125 = vcombine.high %v1117, %v1117
      %1126 = vrot.lane.b32.xlu0 %v1114, 54
      %v1127 = vpop.permute.xlu0 %1126
      %1128 = vrot.lane.b32.xlu0 %v1122, 54
      %v1129 = vpop.permute.xlu0 %1128
      %1130 = vrot.lane.b32.xlu0 %v1115, 54
      %v1131 = vpop.permute.xlu0 %1130
      %1132 = vrot.lane.b32.xlu0 %v1123, 54
      %v1133 = vpop.permute.xlu0 %1132
      %1134 = vrot.lane.b32.xlu0 %v1116, 54
      %v1135 = vpop.permute.xlu0 %1134
      %1136 = vrot.lane.b32.xlu0 %v1124, 54
      %v1137 = vpop.permute.xlu0 %1136
      %1138 = vrot.lane.b32.xlu0 %v1117, 54
      %v1139 = vpop.permute.xlu0 %1138
      %1140 = vrot.lane.b32.xlu0 %v1125, 54
      %v1141 = vpop.permute.xlu0 %1140
      %vm1142 = vcmask 441344
      %v1143 = vsel %vm1142, %v1127, %v1129
      %v1144 = vsel %vm1142, %v1129, %v1131
      %v1145 = vsel %vm1142, %v1131, %v1133
      %v1146 = vsel %vm1142, %v1133, %v1135
      %v1147 = vsel %vm1142, %v1135, %v1137
      %v1148 = vsel %vm1142, %v1137, %v1139
      %v1149 = vsel %vm1142, %v1139, %v1141
      %1157 = vst [vmem:[#allocation2 + $0x230] sm:$0xf] %v1143
      %1158 = vst [vmem:[#allocation2 + $0x238] sm:$0xf] %v1144
      %1159 = vst [vmem:[#allocation2 + $0x240] sm:$0xf] %v1145
      %1160 = vst [vmem:[#allocation2 + $0x248] sm:$0xf] %v1146
      %1161 = vst [vmem:[#allocation2 + $0x250] sm:$0xf] %v1147
      %1162 = vst [vmem:[#allocation2 + $0x258] sm:$0xf] %v1148
      %1163 = vst [vmem:[#allocation2 + $0x260] sm:$0xf] %v1149
      %v1164 = vld [vmem:[%s138 + $0x4] sm:$0xff]
      %v1165 = vld [vmem:[%s138 + $0xc] sm:$0xff]
      %v1166 = vld [vmem:[%s138 + $0x14] sm:$0xff]
      %v1167 = vld [vmem:[%s138 + $0x1c] sm:$0xff]
      %v1172 = vcombine.low %v1164, %v1164
      %v1173 = vcombine.low %v1165, %v1165
      %v1174 = vcombine.low %v1166, %v1166
      %v1175 = vcombine.low %v1167, %v1167
      %1176 = vrot.lane.b32.xlu0 %v1172, 46
      %v1177 = vpop.permute.xlu0 %1176
      %1178 = vrot.lane.b32.xlu0 %v1164, 46
      %v1179 = vpop.permute.xlu0 %1178
      %1180 = vrot.lane.b32.xlu0 %v1173, 46
      %v1181 = vpop.permute.xlu0 %1180
      %1182 = vrot.lane.b32.xlu0 %v1165, 46
      %v1183 = vpop.permute.xlu0 %1182
      %1184 = vrot.lane.b32.xlu0 %v1174, 46
      %v1185 = vpop.permute.xlu0 %1184
      %1186 = vrot.lane.b32.xlu0 %v1166, 46
      %v1187 = vpop.permute.xlu0 %1186
      %1188 = vrot.lane.b32.xlu0 %v1175, 46
      %v1189 = vpop.permute.xlu0 %1188
      %1190 = vrot.lane.b32.xlu0 %v1167, 46
      %v1191 = vpop.permute.xlu0 %1190
      %vm1192 = vcmask 375808
      %v1193 = vsel %vm1192, %v1177, %v1179
      %v1194 = vsel %vm1192, %v1179, %v1181
      %v1195 = vsel %vm1192, %v1181, %v1183
      %v1196 = vsel %vm1192, %v1183, %v1185
      %v1197 = vsel %vm1192, %v1185, %v1187
      %v1198 = vsel %vm1192, %v1187, %v1189
      %v1199 = vsel %vm1192, %v1189, %v1191
      %1207 = vst [vmem:[#allocation2 + $0x230] sm:$0xf0] %v1193
      %1208 = vst [vmem:[#allocation2 + $0x238] sm:$0xf0] %v1194
      %1209 = vst [vmem:[#allocation2 + $0x240] sm:$0xf0] %v1195
      %1210 = vst [vmem:[#allocation2 + $0x248] sm:$0xf0] %v1196
      %1211 = vst [vmem:[#allocation2 + $0x250] sm:$0xf0] %v1197
      %1212 = vst [vmem:[#allocation2 + $0x258] sm:$0xf0] %v1198
      %1213 = vst [vmem:[#allocation2 + $0x260] sm:$0xf0] %v1199
      %v1214 = vld [vmem:[%s138 + $0x4] sm:$0xff]
      %v1215 = vld [vmem:[%s138 + $0xc] sm:$0xff]
      %v1216 = vld [vmem:[%s138 + $0x14] sm:$0xff]
      %v1217 = vld [vmem:[%s138 + $0x1c] sm:$0xff]
      %v1222 = vcombine.high %v1214, %v1214
      %v1223 = vcombine.high %v1215, %v1215
      %v1224 = vcombine.high %v1216, %v1216
      %v1225 = vcombine.high %v1217, %v1217
      %1226 = vrot.lane.b32.xlu0 %v1214, 45
      %v1227 = vpop.permute.xlu0 %1226
      %1228 = vrot.lane.b32.xlu0 %v1222, 45
      %v1229 = vpop.permute.xlu0 %1228
      %1230 = vrot.lane.b32.xlu0 %v1215, 45
      %v1231 = vpop.permute.xlu0 %1230
      %1232 = vrot.lane.b32.xlu0 %v1223, 45
      %v1233 = vpop.permute.xlu0 %1232
      %1234 = vrot.lane.b32.xlu0 %v1216, 45
      %v1235 = vpop.permute.xlu0 %1234
      %1236 = vrot.lane.b32.xlu0 %v1224, 45
      %v1237 = vpop.permute.xlu0 %1236
      %1238 = vrot.lane.b32.xlu0 %v1217, 45
      %v1239 = vpop.permute.xlu0 %1238
      %1240 = vrot.lane.b32.xlu0 %v1225, 45
      %v1241 = vpop.permute.xlu0 %1240
      %vm1242 = vcmask 367616
      %v1243 = vsel %vm1242, %v1227, %v1229
      %v1244 = vsel %vm1242, %v1229, %v1231
      %v1245 = vsel %vm1242, %v1231, %v1233
      %v1246 = vsel %vm1242, %v1233, %v1235
      %v1247 = vsel %vm1242, %v1235, %v1237
      %v1248 = vsel %vm1242, %v1237, %v1239
      %v1249 = vsel %vm1242, %v1239, %v1241
      %1257 = vst [vmem:[#allocation2 + $0x268] sm:$0xf] %v1243
      %1258 = vst [vmem:[#allocation2 + $0x270] sm:$0xf] %v1244
      %1259 = vst [vmem:[#allocation2 + $0x278] sm:$0xf] %v1245
      %1260 = vst [vmem:[#allocation2 + $0x280] sm:$0xf] %v1246
      %1261 = vst [vmem:[#allocation2 + $0x288] sm:$0xf] %v1247
      %1262 = vst [vmem:[#allocation2 + $0x290] sm:$0xf] %v1248
      %1263 = vst [vmem:[#allocation2 + $0x298] sm:$0xf] %v1249
      %v1264 = vld [vmem:[%s138 + $0x4] sm:$0xff]
      %v1265 = vld [vmem:[%s138 + $0xc] sm:$0xff]
      %v1266 = vld [vmem:[%s138 + $0x14] sm:$0xff]
      %v1267 = vld [vmem:[%s138 + $0x1c] sm:$0xff]
      %v1272 = vcombine.low %v1264, %v1264
      %v1273 = vcombine.low %v1265, %v1265
      %v1274 = vcombine.low %v1266, %v1266
      %v1275 = vcombine.low %v1267, %v1267
      %1276 = vrot.lane.b32.xlu0 %v1272, 44
      %v1277 = vpop.permute.xlu0 %1276
      %1278 = vrot.lane.b32.xlu0 %v1264, 44
      %v1279 = vpop.permute.xlu0 %1278
      %1280 = vrot.lane.b32.xlu0 %v1273, 44
      %v1281 = vpop.permute.xlu0 %1280
      %1282 = vrot.lane.b32.xlu0 %v1265, 44
      %v1283 = vpop.permute.xlu0 %1282
      %1284 = vrot.lane.b32.xlu0 %v1274, 44
      %v1285 = vpop.permute.xlu0 %1284
      %1286 = vrot.lane.b32.xlu0 %v1266, 44
      %v1287 = vpop.permute.xlu0 %1286
      %1288 = vrot.lane.b32.xlu0 %v1275, 44
      %v1289 = vpop.permute.xlu0 %1288
      %1290 = vrot.lane.b32.xlu0 %v1267, 44
      %v1291 = vpop.permute.xlu0 %1290
      %vm1292 = vcmask 359424
      %v1293 = vsel %vm1292, %v1277, %v1279
      %v1294 = vsel %vm1292, %v1279, %v1281
      %v1295 = vsel %vm1292, %v1281, %v1283
      %v1296 = vsel %vm1292, %v1283, %v1285
      %v1297 = vsel %vm1292, %v1285, %v1287
      %v1298 = vsel %vm1292, %v1287, %v1289
      %v1299 = vsel %vm1292, %v1289, %v1291
      %1307 = vst [vmem:[#allocation2 + $0x268] sm:$0xf0] %v1293
      %1308 = vst [vmem:[#allocation2 + $0x270] sm:$0xf0] %v1294
      %1309 = vst [vmem:[#allocation2 + $0x278] sm:$0xf0] %v1295
      %1310 = vst [vmem:[#allocation2 + $0x280] sm:$0xf0] %v1296
      %1311 = vst [vmem:[#allocation2 + $0x288] sm:$0xf0] %v1297
      %1312 = vst [vmem:[#allocation2 + $0x290] sm:$0xf0] %v1298
      %1313 = vst [vmem:[#allocation2 + $0x298] sm:$0xf0] %v1299
      %v1314 = vld [vmem:[%s138 + $0x4] sm:$0xff]
      %v1315 = vld [vmem:[%s138 + $0xc] sm:$0xff]
      %v1316 = vld [vmem:[%s138 + $0x14] sm:$0xff]
      %v1317 = vld [vmem:[%s138 + $0x1c] sm:$0xff]
      %v1322 = vcombine.high %v1314, %v1314
      %v1323 = vcombine.high %v1315, %v1315
      %v1324 = vcombine.high %v1316, %v1316
      %v1325 = vcombine.high %v1317, %v1317
      %1326 = vrot.lane.b32.xlu0 %v1314, 36
      %v1327 = vpop.permute.xlu0 %1326
      %1328 = vrot.lane.b32.xlu0 %v1322, 36
      %v1329 = vpop.permute.xlu0 %1328
      %1330 = vrot.lane.b32.xlu0 %v1315, 36
      %v1331 = vpop.permute.xlu0 %1330
      %1332 = vrot.lane.b32.xlu0 %v1323, 36
      %v1333 = vpop.permute.xlu0 %1332
      %1334 = vrot.lane.b32.xlu0 %v1316, 36
      %v1335 = vpop.permute.xlu0 %1334
      %1336 = vrot.lane.b32.xlu0 %v1324, 36
      %v1337 = vpop.permute.xlu0 %1336
      %1338 = vrot.lane.b32.xlu0 %v1317, 36
      %v1339 = vpop.permute.xlu0 %1338
      %1340 = vrot.lane.b32.xlu0 %v1325, 36
      %v1341 = vpop.permute.xlu0 %1340
      %vm1342 = vcmask 293888
      %v1343 = vsel %vm1342, %v1327, %v1329
      %v1344 = vsel %vm1342, %v1329, %v1331
      %v1345 = vsel %vm1342, %v1331, %v1333
      %v1346 = vsel %vm1342, %v1333, %v1335
      %v1347 = vsel %vm1342, %v1335, %v1337
      %v1348 = vsel %vm1342, %v1337, %v1339
      %v1349 = vsel %vm1342, %v1339, %v1341
      %1357 = vst [vmem:[#allocation2 + $0x2a0] sm:$0xf] %v1343
      %1358 = vst [vmem:[#allocation2 + $0x2a8] sm:$0xf] %v1344
      %1359 = vst [vmem:[#allocation2 + $0x2b0] sm:$0xf] %v1345
      %1360 = vst [vmem:[#allocation2 + $0x2b8] sm:$0xf] %v1346
      %1361 = vst [vmem:[#allocation2 + $0x2c0] sm:$0xf] %v1347
      %1362 = vst [vmem:[#allocation2 + $0x2c8] sm:$0xf] %v1348
      %1363 = vst [vmem:[#allocation2 + $0x2d0] sm:$0xf] %v1349
      %v1364 = vld [vmem:[%s138 + $0x4] sm:$0xff]
      %v1365 = vld [vmem:[%s138 + $0xc] sm:$0xff]
      %v1366 = vld [vmem:[%s138 + $0x14] sm:$0xff]
      %v1367 = vld [vmem:[%s138 + $0x1c] sm:$0xff]
      %v1372 = vcombine.low %v1364, %v1364
      %v1373 = vcombine.low %v1365, %v1365
      %v1374 = vcombine.low %v1366, %v1366
      %v1375 = vcombine.low %v1367, %v1367
      %1376 = vrot.lane.b32.xlu0 %v1372, 35
      %v1377 = vpop.permute.xlu0 %1376
      %1378 = vrot.lane.b32.xlu0 %v1364, 35
      %v1379 = vpop.permute.xlu0 %1378
      %1380 = vrot.lane.b32.xlu0 %v1373, 35
      %v1381 = vpop.permute.xlu0 %1380
      %1382 = vrot.lane.b32.xlu0 %v1365, 35
      %v1383 = vpop.permute.xlu0 %1382
      %1384 = vrot.lane.b32.xlu0 %v1374, 35
      %v1385 = vpop.permute.xlu0 %1384
      %1386 = vrot.lane.b32.xlu0 %v1366, 35
      %v1387 = vpop.permute.xlu0 %1386
      %1388 = vrot.lane.b32.xlu0 %v1375, 35
      %v1389 = vpop.permute.xlu0 %1388
      %1390 = vrot.lane.b32.xlu0 %v1367, 35
      %v1391 = vpop.permute.xlu0 %1390
      %vm1392 = vcmask 285696
      %v1393 = vsel %vm1392, %v1377, %v1379
      %v1394 = vsel %vm1392, %v1379, %v1381
      %v1395 = vsel %vm1392, %v1381, %v1383
      %v1396 = vsel %vm1392, %v1383, %v1385
      %v1397 = vsel %vm1392, %v1385, %v1387
      %v1398 = vsel %vm1392, %v1387, %v1389
      %v1399 = vsel %vm1392, %v1389, %v1391
      %1407 = vst [vmem:[#allocation2 + $0x2a0] sm:$0xf0] %v1393
      %1408 = vst [vmem:[#allocation2 + $0x2a8] sm:$0xf0] %v1394
      %1409 = vst [vmem:[#allocation2 + $0x2b0] sm:$0xf0] %v1395
      %1410 = vst [vmem:[#allocation2 + $0x2b8] sm:$0xf0] %v1396
      %1411 = vst [vmem:[#allocation2 + $0x2c0] sm:$0xf0] %v1397
      %1412 = vst [vmem:[#allocation2 + $0x2c8] sm:$0xf0] %v1398
      %1413 = vst [vmem:[#allocation2 + $0x2d0] sm:$0xf0] %v1399
      %v1414 = vld [vmem:[%s138 + $0x4] sm:$0xff]
      %v1415 = vld [vmem:[%s138 + $0xc] sm:$0xff]
      %v1416 = vld [vmem:[%s138 + $0x14] sm:$0xff]
      %v1417 = vld [vmem:[%s138 + $0x1c] sm:$0xff]
      %v1422 = vcombine.high %v1414, %v1414
      %v1423 = vcombine.high %v1415, %v1415
      %v1424 = vcombine.high %v1416, %v1416
      %v1425 = vcombine.high %v1417, %v1417
      %1426 = vrot.lane.b32.xlu0 %v1414, 34
      %v1427 = vpop.permute.xlu0 %1426
      %1428 = vrot.lane.b32.xlu0 %v1422, 34
      %v1429 = vpop.permute.xlu0 %1428
      %1430 = vrot.lane.b32.xlu0 %v1415, 34
      %v1431 = vpop.permute.xlu0 %1430
      %1432 = vrot.lane.b32.xlu0 %v1423, 34
      %v1433 = vpop.permute.xlu0 %1432
      %1434 = vrot.lane.b32.xlu0 %v1416, 34
      %v1435 = vpop.permute.xlu0 %1434
      %1436 = vrot.lane.b32.xlu0 %v1424, 34
      %v1437 = vpop.permute.xlu0 %1436
      %1438 = vrot.lane.b32.xlu0 %v1417, 34
      %v1439 = vpop.permute.xlu0 %1438
      %1440 = vrot.lane.b32.xlu0 %v1425, 34
      %v1441 = vpop.permute.xlu0 %1440
      %vm1442 = vcmask 277504
      %v1443 = vsel %vm1442, %v1427, %v1429
      %v1444 = vsel %vm1442, %v1429, %v1431
      %v1445 = vsel %vm1442, %v1431, %v1433
      %v1446 = vsel %vm1442, %v1433, %v1435
      %v1447 = vsel %vm1442, %v1435, %v1437
      %v1448 = vsel %vm1442, %v1437, %v1439
      %v1449 = vsel %vm1442, %v1439, %v1441
      %1457 = vst [vmem:[#allocation2 + $0x2d8] sm:$0xf] %v1443
      %1458 = vst [vmem:[#allocation2 + $0x2e0] sm:$0xf] %v1444
      %1459 = vst [vmem:[#allocation2 + $0x2e8] sm:$0xf] %v1445
      %1460 = vst [vmem:[#allocation2 + $0x2f0] sm:$0xf] %v1446
      %1461 = vst [vmem:[#allocation2 + $0x2f8] sm:$0xf] %v1447
      %1462 = vst [vmem:[#allocation2 + $0x300] sm:$0xf] %v1448
      %1463 = vst [vmem:[#allocation2 + $0x308] sm:$0xf] %v1449
      %v1464 = vlaneseq
      %vm1465 = vcmp.ge.s32.totalorder %v1464, 0
      %vm1466 = vcmp.lt.s32.totalorder %v1464, 896
      %vm1467 = vmand %vm1465, %vm1466
      %s1468 = scalar_lea.vmem [#allocation2], 732
      %1469 = vst.msk [vmem:[%s1468] ss:$8 sm:$0xf] %vm1467, 1.0
      %1470 = vst.msk [vmem:[%s1468] ss:$8 sm:$0x70] %vm1467, 1.0
      %1471 = vst [vmem:[#allocation2 + $0x2d8] sm:$0xe0] 0.0
      %1472 = vst [vmem:[#allocation2 + $0x2e0] sm:$0xe0] 0.0
      %1473 = vst [vmem:[#allocation2 + $0x2e8] sm:$0xe0] 0.0
      %1474 = vst [vmem:[#allocation2 + $0x2f0] sm:$0xe0] 0.0
      %1475 = vst [vmem:[#allocation2 + $0x2f8] sm:$0xe0] 0.0
      %1476 = vst [vmem:[#allocation2 + $0x300] sm:$0xe0] 0.0
      %1477 = vst [vmem:[#allocation2 + $0x308] sm:$0xe0] 0.0
      %v1478 = vld [vmem:[%s1] sm:$0xff]
      %v1479 = vld [vmem:[%s1 + $0x8] sm:$0xff]
      %v1480 = vld [vmem:[#allocation2] sm:$0xff]
      %v1481 = vld [vmem:[#allocation2 + $0x8] sm:$0xff]
      %v1482 = vld [vmem:[#allocation2 + $0x10] sm:$0xff]
      %v1483 = vld [vmem:[#allocation2 + $0x18] sm:$0xff]
      %v1484 = vld [vmem:[#allocation2 + $0x20] sm:$0xff]
      %v1485 = vld [vmem:[#allocation2 + $0x28] sm:$0xff]
      %v1486 = vld [vmem:[#allocation2 + $0x30] sm:$0xff]
      %v1487 = vld [vmem:[#allocation2 + $0x38] sm:$0xff]
      %v1488 = vld [vmem:[#allocation2 + $0x40] sm:$0xff]
      %v1489 = vld [vmem:[#allocation2 + $0x48] sm:$0xff]
      %v1490 = vld [vmem:[#allocation2 + $0x50] sm:$0xff]
      %v1491 = vld [vmem:[#allocation2 + $0x58] sm:$0xff]
      %v1492 = vld [vmem:[#allocation2 + $0x60] sm:$0xff]
      %v1493 = vld [vmem:[#allocation2 + $0x68] sm:$0xff]
      %v1494 = vld [vmem:[#allocation2 + $0x70] sm:$0xff]
      %v1495 = vld [vmem:[#allocation2 + $0x78] sm:$0xff]
      %v1496 = vld [vmem:[#allocation2 + $0x80] sm:$0xff]
      %v1497 = vld [vmem:[#allocation2 + $0x88] sm:$0xff]
      %v1498 = vld [vmem:[#allocation2 + $0x90] sm:$0xff]
      %v1499 = vld [vmem:[#allocation2 + $0x98] sm:$0xff]
      %v1500 = vld [vmem:[#allocation2 + $0xa0] sm:$0xff]
      %v1501 = vld [vmem:[#allocation2 + $0xa8] sm:$0xff]
      %v1502 = vld [vmem:[#allocation2 + $0xb0] sm:$0xff]
      %v1503 = vld [vmem:[#allocation2 + $0xb8] sm:$0xff]
      %v1504 = vld [vmem:[#allocation2 + $0xc0] sm:$0xff]
      %v1505 = vld [vmem:[#allocation2 + $0xc8] sm:$0xff]
      %v1506 = vld [vmem:[#allocation2 + $0xd0] sm:$0xff]
      %v1507 = vld [vmem:[#allocation2 + $0xd8] sm:$0xff]
      %v1508 = vld [vmem:[#allocation2 + $0xe0] sm:$0xff]
      %v1509 = vld [vmem:[#allocation2 + $0xe8] sm:$0xff]
      %v1510 = vld [vmem:[#allocation2 + $0xf0] sm:$0xff]
      %v1511 = vld [vmem:[#allocation2 + $0xf8] sm:$0xff]
      %v1512 = vld [vmem:[#allocation2 + $0x100] sm:$0xff]
      %v1513 = vld [vmem:[#allocation2 + $0x108] sm:$0xff]
      %v1514 = vld [vmem:[#allocation2 + $0x110] sm:$0xff]
      %v1515 = vld [vmem:[#allocation2 + $0x118] sm:$0xff]
      %v1516 = vld [vmem:[#allocation2 + $0x120] sm:$0xff]
      %v1517 = vld [vmem:[#allocation2 + $0x128] sm:$0xff]
      %v1518 = vld [vmem:[#allocation2 + $0x130] sm:$0xff]
      %v1519 = vld [vmem:[#allocation2 + $0x138] sm:$0xff]
      %v1520 = vld [vmem:[#allocation2 + $0x140] sm:$0xff]
      %v1521 = vld [vmem:[#allocation2 + $0x148] sm:$0xff]
      %v1522 = vld [vmem:[#allocation2 + $0x150] sm:$0xff]
      %v1523 = vld [vmem:[#allocation2 + $0x158] sm:$0xff]
      %v1524 = vld [vmem:[#allocation2 + $0x160] sm:$0xff]
      %v1525 = vld [vmem:[#allocation2 + $0x168] sm:$0xff]
      %v1526 = vld [vmem:[#allocation2 + $0x170] sm:$0xff]
      %v1527 = vld [vmem:[#allocation2 + $0x178] sm:$0xff]
      %v1528 = vld [vmem:[#allocation2 + $0x180] sm:$0xff]
      %v1529 = vld [vmem:[#allocation2 + $0x188] sm:$0xff]
      %v1530 = vld [vmem:[#allocation2 + $0x190] sm:$0xff]
      %v1531 = vld [vmem:[#allocation2 + $0x198] sm:$0xff]
      %v1532 = vld [vmem:[#allocation2 + $0x1a0] sm:$0xff]
      %v1533 = vld [vmem:[#allocation2 + $0x1a8] sm:$0xff]
      %v1534 = vld [vmem:[#allocation2 + $0x1b0] sm:$0xff]
      %v1535 = vld [vmem:[#allocation2 + $0x1b8] sm:$0xff]
      %v1536 = vld [vmem:[#allocation2 + $0x1c0] sm:$0xff]
      %v1537 = vld [vmem:[#allocation2 + $0x1c8] sm:$0xff]
      %v1538 = vld [vmem:[#allocation2 + $0x1d0] sm:$0xff]
      %v1539 = vld [vmem:[#allocation2 + $0x1d8] sm:$0xff]
      %v1540 = vld [vmem:[#allocation2 + $0x1e0] sm:$0xff]
      %v1541 = vld [vmem:[#allocation2 + $0x1e8] sm:$0xff]
      %v1542 = vld [vmem:[#allocation2 + $0x1f0] sm:$0xff]
      %v1543 = vld [vmem:[#allocation2 + $0x1f8] sm:$0xff]
      %v1544 = vld [vmem:[#allocation2 + $0x200] sm:$0xff]
      %v1545 = vld [vmem:[#allocation2 + $0x208] sm:$0xff]
      %v1546 = vld [vmem:[#allocation2 + $0x210] sm:$0xff]
      %v1547 = vld [vmem:[#allocation2 + $0x218] sm:$0xff]
      %v1548 = vld [vmem:[#allocation2 + $0x220] sm:$0xff]
      %v1549 = vld [vmem:[#allocation2 + $0x228] sm:$0xff]
      %v1550 = vld [vmem:[#allocation2 + $0x230] sm:$0xff]
      %v1551 = vld [vmem:[#allocation2 + $0x238] sm:$0xff]
      %v1552 = vld [vmem:[#allocation2 + $0x240] sm:$0xff]
      %v1553 = vld [vmem:[#allocation2 + $0x248] sm:$0xff]
      %v1554 = vld [vmem:[#allocation2 + $0x250] sm:$0xff]
      %v1555 = vld [vmem:[#allocation2 + $0x258] sm:$0xff]
      %v1556 = vld [vmem:[#allocation2 + $0x260] sm:$0xff]
      %v1557 = vld [vmem:[#allocation2 + $0x268] sm:$0xff]
      %v1558 = vld [vmem:[#allocation2 + $0x270] sm:$0xff]
      %v1559 = vld [vmem:[#allocation2 + $0x278] sm:$0xff]
      %v1560 = vld [vmem:[#allocation2 + $0x280] sm:$0xff]
      %v1561 = vld [vmem:[#allocation2 + $0x288] sm:$0xff]
      %v1562 = vld [vmem:[#allocation2 + $0x290] sm:$0xff]
      %v1563 = vld [vmem:[#allocation2 + $0x298] sm:$0xff]
      %v1564 = vld [vmem:[#allocation2 + $0x2a0] sm:$0xff]
      %v1565 = vld [vmem:[#allocation2 + $0x2a8] sm:$0xff]
      %v1566 = vld [vmem:[#allocation2 + $0x2b0] sm:$0xff]
      %v1567 = vld [vmem:[#allocation2 + $0x2b8] sm:$0xff]
      %v1568 = vld [vmem:[#allocation2 + $0x2c0] sm:$0xff]
      %v1569 = vld [vmem:[#allocation2 + $0x2c8] sm:$0xff]
      %v1570 = vld [vmem:[#allocation2 + $0x2d0] sm:$0xff]
      %v1571 = vld [vmem:[#allocation2 + $0x2d8] sm:$0xff]
      %v1572 = vld [vmem:[#allocation2 + $0x2e0] sm:$0xff]
      %v1573 = vld [vmem:[#allocation2 + $0x2e8] sm:$0xff]
      %v1574 = vld [vmem:[#allocation2 + $0x2f0] sm:$0xff]
      %v1575 = vld [vmem:[#allocation2 + $0x2f8] sm:$0xff]
      %v1576 = vld [vmem:[#allocation2 + $0x300] sm:$0xff]
      %v1577 = vld [vmem:[#allocation2 + $0x308] sm:$0xff]
      %vm1578 = vcmask 916480
      %v1580 = vsel %vm1578, %v1478, 0
      %v1583 = vsel %vm1578, %v1479, 0
      %v1585 = vand.u32 %v1481, 4294901760
      %1586 = vmatprep.subr.mxu0 %v1585
      %v1587 = vand.u32 %v1480, 4294901760
      %1588 = vmatpush1.msra.mxu0 %v1587
      %v1589 = vand.u32 %v1488, 4294901760
      %1590 = vmatprep.subr.mxu0 %v1589
      %v1591 = vand.u32 %v1487, 4294901760
      %1592 = vmatpush1.msra.mxu0 %v1591
      %v1593 = vand.u32 %v1495, 4294901760
      %1594 = vmatprep.subr.mxu0 %v1593
      %v1595 = vand.u32 %v1494, 4294901760
      %1596 = vmatpush1.msra.mxu0 %v1595
      %v1597 = vand.u32 %v1502, 4294901760
      %1598 = vmatprep.subr.mxu0 %v1597
      %v1599 = vand.u32 %v1501, 4294901760
      %1600 = vmatpush1.msra.mxu0 %v1599
      %v1601 = vand.u32 %v1509, 4294901760
      %1602 = vmatprep.subr.mxu0 %v1601
      %v1603 = vand.u32 %v1508, 4294901760
      %1604 = vmatpush1.msra.mxu0 %v1603
      %v1605 = vand.u32 %v1516, 4294901760
      %1606 = vmatprep.subr.mxu0 %v1605
      %v1607 = vand.u32 %v1515, 4294901760
      %1608 = vmatpush1.msra.mxu0 %v1607
      %v1609 = vand.u32 %v1523, 4294901760
      %1610 = vmatprep.subr.mxu0 %v1609
      %v1611 = vand.u32 %v1522, 4294901760
      %1612 = vmatpush1.msra.mxu0 %v1611
      %v1613 = vand.u32 %v1530, 4294901760
      %1614 = vmatprep.subr.mxu0 %v1613
      %v1615 = vand.u32 %v1529, 4294901760
      %1616 = vmatpush1.msra.mxu0 %v1615
      %v1617 = vand.u32 %v1537, 4294901760
      %1618 = vmatprep.subr.mxu0 %v1617
      %v1619 = vand.u32 %v1536, 4294901760
      %1620 = vmatpush1.msra.mxu0 %v1619
      %v1621 = vand.u32 %v1544, 4294901760
      %1622 = vmatprep.subr.mxu0 %v1621
      %v1623 = vand.u32 %v1543, 4294901760
      %1624 = vmatpush1.msra.mxu0 %v1623
      %v1625 = vand.u32 %v1551, 4294901760
      %1626 = vmatprep.subr.mxu0 %v1625
      %v1627 = vand.u32 %v1550, 4294901760
      %1628 = vmatpush1.msra.mxu0 %v1627
      %v1629 = vand.u32 %v1558, 4294901760
      %1630 = vmatprep.subr.mxu0 %v1629
      %v1631 = vand.u32 %v1557, 4294901760
      %1632 = vmatpush1.msra.mxu0 %v1631
      %v1633 = vand.u32 %v1565, 4294901760
      %1634 = vmatprep.subr.mxu0 %v1633
      %v1635 = vand.u32 %v1564, 4294901760
      %1636 = vmatpush1.msra.mxu0 %v1635
      %v1637 = vand.u32 %v1572, 4294901760
      %1638 = vmatprep.subr.mxu0 %v1637
      %v1639 = vand.u32 %v1571, 4294901760
      %1640 = vmatpush1.msra.mxu0 %v1639
      %1641 = vmatprep.subr.mxu0 0.0
      %1642 = vmatpush1.msra.mxu0 0.0
      %1643 = vmatprep.subr.mxu0 0.0
      %1644 = vmatpush1.msra.mxu0 0.0
      %1645 = vmatprep.subr.mxu0 0.0
      %1646 = vmatpush1.msra.mxu0 0.0
      %1647 = vmatprep.subr.mxu0 0.0
      %1648 = vmatpush1.msra.mxu0 0.0
      %1649 = vmatprep.subr.mxu0 0.0
      %1650 = vmatpush1.msra.mxu0 0.0
      %1651 = vmatprep.subr.mxu0 0.0
      %1652 = vmatpush1.msra.mxu0 0.0
      %1653 = vmatprep.subr.mxu0 0.0
      %1654 = vmatpush1.msra.mxu0 0.0
      %1655 = vmatprep.subr.mxu0 0.0
      %1656 = vmatpush1.msra.mxu0 0.0
      %1657 = vmatprep.subr.mxu0 0.0
      %1658 = vmatpush1.msra.mxu0 0.0
      %1659 = vmatprep.subr.mxu0 0.0
      %1660 = vmatpush1.msra.mxu0 0.0
      %1661 = vmatprep.subr.mxu0 0.0
      %1662 = vmatpush1.msra.mxu0 0.0
      %1663 = vmatprep.subr.mxu0 0.0
      %1664 = vmatpush1.msra.mxu0 0.0
      %1665 = vmatprep.subr.mxu0 0.0
      %1666 = vmatpush1.msra.mxu0 0.0
      %1667 = vmatprep.subr.mxu0 0.0
      %1668 = vmatpush1.msra.mxu0 0.0
      %1669 = vmatprep.subr.mxu0 0.0
      %1670 = vmatpush1.msra.mxu0 0.0
      %1671 = vmatprep.subr.mxu0 0.0
      %1672 = vmatpush1.msra.mxu0 0.0
      %1673 = vmatprep.subr.mxu0 0.0
      %1674 = vmatpush1.msra.mxu0 0.0
      %1675 = vmatprep.subr.mxu0 0.0
      %1676 = vmatpush1.msra.mxu0 0.0
      %1677 = vmatprep.mubr.f32.mxu0 0.0
      %v1678 = vand.u32 %v1580, 4294901760
      %v1679 = vsub.f32 %v1580, %v1678
      %v1680 = vand.u32 %v1679, 4294901760
      %v1681 = vsub.f32 %v1679, %v1680
      %v1682 = vand.u32 %v1681, 4294901760
      %1683 = vmatmul.mubr.f32.gmra.mrb[0].mxu0 %v1682
      %v1684 = vpop.f32.mrb[0].mxu0
      %v1685 = vadd.f32 0.0, %v1684
      %v1686 = vpop.f32.mrb[0].mxu0
      %v1687 = vadd.f32 0.0, %v1686
      %1688 = vmatprep.mubr.f32.mxu0 0.0
      %v1689 = vand.u32 %v1583, 4294901760
      %v1690 = vsub.f32 %v1583, %v1689
      %v1691 = vand.u32 %v1690, 4294901760
      %v1692 = vsub.f32 %v1690, %v1691
      %v1693 = vand.u32 %v1692, 4294901760
      %1694 = vmatmul.mubr.f32.gmra.mrb[0].mxu0 %v1693
      %v1695 = vpop.f32.mrb[0].mxu0
      %v1696 = vadd.f32 0.0, %v1695
      %v1697 = vpop.f32.mrb[0].mxu0
      %v1698 = vadd.f32 0.0, %v1697
      %1699 = vdwg.mxu0
      %v1700 = vand.u32 %v1481, 4294901760
      %v1701 = vsub.f32 %v1481, %v1700
      %v1702 = vand.u32 %v1701, 4294901760
      %v1703 = vsub.f32 %v1701, %v1702
      %v1704 = vand.u32 %v1703, 4294901760
      %1705 = vmatprep.subr.mxu0 %v1704
      %v1706 = vand.u32 %v1480, 4294901760
      %v1707 = vsub.f32 %v1480, %v1706
      %v1708 = vand.u32 %v1707, 4294901760
      %v1709 = vsub.f32 %v1707, %v1708
      %v1710 = vand.u32 %v1709, 4294901760
      %1711 = vmatpush1.msra.mxu0 %v1710
      %v1712 = vand.u32 %v1488, 4294901760
      %v1713 = vsub.f32 %v1488, %v1712
      %v1714 = vand.u32 %v1713, 4294901760
      %v1715 = vsub.f32 %v1713, %v1714
      %v1716 = vand.u32 %v1715, 4294901760
      %1717 = vmatprep.subr.mxu0 %v1716
      %v1718 = vand.u32 %v1487, 4294901760
      %v1719 = vsub.f32 %v1487, %v1718
      %v1720 = vand.u32 %v1719, 4294901760
      %v1721 = vsub.f32 %v1719, %v1720
      %v1722 = vand.u32 %v1721, 4294901760
      %1723 = vmatpush1.msra.mxu0 %v1722
      %v1724 = vand.u32 %v1495, 4294901760
      %v1725 = vsub.f32 %v1495, %v1724
      %v1726 = vand.u32 %v1725, 4294901760
      %v1727 = vsub.f32 %v1725, %v1726
      %v1728 = vand.u32 %v1727, 4294901760
      %1729 = vmatprep.subr.mxu0 %v1728
      %v1730 = vand.u32 %v1494, 4294901760
      %v1731 = vsub.f32 %v1494, %v1730
      %v1732 = vand.u32 %v1731, 4294901760
      %v1733 = vsub.f32 %v1731, %v1732
      %v1734 = vand.u32 %v1733, 4294901760
      %1735 = vmatpush1.msra.mxu0 %v1734
      %v1736 = vand.u32 %v1502, 4294901760
      %v1737 = vsub.f32 %v1502, %v1736
      %v1738 = vand.u32 %v1737, 4294901760
      %v1739 = vsub.f32 %v1737, %v1738
      %v1740 = vand.u32 %v1739, 4294901760
      %1741 = vmatprep.subr.mxu0 %v1740
      %v1742 = vand.u32 %v1501, 4294901760
      %v1743 = vsub.f32 %v1501, %v1742
      %v1744 = vand.u32 %v1743, 4294901760
      %v1745 = vsub.f32 %v1743, %v1744
      %v1746 = vand.u32 %v1745, 4294901760
      %1747 = vmatpush1.msra.mxu0 %v1746
      %v1748 = vand.u32 %v1509, 4294901760
      %v1749 = vsub.f32 %v1509, %v1748
      %v1750 = vand.u32 %v1749, 4294901760
      %v1751 = vsub.f32 %v1749, %v1750
      %v1752 = vand.u32 %v1751, 4294901760
      %1753 = vmatprep.subr.mxu0 %v1752
      %v1754 = vand.u32 %v1508, 4294901760
      %v1755 = vsub.f32 %v1508, %v1754
      %v1756 = vand.u32 %v1755, 4294901760
      %v1757 = vsub.f32 %v1755, %v1756
      %v1758 = vand.u32 %v1757, 4294901760
      %1759 = vmatpush1.msra.mxu0 %v1758
      %v1760 = vand.u32 %v1516, 4294901760
      %v1761 = vsub.f32 %v1516, %v1760
      %v1762 = vand.u32 %v1761, 4294901760
      %v1763 = vsub.f32 %v1761, %v1762
      %v1764 = vand.u32 %v1763, 4294901760
      %1765 = vmatprep.subr.mxu0 %v1764
      %v1766 = vand.u32 %v1515, 4294901760
      %v1767 = vsub.f32 %v1515, %v1766
      %v1768 = vand.u32 %v1767, 4294901760
      %v1769 = vsub.f32 %v1767, %v1768
      %v1770 = vand.u32 %v1769, 4294901760
      %1771 = vmatpush1.msra.mxu0 %v1770
      %v1772 = vand.u32 %v1523, 4294901760
      %v1773 = vsub.f32 %v1523, %v1772
      %v1774 = vand.u32 %v1773, 4294901760
      %v1775 = vsub.f32 %v1773, %v1774
      %v1776 = vand.u32 %v1775, 4294901760
      %1777 = vmatprep.subr.mxu0 %v1776
      %v1778 = vand.u32 %v1522, 4294901760
      %v1779 = vsub.f32 %v1522, %v1778
      %v1780 = vand.u32 %v1779, 4294901760
      %v1781 = vsub.f32 %v1779, %v1780
      %v1782 = vand.u32 %v1781, 4294901760
      %1783 = vmatpush1.msra.mxu0 %v1782
      %v1784 = vand.u32 %v1530, 4294901760
      %v1785 = vsub.f32 %v1530, %v1784
      %v1786 = vand.u32 %v1785, 4294901760
      %v1787 = vsub.f32 %v1785, %v1786
      %v1788 = vand.u32 %v1787, 4294901760
      %1789 = vmatprep.subr.mxu0 %v1788
      %v1790 = vand.u32 %v1529, 4294901760
      %v1791 = vsub.f32 %v1529, %v1790
      %v1792 = vand.u32 %v1791, 4294901760
      %v1793 = vsub.f32 %v1791, %v1792
      %v1794 = vand.u32 %v1793, 4294901760
      %1795 = vmatpush1.msra.mxu0 %v1794
      %v1796 = vand.u32 %v1537, 4294901760
      %v1797 = vsub.f32 %v1537, %v1796
      %v1798 = vand.u32 %v1797, 4294901760
      %v1799 = vsub.f32 %v1797, %v1798
      %v1800 = vand.u32 %v1799, 4294901760
      %1801 = vmatprep.subr.mxu0 %v1800
      %v1802 = vand.u32 %v1536, 4294901760
      %v1803 = vsub.f32 %v1536, %v1802
      %v1804 = vand.u32 %v1803, 4294901760
      %v1805 = vsub.f32 %v1803, %v1804
      %v1806 = vand.u32 %v1805, 4294901760
      %1807 = vmatpush1.msra.mxu0 %v1806
      %v1808 = vand.u32 %v1544, 4294901760
      %v1809 = vsub.f32 %v1544, %v1808
      %v1810 = vand.u32 %v1809, 4294901760
      %v1811 = vsub.f32 %v1809, %v1810
      %v1812 = vand.u32 %v1811, 4294901760
      %1813 = vmatprep.subr.mxu0 %v1812
      %v1814 = vand.u32 %v1543, 4294901760
      %v1815 = vsub.f32 %v1543, %v1814
      %v1816 = vand.u32 %v1815, 4294901760
      %v1817 = vsub.f32 %v1815, %v1816
      %v1818 = vand.u32 %v1817, 4294901760
      %1819 = vmatpush1.msra.mxu0 %v1818
      %v1820 = vand.u32 %v1551, 4294901760
      %v1821 = vsub.f32 %v1551, %v1820
      %v1822 = vand.u32 %v1821, 4294901760
      %v1823 = vsub.f32 %v1821, %v1822
      %v1824 = vand.u32 %v1823, 4294901760
      %1825 = vmatprep.subr.mxu0 %v1824
      %v1826 = vand.u32 %v1550, 4294901760
      %v1827 = vsub.f32 %v1550, %v1826
      %v1828 = vand.u32 %v1827, 4294901760
      %v1829 = vsub.f32 %v1827, %v1828
      %v1830 = vand.u32 %v1829, 4294901760
      %1831 = vmatpush1.msra.mxu0 %v1830
      %v1832 = vand.u32 %v1558, 4294901760
      %v1833 = vsub.f32 %v1558, %v1832
      %v1834 = vand.u32 %v1833, 4294901760
      %v1835 = vsub.f32 %v1833, %v1834
      %v1836 = vand.u32 %v1835, 4294901760
      %1837 = vmatprep.subr.mxu0 %v1836
      %v1838 = vand.u32 %v1557, 4294901760
      %v1839 = vsub.f32 %v1557, %v1838
      %v1840 = vand.u32 %v1839, 4294901760
      %v1841 = vsub.f32 %v1839, %v1840
      %v1842 = vand.u32 %v1841, 4294901760
      %1843 = vmatpush1.msra.mxu0 %v1842
      %v1844 = vand.u32 %v1565, 4294901760
      %v1845 = vsub.f32 %v1565, %v1844
      %v1846 = vand.u32 %v1845, 4294901760
      %v1847 = vsub.f32 %v1845, %v1846
      %v1848 = vand.u32 %v1847, 4294901760
      %1849 = vmatprep.subr.mxu0 %v1848
      %v1850 = vand.u32 %v1564, 4294901760
      %v1851 = vsub.f32 %v1564, %v1850
      %v1852 = vand.u32 %v1851, 4294901760
      %v1853 = vsub.f32 %v1851, %v1852
      %v1854 = vand.u32 %v1853, 4294901760
      %1855 = vmatpush1.msra.mxu0 %v1854
      %v1856 = vand.u32 %v1572, 4294901760
      %v1857 = vsub.f32 %v1572, %v1856
      %v1858 = vand.u32 %v1857, 4294901760
      %v1859 = vsub.f32 %v1857, %v1858
      %v1860 = vand.u32 %v1859, 4294901760
      %1861 = vmatprep.subr.mxu0 %v1860
      %v1862 = vand.u32 %v1571, 4294901760
      %v1863 = vsub.f32 %v1571, %v1862
      %v1864 = vand.u32 %v1863, 4294901760
      %v1865 = vsub.f32 %v1863, %v1864
      %v1866 = vand.u32 %v1865, 4294901760
      %1867 = vmatpush1.msra.mxu0 %v1866
      %1868 = vmatprep.subr.mxu0 0.0
      %1869 = vmatpush1.msra.mxu0 0.0
      %1870 = vmatprep.subr.mxu0 0.0
      %1871 = vmatpush1.msra.mxu0 0.0
      %1872 = vmatprep.subr.mxu0 0.0
      %1873 = vmatpush1.msra.mxu0 0.0
      %1874 = vmatprep.subr.mxu0 0.0
      %1875 = vmatpush1.msra.mxu0 0.0
      %1876 = vmatprep.subr.mxu0 0.0
      %1877 = vmatpush1.msra.mxu0 0.0
      %1878 = vmatprep.subr.mxu0 0.0
      %1879 = vmatpush1.msra.mxu0 0.0
      %1880 = vmatprep.subr.mxu0 0.0
      %1881 = vmatpush1.msra.mxu0 0.0
      %1882 = vmatprep.subr.mxu0 0.0
      %1883 = vmatpush1.msra.mxu0 0.0
      %1884 = vmatprep.subr.mxu0 0.0
      %1885 = vmatpush1.msra.mxu0 0.0
      %1886 = vmatprep.subr.mxu0 0.0
      %1887 = vmatpush1.msra.mxu0 0.0
      %1888 = vmatprep.subr.mxu0 0.0
      %1889 = vmatpush1.msra.mxu0 0.0
      %1890 = vmatprep.subr.mxu0 0.0
      %1891 = vmatpush1.msra.mxu0 0.0
      %1892 = vmatprep.subr.mxu0 0.0
      %1893 = vmatpush1.msra.mxu0 0.0
      %1894 = vmatprep.subr.mxu0 0.0
      %1895 = vmatpush1.msra.mxu0 0.0
      %1896 = vmatprep.subr.mxu0 0.0
      %1897 = vmatpush1.msra.mxu0 0.0
      %1898 = vmatprep.subr.mxu0 0.0
      %1899 = vmatpush1.msra.mxu0 0.0
      %1900 = vmatprep.subr.mxu0 0.0
      %1901 = vmatpush1.msra.mxu0 0.0
      %1902 = vmatprep.subr.mxu0 0.0
      %1903 = vmatpush1.msra.mxu0 0.0
      %1904 = vmatprep.mubr.f32.mxu0 0.0
      %v1905 = vand.u32 %v1580, 4294901760
      %1906 = vmatmul.mubr.f32.gmra.mrb[0].mxu0 %v1905
      %v1907 = vpop.f32.mrb[0].mxu0
      %v1908 = vadd.f32 %v1685, %v1907
      %v1909 = vpop.f32.mrb[0].mxu0
      %v1910 = vadd.f32 %v1687, %v1909
      %1911 = vmatprep.mubr.f32.mxu0 0.0
      %v1912 = vand.u32 %v1583, 4294901760
      %1913 = vmatmul.mubr.f32.gmra.mrb[0].mxu0 %v1912
      %v1914 = vpop.f32.mrb[0].mxu0
      %v1915 = vadd.f32 %v1696, %v1914
      %v1916 = vpop.f32.mrb[0].mxu0
      %v1917 = vadd.f32 %v1698, %v1916
      %1918 = vdwg.mxu0
      %v1919 = vand.u32 %v1481, 4294901760
      %v1920 = vsub.f32 %v1481, %v1919
      %1921 = vmatprep.subr.mxu0 %v1920
      %v1922 = vand.u32 %v1480, 4294901760
      %v1923 = vsub.f32 %v1480, %v1922
      %1924 = vmatpush1.msra.mxu0 %v1923
      %v1925 = vand.u32 %v1488, 4294901760
      %v1926 = vsub.f32 %v1488, %v1925
      %1927 = vmatprep.subr.mxu0 %v1926
      %v1928 = vand.u32 %v1487, 4294901760
      %v1929 = vsub.f32 %v1487, %v1928
      %1930 = vmatpush1.msra.mxu0 %v1929
      %v1931 = vand.u32 %v1495, 4294901760
      %v1932 = vsub.f32 %v1495, %v1931
      %1933 = vmatprep.subr.mxu0 %v1932
      %v1934 = vand.u32 %v1494, 4294901760
      %v1935 = vsub.f32 %v1494, %v1934
      %1936 = vmatpush1.msra.mxu0 %v1935
      %v1937 = vand.u32 %v1502, 4294901760
      %v1938 = vsub.f32 %v1502, %v1937
      %1939 = vmatprep.subr.mxu0 %v1938
      %v1940 = vand.u32 %v1501, 4294901760
      %v1941 = vsub.f32 %v1501, %v1940
      %1942 = vmatpush1.msra.mxu0 %v1941
      %v1943 = vand.u32 %v1509, 4294901760
      %v1944 = vsub.f32 %v1509, %v1943
      %1945 = vmatprep.subr.mxu0 %v1944
      %v1946 = vand.u32 %v1508, 4294901760
      %v1947 = vsub.f32 %v1508, %v1946
      %1948 = vmatpush1.msra.mxu0 %v1947
      %v1949 = vand.u32 %v1516, 4294901760
      %v1950 = vsub.f32 %v1516, %v1949
      %1951 = vmatprep.subr.mxu0 %v1950
      %v1952 = vand.u32 %v1515, 4294901760
      %v1953 = vsub.f32 %v1515, %v1952
      %1954 = vmatpush1.msra.mxu0 %v1953
      %v1955 = vand.u32 %v1523, 4294901760
      %v1956 = vsub.f32 %v1523, %v1955
      %1957 = vmatprep.subr.mxu0 %v1956
      %v1958 = vand.u32 %v1522, 4294901760
      %v1959 = vsub.f32 %v1522, %v1958
      %1960 = vmatpush1.msra.mxu0 %v1959
      %v1961 = vand.u32 %v1530, 4294901760
      %v1962 = vsub.f32 %v1530, %v1961
      %1963 = vmatprep.subr.mxu0 %v1962
      %v1964 = vand.u32 %v1529, 4294901760
      %v1965 = vsub.f32 %v1529, %v1964
      %1966 = vmatpush1.msra.mxu0 %v1965
      %v1967 = vand.u32 %v1537, 4294901760
      %v1968 = vsub.f32 %v1537, %v1967
      %1969 = vmatprep.subr.mxu0 %v1968
      %v1970 = vand.u32 %v1536, 4294901760
      %v1971 = vsub.f32 %v1536, %v1970
      %1972 = vmatpush1.msra.mxu0 %v1971
      %v1973 = vand.u32 %v1544, 4294901760
      %v1974 = vsub.f32 %v1544, %v1973
      %1975 = vmatprep.subr.mxu0 %v1974
      %v1976 = vand.u32 %v1543, 4294901760
      %v1977 = vsub.f32 %v1543, %v1976
      %1978 = vmatpush1.msra.mxu0 %v1977
      %v1979 = vand.u32 %v1551, 4294901760
      %v1980 = vsub.f32 %v1551, %v1979
      %1981 = vmatprep.subr.mxu0 %v1980
      %v1982 = vand.u32 %v1550, 4294901760
      %v1983 = vsub.f32 %v1550, %v1982
      %1984 = vmatpush1.msra.mxu0 %v1983
      %v1985 = vand.u32 %v1558, 4294901760
      %v1986 = vsub.f32 %v1558, %v1985
      %1987 = vmatprep.subr.mxu0 %v1986
      %v1988 = vand.u32 %v1557, 4294901760
      %v1989 = vsub.f32 %v1557, %v1988
      %1990 = vmatpush1.msra.mxu0 %v1989
      %v1991 = vand.u32 %v1565, 4294901760
      %v1992 = vsub.f32 %v1565, %v1991
      %1993 = vmatprep.subr.mxu0 %v1992
      %v1994 = vand.u32 %v1564, 4294901760
      %v1995 = vsub.f32 %v1564, %v1994
      %1996 = vmatpush1.msra.mxu0 %v1995
      %v1997 = vand.u32 %v1572, 4294901760
      %v1998 = vsub.f32 %v1572, %v1997
      %1999 = vmatprep.subr.mxu0 %v1998
      %v2000 = vand.u32 %v1571, 4294901760
      %v2001 = vsub.f32 %v1571, %v2000
      %2002 = vmatpush1.msra.mxu0 %v2001
      %2003 = vmatprep.subr.mxu0 0.0
      %2004 = vmatpush1.msra.mxu0 0.0
      %2005 = vmatprep.subr.mxu0 0.0
      %2006 = vmatpush1.msra.mxu0 0.0
      %2007 = vmatprep.subr.mxu0 0.0
      %2008 = vmatpush1.msra.mxu0 0.0
      %2009 = vmatprep.subr.mxu0 0.0
      %2010 = vmatpush1.msra.mxu0 0.0
      %2011 = vmatprep.subr.mxu0 0.0
      %2012 = vmatpush1.msra.mxu0 0.0
      %2013 = vmatprep.subr.mxu0 0.0
      %2014 = vmatpush1.msra.mxu0 0.0
      %2015 = vmatprep.subr.mxu0 0.0
      %2016 = vmatpush1.msra.mxu0 0.0
      %2017 = vmatprep.subr.mxu0 0.0
      %2018 = vmatpush1.msra.mxu0 0.0
      %2019 = vmatprep.subr.mxu0 0.0
      %2020 = vmatpush1.msra.mxu0 0.0
      %2021 = vmatprep.subr.mxu0 0.0
      %2022 = vmatpush1.msra.mxu0 0.0
      %2023 = vmatprep.subr.mxu0 0.0
      %2024 = vmatpush1.msra.mxu0 0.0
      %2025 = vmatprep.subr.mxu0 0.0
      %2026 = vmatpush1.msra.mxu0 0.0
      %2027 = vmatprep.subr.mxu0 0.0
      %2028 = vmatpush1.msra.mxu0 0.0
      %2029 = vmatprep.subr.mxu0 0.0
      %2030 = vmatpush1.msra.mxu0 0.0
      %2031 = vmatprep.subr.mxu0 0.0
      %2032 = vmatpush1.msra.mxu0 0.0
      %2033 = vmatprep.subr.mxu0 0.0
      %2034 = vmatpush1.msra.mxu0 0.0
      %2035 = vmatprep.subr.mxu0 0.0
      %2036 = vmatpush1.msra.mxu0 0.0
      %2037 = vmatprep.subr.mxu0 0.0
      %2038 = vmatpush1.msra.mxu0 0.0
      %2039 = vmatprep.mubr.f32.mxu0 0.0
      %v2040 = vand.u32 %v1580, 4294901760
      %v2041 = vsub.f32 %v1580, %v2040
      %2042 = vmatmul.mubr.f32.gmra.mrb[0].mxu0 %v2041
      %v2043 = vpop.f32.mrb[0].mxu0
      %v2044 = vadd.f32 %v1908, %v2043
      %v2045 = vpop.f32.mrb[0].mxu0
      %v2046 = vadd.f32 %v1910, %v2045
      %2047 = vmatprep.mubr.f32.mxu0 0.0
      %v2048 = vand.u32 %v1583, 4294901760
      %v2049 = vsub.f32 %v1583, %v2048
      %2050 = vmatmul.mubr.f32.gmra.mrb[0].mxu0 %v2049
      %v2051 = vpop.f32.mrb[0].mxu0
      %v2052 = vadd.f32 %v1915, %v2051
      %v2053 = vpop.f32.mrb[0].mxu0
      %v2054 = vadd.f32 %v1917, %v2053
      %2055 = vdwg.mxu0
      %v2056 = vand.u32 %v1481, 4294901760
      %2057 = vmatprep.subr.mxu0 %v2056
      %v2058 = vand.u32 %v1480, 4294901760
      %2059 = vmatpush1.msra.mxu0 %v2058
      %v2060 = vand.u32 %v1488, 4294901760
      %2061 = vmatprep.subr.mxu0 %v2060
      %v2062 = vand.u32 %v1487, 4294901760
      %2063 = vmatpush1.msra.mxu0 %v2062
      %v2064 = vand.u32 %v1495, 4294901760
      %2065 = vmatprep.subr.mxu0 %v2064
      %v2066 = vand.u32 %v1494, 4294901760
      %2067 = vmatpush1.msra.mxu0 %v2066
      %v2068 = vand.u32 %v1502, 4294901760
      %2069 = vmatprep.subr.mxu0 %v2068
      %v2070 = vand.u32 %v1501, 4294901760
      %2071 = vmatpush1.msra.mxu0 %v2070
      %v2072 = vand.u32 %v1509, 4294901760
      %2073 = vmatprep.subr.mxu0 %v2072
      %v2074 = vand.u32 %v1508, 4294901760
      %2075 = vmatpush1.msra.mxu0 %v2074
      %v2076 = vand.u32 %v1516, 4294901760
      %2077 = vmatprep.subr.mxu0 %v2076
      %v2078 = vand.u32 %v1515, 4294901760
      %2079 = vmatpush1.msra.mxu0 %v2078
      %v2080 = vand.u32 %v1523, 4294901760
      %2081 = vmatprep.subr.mxu0 %v2080
      %v2082 = vand.u32 %v1522, 4294901760
      %2083 = vmatpush1.msra.mxu0 %v2082
      %v2084 = vand.u32 %v1530, 4294901760
      %2085 = vmatprep.subr.mxu0 %v2084
      %v2086 = vand.u32 %v1529, 4294901760
      %2087 = vmatpush1.msra.mxu0 %v2086
      %v2088 = vand.u32 %v1537, 4294901760
      %2089 = vmatprep.subr.mxu0 %v2088
      %v2090 = vand.u32 %v1536, 4294901760
      %2091 = vmatpush1.msra.mxu0 %v2090
      %v2092 = vand.u32 %v1544, 4294901760
      %2093 = vmatprep.subr.mxu0 %v2092
      %v2094 = vand.u32 %v1543, 4294901760
      %2095 = vmatpush1.msra.mxu0 %v2094
      %v2096 = vand.u32 %v1551, 4294901760
      %2097 = vmatprep.subr.mxu0 %v2096
      %v2098 = vand.u32 %v1550, 4294901760
      %2099 = vmatpush1.msra.mxu0 %v2098
      %v2100 = vand.u32 %v1558, 4294901760
      %2101 = vmatprep.subr.mxu0 %v2100
      %v2102 = vand.u32 %v1557, 4294901760
      %2103 = vmatpush1.msra.mxu0 %v2102
      %v2104 = vand.u32 %v1565, 4294901760
      %2105 = vmatprep.subr.mxu0 %v2104
      %v2106 = vand.u32 %v1564, 4294901760
      %2107 = vmatpush1.msra.mxu0 %v2106
      %v2108 = vand.u32 %v1572, 4294901760
      %2109 = vmatprep.subr.mxu0 %v2108
      %v2110 = vand.u32 %v1571, 4294901760
      %2111 = vmatpush1.msra.mxu0 %v2110
      %2112 = vmatprep.subr.mxu0 0.0
      %2113 = vmatpush1.msra.mxu0 0.0
      %2114 = vmatprep.subr.mxu0 0.0
      %2115 = vmatpush1.msra.mxu0 0.0
      %2116 = vmatprep.subr.mxu0 0.0
      %2117 = vmatpush1.msra.mxu0 0.0
      %2118 = vmatprep.subr.mxu0 0.0
      %2119 = vmatpush1.msra.mxu0 0.0
      %2120 = vmatprep.subr.mxu0 0.0
      %2121 = vmatpush1.msra.mxu0 0.0
      %2122 = vmatprep.subr.mxu0 0.0
      %2123 = vmatpush1.msra.mxu0 0.0
      %2124 = vmatprep.subr.mxu0 0.0
      %2125 = vmatpush1.msra.mxu0 0.0
      %2126 = vmatprep.subr.mxu0 0.0
      %2127 = vmatpush1.msra.mxu0 0.0
      %2128 = vmatprep.subr.mxu0 0.0
      %2129 = vmatpush1.msra.mxu0 0.0
      %2130 = vmatprep.subr.mxu0 0.0
      %2131 = vmatpush1.msra.mxu0 0.0
      %2132 = vmatprep.subr.mxu0 0.0
      %2133 = vmatpush1.msra.mxu0 0.0
      %2134 = vmatprep.subr.mxu0 0.0
      %2135 = vmatpush1.msra.mxu0 0.0
      %2136 = vmatprep.subr.mxu0 0.0
      %2137 = vmatpush1.msra.mxu0 0.0
      %2138 = vmatprep.subr.mxu0 0.0
      %2139 = vmatpush1.msra.mxu0 0.0
      %2140 = vmatprep.subr.mxu0 0.0
      %2141 = vmatpush1.msra.mxu0 0.0
      %2142 = vmatprep.subr.mxu0 0.0
      %2143 = vmatpush1.msra.mxu0 0.0
      %2144 = vmatprep.subr.mxu0 0.0
      %2145 = vmatpush1.msra.mxu0 0.0
      %2146 = vmatprep.subr.mxu0 0.0
      %2147 = vmatpush1.msra.mxu0 0.0
      %2148 = vmatprep.mubr.f32.mxu0 0.0
      %v2149 = vand.u32 %v1580, 4294901760
      %v2150 = vsub.f32 %v1580, %v2149
      %v2151 = vand.u32 %v2150, 4294901760
      %2152 = vmatmul.mubr.f32.gmra.mrb[0].mxu0 %v2151
      %v2153 = vpop.f32.mrb[0].mxu0
      %v2154 = vadd.f32 %v2044, %v2153
      %v2155 = vpop.f32.mrb[0].mxu0
      %v2156 = vadd.f32 %v2046, %v2155
      %2157 = vmatprep.mubr.f32.mxu0 0.0
      %v2158 = vand.u32 %v1583, 4294901760
      %v2159 = vsub.f32 %v1583, %v2158
      %v2160 = vand.u32 %v2159, 4294901760
      %2161 = vmatmul.mubr.f32.gmra.mrb[0].mxu0 %v2160
      %v2162 = vpop.f32.mrb[0].mxu0
      %v2163 = vadd.f32 %v2052, %v2162
      %v2164 = vpop.f32.mrb[0].mxu0
      %v2165 = vadd.f32 %v2054, %v2164
      %2166 = vdwg.mxu0
      %v2167 = vand.u32 %v1481, 4294901760
      %v2168 = vsub.f32 %v1481, %v2167
      %v2169 = vand.u32 %v2168, 4294901760
      %2170 = vmatprep.subr.mxu0 %v2169
      %v2171 = vand.u32 %v1480, 4294901760
      %v2172 = vsub.f32 %v1480, %v2171
      %v2173 = vand.u32 %v2172, 4294901760
      %2174 = vmatpush1.msra.mxu0 %v2173
      %v2175 = vand.u32 %v1488, 4294901760
      %v2176 = vsub.f32 %v1488, %v2175
      %v2177 = vand.u32 %v2176, 4294901760
      %2178 = vmatprep.subr.mxu0 %v2177
      %v2179 = vand.u32 %v1487, 4294901760
      %v2180 = vsub.f32 %v1487, %v2179
      %v2181 = vand.u32 %v2180, 4294901760
      %2182 = vmatpush1.msra.mxu0 %v2181
      %v2183 = vand.u32 %v1495, 4294901760
      %v2184 = vsub.f32 %v1495, %v2183
      %v2185 = vand.u32 %v2184, 4294901760
      %2186 = vmatprep.subr.mxu0 %v2185
      %v2187 = vand.u32 %v1494, 4294901760
      %v2188 = vsub.f32 %v1494, %v2187
      %v2189 = vand.u32 %v2188, 4294901760
      %2190 = vmatpush1.msra.mxu0 %v2189
      %v2191 = vand.u32 %v1502, 4294901760
      %v2192 = vsub.f32 %v1502, %v2191
      %v2193 = vand.u32 %v2192, 4294901760
      %2194 = vmatprep.subr.mxu0 %v2193
      %v2195 = vand.u32 %v1501, 4294901760
      %v2196 = vsub.f32 %v1501, %v2195
      %v2197 = vand.u32 %v2196, 4294901760
      %2198 = vmatpush1.msra.mxu0 %v2197
      %v2199 = vand.u32 %v1509, 4294901760
      %v2200 = vsub.f32 %v1509, %v2199
      %v2201 = vand.u32 %v2200, 4294901760
      %2202 = vmatprep.subr.mxu0 %v2201
      %v2203 = vand.u32 %v1508, 4294901760
      %v2204 = vsub.f32 %v1508, %v2203
      %v2205 = vand.u32 %v2204, 4294901760
      %2206 = vmatpush1.msra.mxu0 %v2205
      %v2207 = vand.u32 %v1516, 4294901760
      %v2208 = vsub.f32 %v1516, %v2207
      %v2209 = vand.u32 %v2208, 4294901760
      %2210 = vmatprep.subr.mxu0 %v2209
      %v2211 = vand.u32 %v1515, 4294901760
      %v2212 = vsub.f32 %v1515, %v2211
      %v2213 = vand.u32 %v2212, 4294901760
      %2214 = vmatpush1.msra.mxu0 %v2213
      %v2215 = vand.u32 %v1523, 4294901760
      %v2216 = vsub.f32 %v1523, %v2215
      %v2217 = vand.u32 %v2216, 4294901760
      %2218 = vmatprep.subr.mxu0 %v2217
      %v2219 = vand.u32 %v1522, 4294901760
      %v2220 = vsub.f32 %v1522, %v2219
      %v2221 = vand.u32 %v2220, 4294901760
      %2222 = vmatpush1.msra.mxu0 %v2221
      %v2223 = vand.u32 %v1530, 4294901760
      %v2224 = vsub.f32 %v1530, %v2223
      %v2225 = vand.u32 %v2224, 4294901760
      %2226 = vmatprep.subr.mxu0 %v2225
      %v2227 = vand.u32 %v1529, 4294901760
      %v2228 = vsub.f32 %v1529, %v2227
      %v2229 = vand.u32 %v2228, 4294901760
      %2230 = vmatpush1.msra.mxu0 %v2229
      %v2231 = vand.u32 %v1537, 4294901760
      %v2232 = vsub.f32 %v1537, %v2231
      %v2233 = vand.u32 %v2232, 4294901760
      %2234 = vmatprep.subr.mxu0 %v2233
      %v2235 = vand.u32 %v1536, 4294901760
      %v2236 = vsub.f32 %v1536, %v2235
      %v2237 = vand.u32 %v2236, 4294901760
      %2238 = vmatpush1.msra.mxu0 %v2237
      %v2239 = vand.u32 %v1544, 4294901760
      %v2240 = vsub.f32 %v1544, %v2239
      %v2241 = vand.u32 %v2240, 4294901760
      %2242 = vmatprep.subr.mxu0 %v2241
      %v2243 = vand.u32 %v1543, 4294901760
      %v2244 = vsub.f32 %v1543, %v2243
      %v2245 = vand.u32 %v2244, 4294901760
      %2246 = vmatpush1.msra.mxu0 %v2245
      %v2247 = vand.u32 %v1551, 4294901760
      %v2248 = vsub.f32 %v1551, %v2247
      %v2249 = vand.u32 %v2248, 4294901760
      %2250 = vmatprep.subr.mxu0 %v2249
      %v2251 = vand.u32 %v1550, 4294901760
      %v2252 = vsub.f32 %v1550, %v2251
      %v2253 = vand.u32 %v2252, 4294901760
      %2254 = vmatpush1.msra.mxu0 %v2253
      %v2255 = vand.u32 %v1558, 4294901760
      %v2256 = vsub.f32 %v1558, %v2255
      %v2257 = vand.u32 %v2256, 4294901760
      %2258 = vmatprep.subr.mxu0 %v2257
      %v2259 = vand.u32 %v1557, 4294901760
      %v2260 = vsub.f32 %v1557, %v2259
      %v2261 = vand.u32 %v2260, 4294901760
      %2262 = vmatpush1.msra.mxu0 %v2261
      %v2263 = vand.u32 %v1565, 4294901760
      %v2264 = vsub.f32 %v1565, %v2263
      %v2265 = vand.u32 %v2264, 4294901760
      %2266 = vmatprep.subr.mxu0 %v2265
      %v2267 = vand.u32 %v1564, 4294901760
      %v2268 = vsub.f32 %v1564, %v2267
      %v2269 = vand.u32 %v2268, 4294901760
      %2270 = vmatpush1.msra.mxu0 %v2269
      %v2271 = vand.u32 %v1572, 4294901760
      %v2272 = vsub.f32 %v1572, %v2271
      %v2273 = vand.u32 %v2272, 4294901760
      %2274 = vmatprep.subr.mxu0 %v2273
      %v2275 = vand.u32 %v1571, 4294901760
      %v2276 = vsub.f32 %v1571, %v2275
      %v2277 = vand.u32 %v2276, 4294901760
      %2278 = vmatpush1.msra.mxu0 %v2277
      %2279 = vmatprep.subr.mxu0 0.0
      %2280 = vmatpush1.msra.mxu0 0.0
      %2281 = vmatprep.subr.mxu0 0.0
      %2282 = vmatpush1.msra.mxu0 0.0
      %2283 = vmatprep.subr.mxu0 0.0
      %2284 = vmatpush1.msra.mxu0 0.0
      %2285 = vmatprep.subr.mxu0 0.0
      %2286 = vmatpush1.msra.mxu0 0.0
      %2287 = vmatprep.subr.mxu0 0.0
      %2288 = vmatpush1.msra.mxu0 0.0
      %2289 = vmatprep.subr.mxu0 0.0
      %2290 = vmatpush1.msra.mxu0 0.0
      %2291 = vmatprep.subr.mxu0 0.0
      %2292 = vmatpush1.msra.mxu0 0.0
      %2293 = vmatprep.subr.mxu0 0.0
      %2294 = vmatpush1.msra.mxu0 0.0
      %2295 = vmatprep.subr.mxu0 0.0
      %2296 = vmatpush1.msra.mxu0 0.0
      %2297 = vmatprep.subr.mxu0 0.0
      %2298 = vmatpush1.msra.mxu0 0.0
      %2299 = vmatprep.subr.mxu0 0.0
      %2300 = vmatpush1.msra.mxu0 0.0
      %2301 = vmatprep.subr.mxu0 0.0
      %2302 = vmatpush1.msra.mxu0 0.0
      %2303 = vmatprep.subr.mxu0 0.0
      %2304 = vmatpush1.msra.mxu0 0.0
      %2305 = vmatprep.subr.mxu0 0.0
      %2306 = vmatpush1.msra.mxu0 0.0
      %2307 = vmatprep.subr.mxu0 0.0
      %2308 = vmatpush1.msra.mxu0 0.0
      %2309 = vmatprep.subr.mxu0 0.0
      %2310 = vmatpush1.msra.mxu0 0.0
      %2311 = vmatprep.subr.mxu0 0.0
      %2312 = vmatpush1.msra.mxu0 0.0
      %2313 = vmatprep.subr.mxu0 0.0
      %2314 = vmatpush1.msra.mxu0 0.0
      %2315 = vmatprep.mubr.f32.mxu0 0.0
      %v2316 = vand.u32 %v1580, 4294901760
      %2317 = vmatmul.mubr.f32.gmra.mrb[0].mxu0 %v2316
      %v2318 = vpop.f32.mrb[0].mxu0
      %v2319 = vadd.f32 %v2154, %v2318
      %v2320 = vpop.f32.mrb[0].mxu0
      %v2321 = vadd.f32 %v2156, %v2320
      %2322 = vmatprep.mubr.f32.mxu0 0.0
      %v2323 = vand.u32 %v1583, 4294901760
      %2324 = vmatmul.mubr.f32.gmra.mrb[0].mxu0 %v2323
      %v2325 = vpop.f32.mrb[0].mxu0
      %v2326 = vadd.f32 %v2163, %v2325
      %v2327 = vpop.f32.mrb[0].mxu0
      %v2328 = vadd.f32 %v2165, %v2327
      %2329 = vdwg.mxu0
      %v2330 = vand.u32 %v1481, 4294901760
      %2331 = vmatprep.subr.mxu0 %v2330
      %v2332 = vand.u32 %v1480, 4294901760
      %2333 = vmatpush1.msra.mxu0 %v2332
      %v2334 = vand.u32 %v1488, 4294901760
      %2335 = vmatprep.subr.mxu0 %v2334
      %v2336 = vand.u32 %v1487, 4294901760
      %2337 = vmatpush1.msra.mxu0 %v2336
      %v2338 = vand.u32 %v1495, 4294901760
      %2339 = vmatprep.subr.mxu0 %v2338
      %v2340 = vand.u32 %v1494, 4294901760
      %2341 = vmatpush1.msra.mxu0 %v2340
      %v2342 = vand.u32 %v1502, 4294901760
      %2343 = vmatprep.subr.mxu0 %v2342
      %v2344 = vand.u32 %v1501, 4294901760
      %2345 = vmatpush1.msra.mxu0 %v2344
      %v2346 = vand.u32 %v1509, 4294901760
      %2347 = vmatprep.subr.mxu0 %v2346
      %v2348 = vand.u32 %v1508, 4294901760
      %2349 = vmatpush1.msra.mxu0 %v2348
      %v2350 = vand.u32 %v1516, 4294901760
      %2351 = vmatprep.subr.mxu0 %v2350
      %v2352 = vand.u32 %v1515, 4294901760
      %2353 = vmatpush1.msra.mxu0 %v2352
      %v2354 = vand.u32 %v1523, 4294901760
      %2355 = vmatprep.subr.mxu0 %v2354
      %v2356 = vand.u32 %v1522, 4294901760
      %2357 = vmatpush1.msra.mxu0 %v2356
      %v2358 = vand.u32 %v1530, 4294901760
      %2359 = vmatprep.subr.mxu0 %v2358
      %v2360 = vand.u32 %v1529, 4294901760
      %2361 = vmatpush1.msra.mxu0 %v2360
      %v2362 = vand.u32 %v1537, 4294901760
      %2363 = vmatprep.subr.mxu0 %v2362
      %v2364 = vand.u32 %v1536, 4294901760
      %2365 = vmatpush1.msra.mxu0 %v2364
      %v2366 = vand.u32 %v1544, 4294901760
      %2367 = vmatprep.subr.mxu0 %v2366
      %v2368 = vand.u32 %v1543, 4294901760
      %2369 = vmatpush1.msra.mxu0 %v2368
      %v2370 = vand.u32 %v1551, 4294901760
      %2371 = vmatprep.subr.mxu0 %v2370
      %v2372 = vand.u32 %v1550, 4294901760
      %2373 = vmatpush1.msra.mxu0 %v2372
      %v2374 = vand.u32 %v1558, 4294901760
      %2375 = vmatprep.subr.mxu0 %v2374
      %v2376 = vand.u32 %v1557, 4294901760
      %2377 = vmatpush1.msra.mxu0 %v2376
      %v2378 = vand.u32 %v1565, 4294901760
      %2379 = vmatprep.subr.mxu0 %v2378
      %v2380 = vand.u32 %v1564, 4294901760
      %2381 = vmatpush1.msra.mxu0 %v2380
      %v2382 = vand.u32 %v1572, 4294901760
      %2383 = vmatprep.subr.mxu0 %v2382
      %v2384 = vand.u32 %v1571, 4294901760
      %2385 = vmatpush1.msra.mxu0 %v2384
      %2386 = vmatprep.subr.mxu0 0.0
      %2387 = vmatpush1.msra.mxu0 0.0
      %2388 = vmatprep.subr.mxu0 0.0
      %2389 = vmatpush1.msra.mxu0 0.0
      %2390 = vmatprep.subr.mxu0 0.0
      %2391 = vmatpush1.msra.mxu0 0.0
      %2392 = vmatprep.subr.mxu0 0.0
      %2393 = vmatpush1.msra.mxu0 0.0
      %2394 = vmatprep.subr.mxu0 0.0
      %2395 = vmatpush1.msra.mxu0 0.0
      %2396 = vmatprep.subr.mxu0 0.0
      %2397 = vmatpush1.msra.mxu0 0.0
      %2398 = vmatprep.subr.mxu0 0.0
      %2399 = vmatpush1.msra.mxu0 0.0
      %2400 = vmatprep.subr.mxu0 0.0
      %2401 = vmatpush1.msra.mxu0 0.0
      %2402 = vmatprep.subr.mxu0 0.0
      %2403 = vmatpush1.msra.mxu0 0.0
      %2404 = vmatprep.subr.mxu0 0.0
      %2405 = vmatpush1.msra.mxu0 0.0
      %2406 = vmatprep.subr.mxu0 0.0
      %2407 = vmatpush1.msra.mxu0 0.0
      %2408 = vmatprep.subr.mxu0 0.0
      %2409 = vmatpush1.msra.mxu0 0.0
      %2410 = vmatprep.subr.mxu0 0.0
      %2411 = vmatpush1.msra.mxu0 0.0
      %2412 = vmatprep.subr.mxu0 0.0
      %2413 = vmatpush1.msra.mxu0 0.0
      %2414 = vmatprep.subr.mxu0 0.0
      %2415 = vmatpush1.msra.mxu0 0.0
      %2416 = vmatprep.subr.mxu0 0.0
      %2417 = vmatpush1.msra.mxu0 0.0
      %2418 = vmatprep.subr.mxu0 0.0
      %2419 = vmatpush1.msra.mxu0 0.0
      %2420 = vmatprep.subr.mxu0 0.0
      %2421 = vmatpush1.msra.mxu0 0.0
      %2422 = vmatprep.mubr.f32.mxu0 0.0
      %v2423 = vand.u32 %v1580, 4294901760
      %2424 = vmatmul.mubr.f32.gmra.mrb[0].mxu0 %v2423
      %v2425 = vpop.f32.mrb[0].mxu0
      %v2426 = vadd.f32 %v2319, %v2425
      %v2427 = vpop.f32.mrb[0].mxu0
      %v2428 = vadd.f32 %v2321, %v2427
      %2429 = vmatprep.mubr.f32.mxu0 0.0
      %v2430 = vand.u32 %v1583, 4294901760
      %2431 = vmatmul.mubr.f32.gmra.mrb[0].mxu0 %v2430
      %v2432 = vpop.f32.mrb[0].mxu0
      %v2433 = vadd.f32 %v2326, %v2432
      %v2434 = vpop.f32.mrb[0].mxu0
      %v2435 = vadd.f32 %v2328, %v2434
      %2436 = vdwg.mxu0
      %v2437 = vand.u32 %v1483, 4294901760
      %2438 = vmatprep.subr.mxu0 %v2437
      %v2439 = vand.u32 %v1482, 4294901760
      %2440 = vmatpush1.msra.mxu0 %v2439
      %v2441 = vand.u32 %v1490, 4294901760
      %2442 = vmatprep.subr.mxu0 %v2441
      %v2443 = vand.u32 %v1489, 4294901760
      %2444 = vmatpush1.msra.mxu0 %v2443
      %v2445 = vand.u32 %v1497, 4294901760
      %2446 = vmatprep.subr.mxu0 %v2445
      %v2447 = vand.u32 %v1496, 4294901760
      %2448 = vmatpush1.msra.mxu0 %v2447
      %v2449 = vand.u32 %v1504, 4294901760
      %2450 = vmatprep.subr.mxu0 %v2449
      %v2451 = vand.u32 %v1503, 4294901760
      %2452 = vmatpush1.msra.mxu0 %v2451
      %v2453 = vand.u32 %v1511, 4294901760
      %2454 = vmatprep.subr.mxu0 %v2453
      %v2455 = vand.u32 %v1510, 4294901760
      %2456 = vmatpush1.msra.mxu0 %v2455
      %v2457 = vand.u32 %v1518, 4294901760
      %2458 = vmatprep.subr.mxu0 %v2457
      %v2459 = vand.u32 %v1517, 4294901760
      %2460 = vmatpush1.msra.mxu0 %v2459
      %v2461 = vand.u32 %v1525, 4294901760
      %2462 = vmatprep.subr.mxu0 %v2461
      %v2463 = vand.u32 %v1524, 4294901760
      %2464 = vmatpush1.msra.mxu0 %v2463
      %v2465 = vand.u32 %v1532, 4294901760
      %2466 = vmatprep.subr.mxu0 %v2465
      %v2467 = vand.u32 %v1531, 4294901760
      %2468 = vmatpush1.msra.mxu0 %v2467
      %v2469 = vand.u32 %v1539, 4294901760
      %2470 = vmatprep.subr.mxu0 %v2469
      %v2471 = vand.u32 %v1538, 4294901760
      %2472 = vmatpush1.msra.mxu0 %v2471
      %v2473 = vand.u32 %v1546, 4294901760
      %2474 = vmatprep.subr.mxu0 %v2473
      %v2475 = vand.u32 %v1545, 4294901760
      %2476 = vmatpush1.msra.mxu0 %v2475
      %v2477 = vand.u32 %v1553, 4294901760
      %2478 = vmatprep.subr.mxu0 %v2477
      %v2479 = vand.u32 %v1552, 4294901760
      %2480 = vmatpush1.msra.mxu0 %v2479
      %v2481 = vand.u32 %v1560, 4294901760
      %2482 = vmatprep.subr.mxu0 %v2481
      %v2483 = vand.u32 %v1559, 4294901760
      %2484 = vmatpush1.msra.mxu0 %v2483
      %v2485 = vand.u32 %v1567, 4294901760
      %2486 = vmatprep.subr.mxu0 %v2485
      %v2487 = vand.u32 %v1566, 4294901760
      %2488 = vmatpush1.msra.mxu0 %v2487
      %v2489 = vand.u32 %v1574, 4294901760
      %2490 = vmatprep.subr.mxu0 %v2489
      %v2491 = vand.u32 %v1573, 4294901760
      %2492 = vmatpush1.msra.mxu0 %v2491
      %2493 = vmatprep.subr.mxu0 0.0
      %2494 = vmatpush1.msra.mxu0 0.0
      %2495 = vmatprep.subr.mxu0 0.0
      %2496 = vmatpush1.msra.mxu0 0.0
      %2497 = vmatprep.subr.mxu0 0.0
      %2498 = vmatpush1.msra.mxu0 0.0
      %2499 = vmatprep.subr.mxu0 0.0
      %2500 = vmatpush1.msra.mxu0 0.0
      %2501 = vmatprep.subr.mxu0 0.0
      %2502 = vmatpush1.msra.mxu0 0.0
      %2503 = vmatprep.subr.mxu0 0.0
      %2504 = vmatpush1.msra.mxu0 0.0
      %2505 = vmatprep.subr.mxu0 0.0
      %2506 = vmatpush1.msra.mxu0 0.0
      %2507 = vmatprep.subr.mxu0 0.0
      %2508 = vmatpush1.msra.mxu0 0.0
      %2509 = vmatprep.subr.mxu0 0.0
      %2510 = vmatpush1.msra.mxu0 0.0
      %2511 = vmatprep.subr.mxu0 0.0
      %2512 = vmatpush1.msra.mxu0 0.0
      %2513 = vmatprep.subr.mxu0 0.0
      %2514 = vmatpush1.msra.mxu0 0.0
      %2515 = vmatprep.subr.mxu0 0.0
      %2516 = vmatpush1.msra.mxu0 0.0
      %2517 = vmatprep.subr.mxu0 0.0
      %2518 = vmatpush1.msra.mxu0 0.0
      %2519 = vmatprep.subr.mxu0 0.0
      %2520 = vmatpush1.msra.mxu0 0.0
      %2521 = vmatprep.subr.mxu0 0.0
      %2522 = vmatpush1.msra.mxu0 0.0
      %2523 = vmatprep.subr.mxu0 0.0
      %2524 = vmatpush1.msra.mxu0 0.0
      %2525 = vmatprep.subr.mxu0 0.0
      %2526 = vmatpush1.msra.mxu0 0.0
      %2527 = vmatprep.subr.mxu0 0.0
      %2528 = vmatpush1.msra.mxu0 0.0
      %2529 = vmatprep.mubr.f32.mxu0 0.0
      %v2530 = vand.u32 %v1580, 4294901760
      %v2531 = vsub.f32 %v1580, %v2530
      %v2532 = vand.u32 %v2531, 4294901760
      %v2533 = vsub.f32 %v2531, %v2532
      %v2534 = vand.u32 %v2533, 4294901760
      %2535 = vmatmul.mubr.f32.gmra.mrb[0].mxu0 %v2534
      %v2536 = vpop.f32.mrb[0].mxu0
      %v2537 = vadd.f32 0.0, %v2536
      %v2538 = vpop.f32.mrb[0].mxu0
      %v2539 = vadd.f32 0.0, %v2538
      %2540 = vmatprep.mubr.f32.mxu0 0.0
      %v2541 = vand.u32 %v1583, 4294901760
      %v2542 = vsub.f32 %v1583, %v2541
      %v2543 = vand.u32 %v2542, 4294901760
      %v2544 = vsub.f32 %v2542, %v2543
      %v2545 = vand.u32 %v2544, 4294901760
      %2546 = vmatmul.mubr.f32.gmra.mrb[0].mxu0 %v2545
      %v2547 = vpop.f32.mrb[0].mxu0
      %v2548 = vadd.f32 0.0, %v2547
      %v2549 = vpop.f32.mrb[0].mxu0
      %v2550 = vadd.f32 0.0, %v2549
      %2551 = vdwg.mxu0
      %v2552 = vand.u32 %v1483, 4294901760
      %v2553 = vsub.f32 %v1483, %v2552
      %v2554 = vand.u32 %v2553, 4294901760
      %v2555 = vsub.f32 %v2553, %v2554
      %v2556 = vand.u32 %v2555, 4294901760
      %2557 = vmatprep.subr.mxu0 %v2556
      %v2558 = vand.u32 %v1482, 4294901760
      %v2559 = vsub.f32 %v1482, %v2558
      %v2560 = vand.u32 %v2559, 4294901760
      %v2561 = vsub.f32 %v2559, %v2560
      %v2562 = vand.u32 %v2561, 4294901760
      %2563 = vmatpush1.msra.mxu0 %v2562
      %v2564 = vand.u32 %v1490, 4294901760
      %v2565 = vsub.f32 %v1490, %v2564
      %v2566 = vand.u32 %v2565, 4294901760
      %v2567 = vsub.f32 %v2565, %v2566
      %v2568 = vand.u32 %v2567, 4294901760
      %2569 = vmatprep.subr.mxu0 %v2568
      %v2570 = vand.u32 %v1489, 4294901760
      %v2571 = vsub.f32 %v1489, %v2570
      %v2572 = vand.u32 %v2571, 4294901760
      %v2573 = vsub.f32 %v2571, %v2572
      %v2574 = vand.u32 %v2573, 4294901760
      %2575 = vmatpush1.msra.mxu0 %v2574
      %v2576 = vand.u32 %v1497, 4294901760
      %v2577 = vsub.f32 %v1497, %v2576
      %v2578 = vand.u32 %v2577, 4294901760
      %v2579 = vsub.f32 %v2577, %v2578
      %v2580 = vand.u32 %v2579, 4294901760
      %2581 = vmatprep.subr.mxu0 %v2580
      %v2582 = vand.u32 %v1496, 4294901760
      %v2583 = vsub.f32 %v1496, %v2582
      %v2584 = vand.u32 %v2583, 4294901760
      %v2585 = vsub.f32 %v2583, %v2584
      %v2586 = vand.u32 %v2585, 4294901760
      %2587 = vmatpush1.msra.mxu0 %v2586
      %v2588 = vand.u32 %v1504, 4294901760
      %v2589 = vsub.f32 %v1504, %v2588
      %v2590 = vand.u32 %v2589, 4294901760
      %v2591 = vsub.f32 %v2589, %v2590
      %v2592 = vand.u32 %v2591, 4294901760
      %2593 = vmatprep.subr.mxu0 %v2592
      %v2594 = vand.u32 %v1503, 4294901760
      %v2595 = vsub.f32 %v1503, %v2594
      %v2596 = vand.u32 %v2595, 4294901760
      %v2597 = vsub.f32 %v2595, %v2596
      %v2598 = vand.u32 %v2597, 4294901760
      %2599 = vmatpush1.msra.mxu0 %v2598
      %v2600 = vand.u32 %v1511, 4294901760
      %v2601 = vsub.f32 %v1511, %v2600
      %v2602 = vand.u32 %v2601, 4294901760
      %v2603 = vsub.f32 %v2601, %v2602
      %v2604 = vand.u32 %v2603, 4294901760
      %2605 = vmatprep.subr.mxu0 %v2604
      %v2606 = vand.u32 %v1510, 4294901760
      %v2607 = vsub.f32 %v1510, %v2606
      %v2608 = vand.u32 %v2607, 4294901760
      %v2609 = vsub.f32 %v2607, %v2608
      %v2610 = vand.u32 %v2609, 4294901760
      %2611 = vmatpush1.msra.mxu0 %v2610
      %v2612 = vand.u32 %v1518, 4294901760
      %v2613 = vsub.f32 %v1518, %v2612
      %v2614 = vand.u32 %v2613, 4294901760
      %v2615 = vsub.f32 %v2613, %v2614
      %v2616 = vand.u32 %v2615, 4294901760
      %2617 = vmatprep.subr.mxu0 %v2616
      %v2618 = vand.u32 %v1517, 4294901760
      %v2619 = vsub.f32 %v1517, %v2618
      %v2620 = vand.u32 %v2619, 4294901760
      %v2621 = vsub.f32 %v2619, %v2620
      %v2622 = vand.u32 %v2621, 4294901760
      %2623 = vmatpush1.msra.mxu0 %v2622
      %v2624 = vand.u32 %v1525, 4294901760
      %v2625 = vsub.f32 %v1525, %v2624
      %v2626 = vand.u32 %v2625, 4294901760
      %v2627 = vsub.f32 %v2625, %v2626
      %v2628 = vand.u32 %v2627, 4294901760
      %2629 = vmatprep.subr.mxu0 %v2628
      %v2630 = vand.u32 %v1524, 4294901760
      %v2631 = vsub.f32 %v1524, %v2630
      %v2632 = vand.u32 %v2631, 4294901760
      %v2633 = vsub.f32 %v2631, %v2632
      %v2634 = vand.u32 %v2633, 4294901760
      %2635 = vmatpush1.msra.mxu0 %v2634
      %v2636 = vand.u32 %v1532, 4294901760
      %v2637 = vsub.f32 %v1532, %v2636
      %v2638 = vand.u32 %v2637, 4294901760
      %v2639 = vsub.f32 %v2637, %v2638
      %v2640 = vand.u32 %v2639, 4294901760
      %2641 = vmatprep.subr.mxu0 %v2640
      %v2642 = vand.u32 %v1531, 4294901760
      %v2643 = vsub.f32 %v1531, %v2642
      %v2644 = vand.u32 %v2643, 4294901760
      %v2645 = vsub.f32 %v2643, %v2644
      %v2646 = vand.u32 %v2645, 4294901760
      %2647 = vmatpush1.msra.mxu0 %v2646
      %v2648 = vand.u32 %v1539, 4294901760
      %v2649 = vsub.f32 %v1539, %v2648
      %v2650 = vand.u32 %v2649, 4294901760
      %v2651 = vsub.f32 %v2649, %v2650
      %v2652 = vand.u32 %v2651, 4294901760
      %2653 = vmatprep.subr.mxu0 %v2652
      %v2654 = vand.u32 %v1538, 4294901760
      %v2655 = vsub.f32 %v1538, %v2654
      %v2656 = vand.u32 %v2655, 4294901760
      %v2657 = vsub.f32 %v2655, %v2656
      %v2658 = vand.u32 %v2657, 4294901760
      %2659 = vmatpush1.msra.mxu0 %v2658
      %v2660 = vand.u32 %v1546, 4294901760
      %v2661 = vsub.f32 %v1546, %v2660
      %v2662 = vand.u32 %v2661, 4294901760
      %v2663 = vsub.f32 %v2661, %v2662
      %v2664 = vand.u32 %v2663, 4294901760
      %2665 = vmatprep.subr.mxu0 %v2664
      %v2666 = vand.u32 %v1545, 4294901760
      %v2667 = vsub.f32 %v1545, %v2666
      %v2668 = vand.u32 %v2667, 4294901760
      %v2669 = vsub.f32 %v2667, %v2668
      %v2670 = vand.u32 %v2669, 4294901760
      %2671 = vmatpush1.msra.mxu0 %v2670
      %v2672 = vand.u32 %v1553, 4294901760
      %v2673 = vsub.f32 %v1553, %v2672
      %v2674 = vand.u32 %v2673, 4294901760
      %v2675 = vsub.f32 %v2673, %v2674
      %v2676 = vand.u32 %v2675, 4294901760
      %2677 = vmatprep.subr.mxu0 %v2676
      %v2678 = vand.u32 %v1552, 4294901760
      %v2679 = vsub.f32 %v1552, %v2678
      %v2680 = vand.u32 %v2679, 4294901760
      %v2681 = vsub.f32 %v2679, %v2680
      %v2682 = vand.u32 %v2681, 4294901760
      %2683 = vmatpush1.msra.mxu0 %v2682
      %v2684 = vand.u32 %v1560, 4294901760
      %v2685 = vsub.f32 %v1560, %v2684
      %v2686 = vand.u32 %v2685, 4294901760
      %v2687 = vsub.f32 %v2685, %v2686
      %v2688 = vand.u32 %v2687, 4294901760
      %2689 = vmatprep.subr.mxu0 %v2688
      %v2690 = vand.u32 %v1559, 4294901760
      %v2691 = vsub.f32 %v1559, %v2690
      %v2692 = vand.u32 %v2691, 4294901760
      %v2693 = vsub.f32 %v2691, %v2692
      %v2694 = vand.u32 %v2693, 4294901760
      %2695 = vmatpush1.msra.mxu0 %v2694
      %v2696 = vand.u32 %v1567, 4294901760
      %v2697 = vsub.f32 %v1567, %v2696
      %v2698 = vand.u32 %v2697, 4294901760
      %v2699 = vsub.f32 %v2697, %v2698
      %v2700 = vand.u32 %v2699, 4294901760
      %2701 = vmatprep.subr.mxu0 %v2700
      %v2702 = vand.u32 %v1566, 4294901760
      %v2703 = vsub.f32 %v1566, %v2702
      %v2704 = vand.u32 %v2703, 4294901760
      %v2705 = vsub.f32 %v2703, %v2704
      %v2706 = vand.u32 %v2705, 4294901760
      %2707 = vmatpush1.msra.mxu0 %v2706
      %v2708 = vand.u32 %v1574, 4294901760
      %v2709 = vsub.f32 %v1574, %v2708
      %v2710 = vand.u32 %v2709, 4294901760
      %v2711 = vsub.f32 %v2709, %v2710
      %v2712 = vand.u32 %v2711, 4294901760
      %2713 = vmatprep.subr.mxu0 %v2712
      %v2714 = vand.u32 %v1573, 4294901760
      %v2715 = vsub.f32 %v1573, %v2714
      %v2716 = vand.u32 %v2715, 4294901760
      %v2717 = vsub.f32 %v2715, %v2716
      %v2718 = vand.u32 %v2717, 4294901760
      %2719 = vmatpush1.msra.mxu0 %v2718
      %2720 = vmatprep.subr.mxu0 0.0
      %2721 = vmatpush1.msra.mxu0 0.0
      %2722 = vmatprep.subr.mxu0 0.0
      %2723 = vmatpush1.msra.mxu0 0.0
      %2724 = vmatprep.subr.mxu0 0.0
      %2725 = vmatpush1.msra.mxu0 0.0
      %2726 = vmatprep.subr.mxu0 0.0
      %2727 = vmatpush1.msra.mxu0 0.0
      %2728 = vmatprep.subr.mxu0 0.0
      %2729 = vmatpush1.msra.mxu0 0.0
      %2730 = vmatprep.subr.mxu0 0.0
      %2731 = vmatpush1.msra.mxu0 0.0
      %2732 = vmatprep.subr.mxu0 0.0
      %2733 = vmatpush1.msra.mxu0 0.0
      %2734 = vmatprep.subr.mxu0 0.0
      %2735 = vmatpush1.msra.mxu0 0.0
      %2736 = vmatprep.subr.mxu0 0.0
      %2737 = vmatpush1.msra.mxu0 0.0
      %2738 = vmatprep.subr.mxu0 0.0
      %2739 = vmatpush1.msra.mxu0 0.0
      %2740 = vmatprep.subr.mxu0 0.0
      %2741 = vmatpush1.msra.mxu0 0.0
      %2742 = vmatprep.subr.mxu0 0.0
      %2743 = vmatpush1.msra.mxu0 0.0
      %2744 = vmatprep.subr.mxu0 0.0
      %2745 = vmatpush1.msra.mxu0 0.0
      %2746 = vmatprep.subr.mxu0 0.0
      %2747 = vmatpush1.msra.mxu0 0.0
      %2748 = vmatprep.subr.mxu0 0.0
      %2749 = vmatpush1.msra.mxu0 0.0
      %2750 = vmatprep.subr.mxu0 0.0
      %2751 = vmatpush1.msra.mxu0 0.0
      %2752 = vmatprep.subr.mxu0 0.0
      %2753 = vmatpush1.msra.mxu0 0.0
      %2754 = vmatprep.subr.mxu0 0.0
      %2755 = vmatpush1.msra.mxu0 0.0
      %2756 = vmatprep.mubr.f32.mxu0 0.0
      %v2757 = vand.u32 %v1580, 4294901760
      %2758 = vmatmul.mubr.f32.gmra.mrb[0].mxu0 %v2757
      %v2759 = vpop.f32.mrb[0].mxu0
      %v2760 = vadd.f32 %v2537, %v2759
      %v2761 = vpop.f32.mrb[0].mxu0
      %v2762 = vadd.f32 %v2539, %v2761
      %2763 = vmatprep.mubr.f32.mxu0 0.0
      %v2764 = vand.u32 %v1583, 4294901760
      %2765 = vmatmul.mubr.f32.gmra.mrb[0].mxu0 %v2764
      %v2766 = vpop.f32.mrb[0].mxu0
      %v2767 = vadd.f32 %v2548, %v2766
      %v2768 = vpop.f32.mrb[0].mxu0
      %v2769 = vadd.f32 %v2550, %v2768
      %2770 = vdwg.mxu0
      %v2771 = vand.u32 %v1483, 4294901760
      %v2772 = vsub.f32 %v1483, %v2771
      %2773 = vmatprep.subr.mxu0 %v2772
      %v2774 = vand.u32 %v1482, 4294901760
      %v2775 = vsub.f32 %v1482, %v2774
      %2776 = vmatpush1.msra.mxu0 %v2775
      %v2777 = vand.u32 %v1490, 4294901760
      %v2778 = vsub.f32 %v1490, %v2777
      %2779 = vmatprep.subr.mxu0 %v2778
      %v2780 = vand.u32 %v1489, 4294901760
      %v2781 = vsub.f32 %v1489, %v2780
      %2782 = vmatpush1.msra.mxu0 %v2781
      %v2783 = vand.u32 %v1497, 4294901760
      %v2784 = vsub.f32 %v1497, %v2783
      %2785 = vmatprep.subr.mxu0 %v2784
      %v2786 = vand.u32 %v1496, 4294901760
      %v2787 = vsub.f32 %v1496, %v2786
      %2788 = vmatpush1.msra.mxu0 %v2787
      %v2789 = vand.u32 %v1504, 4294901760
      %v2790 = vsub.f32 %v1504, %v2789
      %2791 = vmatprep.subr.mxu0 %v2790
      %v2792 = vand.u32 %v1503, 4294901760
      %v2793 = vsub.f32 %v1503, %v2792
      %2794 = vmatpush1.msra.mxu0 %v2793
      %v2795 = vand.u32 %v1511, 4294901760
      %v2796 = vsub.f32 %v1511, %v2795
      %2797 = vmatprep.subr.mxu0 %v2796
      %v2798 = vand.u32 %v1510, 4294901760
      %v2799 = vsub.f32 %v1510, %v2798
      %2800 = vmatpush1.msra.mxu0 %v2799
      %v2801 = vand.u32 %v1518, 4294901760
      %v2802 = vsub.f32 %v1518, %v2801
      %2803 = vmatprep.subr.mxu0 %v2802
      %v2804 = vand.u32 %v1517, 4294901760
      %v2805 = vsub.f32 %v1517, %v2804
      %2806 = vmatpush1.msra.mxu0 %v2805
      %v2807 = vand.u32 %v1525, 4294901760
      %v2808 = vsub.f32 %v1525, %v2807
      %2809 = vmatprep.subr.mxu0 %v2808
      %v2810 = vand.u32 %v1524, 4294901760
      %v2811 = vsub.f32 %v1524, %v2810
      %2812 = vmatpush1.msra.mxu0 %v2811
      %v2813 = vand.u32 %v1532, 4294901760
      %v2814 = vsub.f32 %v1532, %v2813
      %2815 = vmatprep.subr.mxu0 %v2814
      %v2816 = vand.u32 %v1531, 4294901760
      %v2817 = vsub.f32 %v1531, %v2816
      %2818 = vmatpush1.msra.mxu0 %v2817
      %v2819 = vand.u32 %v1539, 4294901760
      %v2820 = vsub.f32 %v1539, %v2819
      %2821 = vmatprep.subr.mxu0 %v2820
      %v2822 = vand.u32 %v1538, 4294901760
      %v2823 = vsub.f32 %v1538, %v2822
      %2824 = vmatpush1.msra.mxu0 %v2823
      %v2825 = vand.u32 %v1546, 4294901760
      %v2826 = vsub.f32 %v1546, %v2825
      %2827 = vmatprep.subr.mxu0 %v2826
      %v2828 = vand.u32 %v1545, 4294901760
      %v2829 = vsub.f32 %v1545, %v2828
      %2830 = vmatpush1.msra.mxu0 %v2829
      %v2831 = vand.u32 %v1553, 4294901760
      %v2832 = vsub.f32 %v1553, %v2831
      %2833 = vmatprep.subr.mxu0 %v2832
      %v2834 = vand.u32 %v1552, 4294901760
      %v2835 = vsub.f32 %v1552, %v2834
      %2836 = vmatpush1.msra.mxu0 %v2835
      %v2837 = vand.u32 %v1560, 4294901760
      %v2838 = vsub.f32 %v1560, %v2837
      %2839 = vmatprep.subr.mxu0 %v2838
      %v2840 = vand.u32 %v1559, 4294901760
      %v2841 = vsub.f32 %v1559, %v2840
      %2842 = vmatpush1.msra.mxu0 %v2841
      %v2843 = vand.u32 %v1567, 4294901760
      %v2844 = vsub.f32 %v1567, %v2843
      %2845 = vmatprep.subr.mxu0 %v2844
      %v2846 = vand.u32 %v1566, 4294901760
      %v2847 = vsub.f32 %v1566, %v2846
      %2848 = vmatpush1.msra.mxu0 %v2847
      %v2849 = vand.u32 %v1574, 4294901760
      %v2850 = vsub.f32 %v1574, %v2849
      %2851 = vmatprep.subr.mxu0 %v2850
      %v2852 = vand.u32 %v1573, 4294901760
      %v2853 = vsub.f32 %v1573, %v2852
      %2854 = vmatpush1.msra.mxu0 %v2853
      %2855 = vmatprep.subr.mxu0 0.0
      %2856 = vmatpush1.msra.mxu0 0.0
      %2857 = vmatprep.subr.mxu0 0.0
      %2858 = vmatpush1.msra.mxu0 0.0
      %2859 = vmatprep.subr.mxu0 0.0
      %2860 = vmatpush1.msra.mxu0 0.0
      %2861 = vmatprep.subr.mxu0 0.0
      %2862 = vmatpush1.msra.mxu0 0.0
      %2863 = vmatprep.subr.mxu0 0.0
      %2864 = vmatpush1.msra.mxu0 0.0
      %2865 = vmatprep.subr.mxu0 0.0
      %2866 = vmatpush1.msra.mxu0 0.0
      %2867 = vmatprep.subr.mxu0 0.0
      %2868 = vmatpush1.msra.mxu0 0.0
      %2869 = vmatprep.subr.mxu0 0.0
      %2870 = vmatpush1.msra.mxu0 0.0
      %2871 = vmatprep.subr.mxu0 0.0
      %2872 = vmatpush1.msra.mxu0 0.0
      %2873 = vmatprep.subr.mxu0 0.0
      %2874 = vmatpush1.msra.mxu0 0.0
      %2875 = vmatprep.subr.mxu0 0.0
      %2876 = vmatpush1.msra.mxu0 0.0
      %2877 = vmatprep.subr.mxu0 0.0
      %2878 = vmatpush1.msra.mxu0 0.0
      %2879 = vmatprep.subr.mxu0 0.0
      %2880 = vmatpush1.msra.mxu0 0.0
      %2881 = vmatprep.subr.mxu0 0.0
      %2882 = vmatpush1.msra.mxu0 0.0
      %2883 = vmatprep.subr.mxu0 0.0
      %2884 = vmatpush1.msra.mxu0 0.0
      %2885 = vmatprep.subr.mxu0 0.0
      %2886 = vmatpush1.msra.mxu0 0.0
      %2887 = vmatprep.subr.mxu0 0.0
      %2888 = vmatpush1.msra.mxu0 0.0
      %2889 = vmatprep.subr.mxu0 0.0
      %2890 = vmatpush1.msra.mxu0 0.0
      %2891 = vmatprep.mubr.f32.mxu0 0.0
      %v2892 = vand.u32 %v1580, 4294901760
      %v2893 = vsub.f32 %v1580, %v2892
      %2894 = vmatmul.mubr.f32.gmra.mrb[0].mxu0 %v2893
      %v2895 = vpop.f32.mrb[0].mxu0
      %v2896 = vadd.f32 %v2760, %v2895
      %v2897 = vpop.f32.mrb[0].mxu0
      %v2898 = vadd.f32 %v2762, %v2897
      %2899 = vmatprep.mubr.f32.mxu0 0.0
      %v2900 = vand.u32 %v1583, 4294901760
      %v2901 = vsub.f32 %v1583, %v2900
      %2902 = vmatmul.mubr.f32.gmra.mrb[0].mxu0 %v2901
      %v2903 = vpop.f32.mrb[0].mxu0
      %v2904 = vadd.f32 %v2767, %v2903
      %v2905 = vpop.f32.mrb[0].mxu0
      %v2906 = vadd.f32 %v2769, %v2905
      %2907 = vdwg.mxu0
      %v2908 = vand.u32 %v1483, 4294901760
      %2909 = vmatprep.subr.mxu0 %v2908
      %v2910 = vand.u32 %v1482, 4294901760
      %2911 = vmatpush1.msra.mxu0 %v2910
      %v2912 = vand.u32 %v1490, 4294901760
      %2913 = vmatprep.subr.mxu0 %v2912
      %v2914 = vand.u32 %v1489, 4294901760
      %2915 = vmatpush1.msra.mxu0 %v2914
      %v2916 = vand.u32 %v1497, 4294901760
      %2917 = vmatprep.subr.mxu0 %v2916
      %v2918 = vand.u32 %v1496, 4294901760
      %2919 = vmatpush1.msra.mxu0 %v2918
      %v2920 = vand.u32 %v1504, 4294901760
      %2921 = vmatprep.subr.mxu0 %v2920
      %v2922 = vand.u32 %v1503, 4294901760
      %2923 = vmatpush1.msra.mxu0 %v2922
      %v2924 = vand.u32 %v1511, 4294901760
      %2925 = vmatprep.subr.mxu0 %v2924
      %v2926 = vand.u32 %v1510, 4294901760
      %2927 = vmatpush1.msra.mxu0 %v2926
      %v2928 = vand.u32 %v1518, 4294901760
      %2929 = vmatprep.subr.mxu0 %v2928
      %v2930 = vand.u32 %v1517, 4294901760
      %2931 = vmatpush1.msra.mxu0 %v2930
      %v2932 = vand.u32 %v1525, 4294901760
      %2933 = vmatprep.subr.mxu0 %v2932
      %v2934 = vand.u32 %v1524, 4294901760
      %2935 = vmatpush1.msra.mxu0 %v2934
      %v2936 = vand.u32 %v1532, 4294901760
      %2937 = vmatprep.subr.mxu0 %v2936
      %v2938 = vand.u32 %v1531, 4294901760
      %2939 = vmatpush1.msra.mxu0 %v2938
      %v2940 = vand.u32 %v1539, 4294901760
      %2941 = vmatprep.subr.mxu0 %v2940
      %v2942 = vand.u32 %v1538, 4294901760
      %2943 = vmatpush1.msra.mxu0 %v2942
      %v2944 = vand.u32 %v1546, 4294901760
      %2945 = vmatprep.subr.mxu0 %v2944
      %v2946 = vand.u32 %v1545, 4294901760
      %2947 = vmatpush1.msra.mxu0 %v2946
      %v2948 = vand.u32 %v1553, 4294901760
      %2949 = vmatprep.subr.mxu0 %v2948
      %v2950 = vand.u32 %v1552, 4294901760
      %2951 = vmatpush1.msra.mxu0 %v2950
      %v2952 = vand.u32 %v1560, 4294901760
      %2953 = vmatprep.subr.mxu0 %v2952
      %v2954 = vand.u32 %v1559, 4294901760
      %2955 = vmatpush1.msra.mxu0 %v2954
      %v2956 = vand.u32 %v1567, 4294901760
      %2957 = vmatprep.subr.mxu0 %v2956
      %v2958 = vand.u32 %v1566, 4294901760
      %2959 = vmatpush1.msra.mxu0 %v2958
      %v2960 = vand.u32 %v1574, 4294901760
      %2961 = vmatprep.subr.mxu0 %v2960
      %v2962 = vand.u32 %v1573, 4294901760
      %2963 = vmatpush1.msra.mxu0 %v2962
      %2964 = vmatprep.subr.mxu0 0.0
      %2965 = vmatpush1.msra.mxu0 0.0
      %2966 = vmatprep.subr.mxu0 0.0
      %2967 = vmatpush1.msra.mxu0 0.0
      %2968 = vmatprep.subr.mxu0 0.0
      %2969 = vmatpush1.msra.mxu0 0.0
      %2970 = vmatprep.subr.mxu0 0.0
      %2971 = vmatpush1.msra.mxu0 0.0
      %2972 = vmatprep.subr.mxu0 0.0
      %2973 = vmatpush1.msra.mxu0 0.0
      %2974 = vmatprep.subr.mxu0 0.0
      %2975 = vmatpush1.msra.mxu0 0.0
      %2976 = vmatprep.subr.mxu0 0.0
      %2977 = vmatpush1.msra.mxu0 0.0
      %2978 = vmatprep.subr.mxu0 0.0
      %2979 = vmatpush1.msra.mxu0 0.0
      %2980 = vmatprep.subr.mxu0 0.0
      %2981 = vmatpush1.msra.mxu0 0.0
      %2982 = vmatprep.subr.mxu0 0.0
      %2983 = vmatpush1.msra.mxu0 0.0
      %2984 = vmatprep.subr.mxu0 0.0
      %2985 = vmatpush1.msra.mxu0 0.0
      %2986 = vmatprep.subr.mxu0 0.0
      %2987 = vmatpush1.msra.mxu0 0.0
      %2988 = vmatprep.subr.mxu0 0.0
      %2989 = vmatpush1.msra.mxu0 0.0
      %2990 = vmatprep.subr.mxu0 0.0
      %2991 = vmatpush1.msra.mxu0 0.0
      %2992 = vmatprep.subr.mxu0 0.0
      %2993 = vmatpush1.msra.mxu0 0.0
      %2994 = vmatprep.subr.mxu0 0.0
      %2995 = vmatpush1.msra.mxu0 0.0
      %2996 = vmatprep.subr.mxu0 0.0
      %2997 = vmatpush1.msra.mxu0 0.0
      %2998 = vmatprep.subr.mxu0 0.0
      %2999 = vmatpush1.msra.mxu0 0.0
      %3000 = vmatprep.mubr.f32.mxu0 0.0
      %v3001 = vand.u32 %v1580, 4294901760
      %v3002 = vsub.f32 %v1580, %v3001
      %v3003 = vand.u32 %v3002, 4294901760
      %3004 = vmatmul.mubr.f32.gmra.mrb[0].mxu0 %v3003
      %v3005 = vpop.f32.mrb[0].mxu0
      %v3006 = vadd.f32 %v2896, %v3005
      %v3007 = vpop.f32.mrb[0].mxu0
      %v3008 = vadd.f32 %v2898, %v3007
      %3009 = vmatprep.mubr.f32.mxu0 0.0
      %v3010 = vand.u32 %v1583, 4294901760
      %v3011 = vsub.f32 %v1583, %v3010
      %v3012 = vand.u32 %v3011, 4294901760
      %3013 = vmatmul.mubr.f32.gmra.mrb[0].mxu0 %v3012
      %v3014 = vpop.f32.mrb[0].mxu0
      %v3015 = vadd.f32 %v2904, %v3014
      %v3016 = vpop.f32.mrb[0].mxu0
      %v3017 = vadd.f32 %v2906, %v3016
      %3018 = vdwg.mxu0
      %v3019 = vand.u32 %v1483, 4294901760
      %v3020 = vsub.f32 %v1483, %v3019
      %v3021 = vand.u32 %v3020, 4294901760
      %3022 = vmatprep.subr.mxu0 %v3021
      %v3023 = vand.u32 %v1482, 4294901760
      %v3024 = vsub.f32 %v1482, %v3023
      %v3025 = vand.u32 %v3024, 4294901760
      %3026 = vmatpush1.msra.mxu0 %v3025
      %v3027 = vand.u32 %v1490, 4294901760
      %v3028 = vsub.f32 %v1490, %v3027
      %v3029 = vand.u32 %v3028, 4294901760
      %3030 = vmatprep.subr.mxu0 %v3029
      %v3031 = vand.u32 %v1489, 4294901760
      %v3032 = vsub.f32 %v1489, %v3031
      %v3033 = vand.u32 %v3032, 4294901760
      %3034 = vmatpush1.msra.mxu0 %v3033
      %v3035 = vand.u32 %v1497, 4294901760
      %v3036 = vsub.f32 %v1497, %v3035
      %v3037 = vand.u32 %v3036, 4294901760
      %3038 = vmatprep.subr.mxu0 %v3037
      %v3039 = vand.u32 %v1496, 4294901760
      %v3040 = vsub.f32 %v1496, %v3039
      %v3041 = vand.u32 %v3040, 4294901760
      %3042 = vmatpush1.msra.mxu0 %v3041
      %v3043 = vand.u32 %v1504, 4294901760
      %v3044 = vsub.f32 %v1504, %v3043
      %v3045 = vand.u32 %v3044, 4294901760
      %3046 = vmatprep.subr.mxu0 %v3045
      %v3047 = vand.u32 %v1503, 4294901760
      %v3048 = vsub.f32 %v1503, %v3047
      %v3049 = vand.u32 %v3048, 4294901760
      %3050 = vmatpush1.msra.mxu0 %v3049
      %v3051 = vand.u32 %v1511, 4294901760
      %v3052 = vsub.f32 %v1511, %v3051
      %v3053 = vand.u32 %v3052, 4294901760
      %3054 = vmatprep.subr.mxu0 %v3053
      %v3055 = vand.u32 %v1510, 4294901760
      %v3056 = vsub.f32 %v1510, %v3055
      %v3057 = vand.u32 %v3056, 4294901760
      %3058 = vmatpush1.msra.mxu0 %v3057
      %v3059 = vand.u32 %v1518, 4294901760
      %v3060 = vsub.f32 %v1518, %v3059
      %v3061 = vand.u32 %v3060, 4294901760
      %3062 = vmatprep.subr.mxu0 %v3061
      %v3063 = vand.u32 %v1517, 4294901760
      %v3064 = vsub.f32 %v1517, %v3063
      %v3065 = vand.u32 %v3064, 4294901760
      %3066 = vmatpush1.msra.mxu0 %v3065
      %v3067 = vand.u32 %v1525, 4294901760
      %v3068 = vsub.f32 %v1525, %v3067
      %v3069 = vand.u32 %v3068, 4294901760
      %3070 = vmatprep.subr.mxu0 %v3069
      %v3071 = vand.u32 %v1524, 4294901760
      %v3072 = vsub.f32 %v1524, %v3071
      %v3073 = vand.u32 %v3072, 4294901760
      %3074 = vmatpush1.msra.mxu0 %v3073
      %v3075 = vand.u32 %v1532, 4294901760
      %v3076 = vsub.f32 %v1532, %v3075
      %v3077 = vand.u32 %v3076, 4294901760
      %3078 = vmatprep.subr.mxu0 %v3077
      %v3079 = vand.u32 %v1531, 4294901760
      %v3080 = vsub.f32 %v1531, %v3079
      %v3081 = vand.u32 %v3080, 4294901760
      %3082 = vmatpush1.msra.mxu0 %v3081
      %v3083 = vand.u32 %v1539, 4294901760
      %v3084 = vsub.f32 %v1539, %v3083
      %v3085 = vand.u32 %v3084, 4294901760
      %3086 = vmatprep.subr.mxu0 %v3085
      %v3087 = vand.u32 %v1538, 4294901760
      %v3088 = vsub.f32 %v1538, %v3087
      %v3089 = vand.u32 %v3088, 4294901760
      %3090 = vmatpush1.msra.mxu0 %v3089
      %v3091 = vand.u32 %v1546, 4294901760
      %v3092 = vsub.f32 %v1546, %v3091
      %v3093 = vand.u32 %v3092, 4294901760
      %3094 = vmatprep.subr.mxu0 %v3093
      %v3095 = vand.u32 %v1545, 4294901760
      %v3096 = vsub.f32 %v1545, %v3095
      %v3097 = vand.u32 %v3096, 4294901760
      %3098 = vmatpush1.msra.mxu0 %v3097
      %v3099 = vand.u32 %v1553, 4294901760
      %v3100 = vsub.f32 %v1553, %v3099
      %v3101 = vand.u32 %v3100, 4294901760
      %3102 = vmatprep.subr.mxu0 %v3101
      %v3103 = vand.u32 %v1552, 4294901760
      %v3104 = vsub.f32 %v1552, %v3103
      %v3105 = vand.u32 %v3104, 4294901760
      %3106 = vmatpush1.msra.mxu0 %v3105
      %v3107 = vand.u32 %v1560, 4294901760
      %v3108 = vsub.f32 %v1560, %v3107
      %v3109 = vand.u32 %v3108, 4294901760
      %3110 = vmatprep.subr.mxu0 %v3109
      %v3111 = vand.u32 %v1559, 4294901760
      %v3112 = vsub.f32 %v1559, %v3111
      %v3113 = vand.u32 %v3112, 4294901760
      %3114 = vmatpush1.msra.mxu0 %v3113
      %v3115 = vand.u32 %v1567, 4294901760
      %v3116 = vsub.f32 %v1567, %v3115
      %v3117 = vand.u32 %v3116, 4294901760
      %3118 = vmatprep.subr.mxu0 %v3117
      %v3119 = vand.u32 %v1566, 4294901760
      %v3120 = vsub.f32 %v1566, %v3119
      %v3121 = vand.u32 %v3120, 4294901760
      %3122 = vmatpush1.msra.mxu0 %v3121
      %v3123 = vand.u32 %v1574, 4294901760
      %v3124 = vsub.f32 %v1574, %v3123
      %v3125 = vand.u32 %v3124, 4294901760
      %3126 = vmatprep.subr.mxu0 %v3125
      %v3127 = vand.u32 %v1573, 4294901760
      %v3128 = vsub.f32 %v1573, %v3127
      %v3129 = vand.u32 %v3128, 4294901760
      %3130 = vmatpush1.msra.mxu0 %v3129
      %3131 = vmatprep.subr.mxu0 0.0
      %3132 = vmatpush1.msra.mxu0 0.0
      %3133 = vmatprep.subr.mxu0 0.0
      %3134 = vmatpush1.msra.mxu0 0.0
      %3135 = vmatprep.subr.mxu0 0.0
      %3136 = vmatpush1.msra.mxu0 0.0
      %3137 = vmatprep.subr.mxu0 0.0
      %3138 = vmatpush1.msra.mxu0 0.0
      %3139 = vmatprep.subr.mxu0 0.0
      %3140 = vmatpush1.msra.mxu0 0.0
      %3141 = vmatprep.subr.mxu0 0.0
      %3142 = vmatpush1.msra.mxu0 0.0
      %3143 = vmatprep.subr.mxu0 0.0
      %3144 = vmatpush1.msra.mxu0 0.0
      %3145 = vmatprep.subr.mxu0 0.0
      %3146 = vmatpush1.msra.mxu0 0.0
      %3147 = vmatprep.subr.mxu0 0.0
      %3148 = vmatpush1.msra.mxu0 0.0
      %3149 = vmatprep.subr.mxu0 0.0
      %3150 = vmatpush1.msra.mxu0 0.0
      %3151 = vmatprep.subr.mxu0 0.0
      %3152 = vmatpush1.msra.mxu0 0.0
      %3153 = vmatprep.subr.mxu0 0.0
      %3154 = vmatpush1.msra.mxu0 0.0
      %3155 = vmatprep.subr.mxu0 0.0
      %3156 = vmatpush1.msra.mxu0 0.0
      %3157 = vmatprep.subr.mxu0 0.0
      %3158 = vmatpush1.msra.mxu0 0.0
      %3159 = vmatprep.subr.mxu0 0.0
      %3160 = vmatpush1.msra.mxu0 0.0
      %3161 = vmatprep.subr.mxu0 0.0
      %3162 = vmatpush1.msra.mxu0 0.0
      %3163 = vmatprep.subr.mxu0 0.0
      %3164 = vmatpush1.msra.mxu0 0.0
      %3165 = vmatprep.subr.mxu0 0.0
      %3166 = vmatpush1.msra.mxu0 0.0
      %3167 = vmatprep.mubr.f32.mxu0 0.0
      %v3168 = vand.u32 %v1580, 4294901760
      %3169 = vmatmul.mubr.f32.gmra.mrb[0].mxu0 %v3168
      %v3170 = vpop.f32.mrb[0].mxu0
      %v3171 = vadd.f32 %v3006, %v3170
      %v3172 = vpop.f32.mrb[0].mxu0
      %v3173 = vadd.f32 %v3008, %v3172
      %3174 = vmatprep.mubr.f32.mxu0 0.0
      %v3175 = vand.u32 %v1583, 4294901760
      %3176 = vmatmul.mubr.f32.gmra.mrb[0].mxu0 %v3175
      %v3177 = vpop.f32.mrb[0].mxu0
      %v3178 = vadd.f32 %v3015, %v3177
      %v3179 = vpop.f32.mrb[0].mxu0
      %v3180 = vadd.f32 %v3017, %v3179
      %3181 = vdwg.mxu0
      %v3182 = vand.u32 %v1483, 4294901760
      %3183 = vmatprep.subr.mxu0 %v3182
      %v3184 = vand.u32 %v1482, 4294901760
      %3185 = vmatpush1.msra.mxu0 %v3184
      %v3186 = vand.u32 %v1490, 4294901760
      %3187 = vmatprep.subr.mxu0 %v3186
      %v3188 = vand.u32 %v1489, 4294901760
      %3189 = vmatpush1.msra.mxu0 %v3188
      %v3190 = vand.u32 %v1497, 4294901760
      %3191 = vmatprep.subr.mxu0 %v3190
      %v3192 = vand.u32 %v1496, 4294901760
      %3193 = vmatpush1.msra.mxu0 %v3192
      %v3194 = vand.u32 %v1504, 4294901760
      %3195 = vmatprep.subr.mxu0 %v3194
      %v3196 = vand.u32 %v1503, 4294901760
      %3197 = vmatpush1.msra.mxu0 %v3196
      %v3198 = vand.u32 %v1511, 4294901760
      %3199 = vmatprep.subr.mxu0 %v3198
      %v3200 = vand.u32 %v1510, 4294901760
      %3201 = vmatpush1.msra.mxu0 %v3200
      %v3202 = vand.u32 %v1518, 4294901760
      %3203 = vmatprep.subr.mxu0 %v3202
      %v3204 = vand.u32 %v1517, 4294901760
      %3205 = vmatpush1.msra.mxu0 %v3204
      %v3206 = vand.u32 %v1525, 4294901760
      %3207 = vmatprep.subr.mxu0 %v3206
      %v3208 = vand.u32 %v1524, 4294901760
      %3209 = vmatpush1.msra.mxu0 %v3208
      %v3210 = vand.u32 %v1532, 4294901760
      %3211 = vmatprep.subr.mxu0 %v3210
      %v3212 = vand.u32 %v1531, 4294901760
      %3213 = vmatpush1.msra.mxu0 %v3212
      %v3214 = vand.u32 %v1539, 4294901760
      %3215 = vmatprep.subr.mxu0 %v3214
      %v3216 = vand.u32 %v1538, 4294901760
      %3217 = vmatpush1.msra.mxu0 %v3216
      %v3218 = vand.u32 %v1546, 4294901760
      %3219 = vmatprep.subr.mxu0 %v3218
      %v3220 = vand.u32 %v1545, 4294901760
      %3221 = vmatpush1.msra.mxu0 %v3220
      %v3222 = vand.u32 %v1553, 4294901760
      %3223 = vmatprep.subr.mxu0 %v3222
      %v3224 = vand.u32 %v1552, 4294901760
      %3225 = vmatpush1.msra.mxu0 %v3224
      %v3226 = vand.u32 %v1560, 4294901760
      %3227 = vmatprep.subr.mxu0 %v3226
      %v3228 = vand.u32 %v1559, 4294901760
      %3229 = vmatpush1.msra.mxu0 %v3228
      %v3230 = vand.u32 %v1567, 4294901760
      %3231 = vmatprep.subr.mxu0 %v3230
      %v3232 = vand.u32 %v1566, 4294901760
      %3233 = vmatpush1.msra.mxu0 %v3232
      %v3234 = vand.u32 %v1574, 4294901760
      %3235 = vmatprep.subr.mxu0 %v3234
      %v3236 = vand.u32 %v1573, 4294901760
      %3237 = vmatpush1.msra.mxu0 %v3236
      %3238 = vmatprep.subr.mxu0 0.0
      %3239 = vmatpush1.msra.mxu0 0.0
      %3240 = vmatprep.subr.mxu0 0.0
      %3241 = vmatpush1.msra.mxu0 0.0
      %3242 = vmatprep.subr.mxu0 0.0
      %3243 = vmatpush1.msra.mxu0 0.0
      %3244 = vmatprep.subr.mxu0 0.0
      %3245 = vmatpush1.msra.mxu0 0.0
      %3246 = vmatprep.subr.mxu0 0.0
      %3247 = vmatpush1.msra.mxu0 0.0
      %3248 = vmatprep.subr.mxu0 0.0
      %3249 = vmatpush1.msra.mxu0 0.0
      %3250 = vmatprep.subr.mxu0 0.0
      %3251 = vmatpush1.msra.mxu0 0.0
      %3252 = vmatprep.subr.mxu0 0.0
      %3253 = vmatpush1.msra.mxu0 0.0
      %3254 = vmatprep.subr.mxu0 0.0
      %3255 = vmatpush1.msra.mxu0 0.0
      %3256 = vmatprep.subr.mxu0 0.0
      %3257 = vmatpush1.msra.mxu0 0.0
      %3258 = vmatprep.subr.mxu0 0.0
      %3259 = vmatpush1.msra.mxu0 0.0
      %3260 = vmatprep.subr.mxu0 0.0
      %3261 = vmatpush1.msra.mxu0 0.0
      %3262 = vmatprep.subr.mxu0 0.0
      %3263 = vmatpush1.msra.mxu0 0.0
      %3264 = vmatprep.subr.mxu0 0.0
      %3265 = vmatpush1.msra.mxu0 0.0
      %3266 = vmatprep.subr.mxu0 0.0
      %3267 = vmatpush1.msra.mxu0 0.0
      %3268 = vmatprep.subr.mxu0 0.0
      %3269 = vmatpush1.msra.mxu0 0.0
      %3270 = vmatprep.subr.mxu0 0.0
      %3271 = vmatpush1.msra.mxu0 0.0
      %3272 = vmatprep.subr.mxu0 0.0
      %3273 = vmatpush1.msra.mxu0 0.0
      %3274 = vmatprep.mubr.f32.mxu0 0.0
      %v3275 = vand.u32 %v1580, 4294901760
      %3276 = vmatmul.mubr.f32.gmra.mrb[0].mxu0 %v3275
      %v3277 = vpop.f32.mrb[0].mxu0
      %v3278 = vadd.f32 %v3171, %v3277
      %v3279 = vpop.f32.mrb[0].mxu0
      %v3280 = vadd.f32 %v3173, %v3279
      %3281 = vmatprep.mubr.f32.mxu0 0.0
      %v3282 = vand.u32 %v1583, 4294901760
      %3283 = vmatmul.mubr.f32.gmra.mrb[0].mxu0 %v3282
      %v3284 = vpop.f32.mrb[0].mxu0
      %v3285 = vadd.f32 %v3178, %v3284
      %v3286 = vpop.f32.mrb[0].mxu0
      %v3287 = vadd.f32 %v3180, %v3286
      %3288 = vdwg.mxu0
      %v3289 = vand.u32 %v1485, 4294901760
      %3290 = vmatprep.subr.mxu0 %v3289
      %v3291 = vand.u32 %v1484, 4294901760
      %3292 = vmatpush1.msra.mxu0 %v3291
      %v3293 = vand.u32 %v1492, 4294901760
      %3294 = vmatprep.subr.mxu0 %v3293
      %v3295 = vand.u32 %v1491, 4294901760
      %3296 = vmatpush1.msra.mxu0 %v3295
      %v3297 = vand.u32 %v1499, 4294901760
      %3298 = vmatprep.subr.mxu0 %v3297
      %v3299 = vand.u32 %v1498, 4294901760
      %3300 = vmatpush1.msra.mxu0 %v3299
      %v3301 = vand.u32 %v1506, 4294901760
      %3302 = vmatprep.subr.mxu0 %v3301
      %v3303 = vand.u32 %v1505, 4294901760
      %3304 = vmatpush1.msra.mxu0 %v3303
      %v3305 = vand.u32 %v1513, 4294901760
      %3306 = vmatprep.subr.mxu0 %v3305
      %v3307 = vand.u32 %v1512, 4294901760
      %3308 = vmatpush1.msra.mxu0 %v3307
      %v3309 = vand.u32 %v1520, 4294901760
      %3310 = vmatprep.subr.mxu0 %v3309
      %v3311 = vand.u32 %v1519, 4294901760
      %3312 = vmatpush1.msra.mxu0 %v3311
      %v3313 = vand.u32 %v1527, 4294901760
      %3314 = vmatprep.subr.mxu0 %v3313
      %v3315 = vand.u32 %v1526, 4294901760
      %3316 = vmatpush1.msra.mxu0 %v3315
      %v3317 = vand.u32 %v1534, 4294901760
      %3318 = vmatprep.subr.mxu0 %v3317
      %v3319 = vand.u32 %v1533, 4294901760
      %3320 = vmatpush1.msra.mxu0 %v3319
      %v3321 = vand.u32 %v1541, 4294901760
      %3322 = vmatprep.subr.mxu0 %v3321
      %v3323 = vand.u32 %v1540, 4294901760
      %3324 = vmatpush1.msra.mxu0 %v3323
      %v3325 = vand.u32 %v1548, 4294901760
      %3326 = vmatprep.subr.mxu0 %v3325
      %v3327 = vand.u32 %v1547, 4294901760
      %3328 = vmatpush1.msra.mxu0 %v3327
      %v3329 = vand.u32 %v1555, 4294901760
      %3330 = vmatprep.subr.mxu0 %v3329
      %v3331 = vand.u32 %v1554, 4294901760
      %3332 = vmatpush1.msra.mxu0 %v3331
      %v3333 = vand.u32 %v1562, 4294901760
      %3334 = vmatprep.subr.mxu0 %v3333
      %v3335 = vand.u32 %v1561, 4294901760
      %3336 = vmatpush1.msra.mxu0 %v3335
      %v3337 = vand.u32 %v1569, 4294901760
      %3338 = vmatprep.subr.mxu0 %v3337
      %v3339 = vand.u32 %v1568, 4294901760
      %3340 = vmatpush1.msra.mxu0 %v3339
      %v3341 = vand.u32 %v1576, 4294901760
      %3342 = vmatprep.subr.mxu0 %v3341
      %v3343 = vand.u32 %v1575, 4294901760
      %3344 = vmatpush1.msra.mxu0 %v3343
      %3345 = vmatprep.subr.mxu0 0.0
      %3346 = vmatpush1.msra.mxu0 0.0
      %3347 = vmatprep.subr.mxu0 0.0
      %3348 = vmatpush1.msra.mxu0 0.0
      %3349 = vmatprep.subr.mxu0 0.0
      %3350 = vmatpush1.msra.mxu0 0.0
      %3351 = vmatprep.subr.mxu0 0.0
      %3352 = vmatpush1.msra.mxu0 0.0
      %3353 = vmatprep.subr.mxu0 0.0
      %3354 = vmatpush1.msra.mxu0 0.0
      %3355 = vmatprep.subr.mxu0 0.0
      %3356 = vmatpush1.msra.mxu0 0.0
      %3357 = vmatprep.subr.mxu0 0.0
      %3358 = vmatpush1.msra.mxu0 0.0
      %3359 = vmatprep.subr.mxu0 0.0
      %3360 = vmatpush1.msra.mxu0 0.0
      %3361 = vmatprep.subr.mxu0 0.0
      %3362 = vmatpush1.msra.mxu0 0.0
      %3363 = vmatprep.subr.mxu0 0.0
      %3364 = vmatpush1.msra.mxu0 0.0
      %3365 = vmatprep.subr.mxu0 0.0
      %3366 = vmatpush1.msra.mxu0 0.0
      %3367 = vmatprep.subr.mxu0 0.0
      %3368 = vmatpush1.msra.mxu0 0.0
      %3369 = vmatprep.subr.mxu0 0.0
      %3370 = vmatpush1.msra.mxu0 0.0
      %3371 = vmatprep.subr.mxu0 0.0
      %3372 = vmatpush1.msra.mxu0 0.0
      %3373 = vmatprep.subr.mxu0 0.0
      %3374 = vmatpush1.msra.mxu0 0.0
      %3375 = vmatprep.subr.mxu0 0.0
      %3376 = vmatpush1.msra.mxu0 0.0
      %3377 = vmatprep.subr.mxu0 0.0
      %3378 = vmatpush1.msra.mxu0 0.0
      %3379 = vmatprep.subr.mxu0 0.0
      %3380 = vmatpush1.msra.mxu0 0.0
      %3381 = vmatprep.mubr.f32.mxu0 0.0
      %v3382 = vand.u32 %v1580, 4294901760
      %v3383 = vsub.f32 %v1580, %v3382
      %v3384 = vand.u32 %v3383, 4294901760
      %v3385 = vsub.f32 %v3383, %v3384
      %v3386 = vand.u32 %v3385, 4294901760
      %3387 = vmatmul.mubr.f32.gmra.mrb[0].mxu0 %v3386
      %v3388 = vpop.f32.mrb[0].mxu0
      %v3389 = vadd.f32 0.0, %v3388
      %v3390 = vpop.f32.mrb[0].mxu0
      %v3391 = vadd.f32 0.0, %v3390
      %3392 = vmatprep.mubr.f32.mxu0 0.0
      %v3393 = vand.u32 %v1583, 4294901760
      %v3394 = vsub.f32 %v1583, %v3393
      %v3395 = vand.u32 %v3394, 4294901760
      %v3396 = vsub.f32 %v3394, %v3395
      %v3397 = vand.u32 %v3396, 4294901760
      %3398 = vmatmul.mubr.f32.gmra.mrb[0].mxu0 %v3397
      %v3399 = vpop.f32.mrb[0].mxu0
      %v3400 = vadd.f32 0.0, %v3399
      %v3401 = vpop.f32.mrb[0].mxu0
      %v3402 = vadd.f32 0.0, %v3401
      %3403 = vdwg.mxu0
      %v3404 = vand.u32 %v1485, 4294901760
      %v3405 = vsub.f32 %v1485, %v3404
      %v3406 = vand.u32 %v3405, 4294901760
      %v3407 = vsub.f32 %v3405, %v3406
      %v3408 = vand.u32 %v3407, 4294901760
      %3409 = vmatprep.subr.mxu0 %v3408
      %v3410 = vand.u32 %v1484, 4294901760
      %v3411 = vsub.f32 %v1484, %v3410
      %v3412 = vand.u32 %v3411, 4294901760
      %v3413 = vsub.f32 %v3411, %v3412
      %v3414 = vand.u32 %v3413, 4294901760
      %3415 = vmatpush1.msra.mxu0 %v3414
      %v3416 = vand.u32 %v1492, 4294901760
      %v3417 = vsub.f32 %v1492, %v3416
      %v3418 = vand.u32 %v3417, 4294901760
      %v3419 = vsub.f32 %v3417, %v3418
      %v3420 = vand.u32 %v3419, 4294901760
      %3421 = vmatprep.subr.mxu0 %v3420
      %v3422 = vand.u32 %v1491, 4294901760
      %v3423 = vsub.f32 %v1491, %v3422
      %v3424 = vand.u32 %v3423, 4294901760
      %v3425 = vsub.f32 %v3423, %v3424
      %v3426 = vand.u32 %v3425, 4294901760
      %3427 = vmatpush1.msra.mxu0 %v3426
      %v3428 = vand.u32 %v1499, 4294901760
      %v3429 = vsub.f32 %v1499, %v3428
      %v3430 = vand.u32 %v3429, 4294901760
      %v3431 = vsub.f32 %v3429, %v3430
      %v3432 = vand.u32 %v3431, 4294901760
      %3433 = vmatprep.subr.mxu0 %v3432
      %v3434 = vand.u32 %v1498, 4294901760
      %v3435 = vsub.f32 %v1498, %v3434
      %v3436 = vand.u32 %v3435, 4294901760
      %v3437 = vsub.f32 %v3435, %v3436
      %v3438 = vand.u32 %v3437, 4294901760
      %3439 = vmatpush1.msra.mxu0 %v3438
      %v3440 = vand.u32 %v1506, 4294901760
      %v3441 = vsub.f32 %v1506, %v3440
      %v3442 = vand.u32 %v3441, 4294901760
      %v3443 = vsub.f32 %v3441, %v3442
      %v3444 = vand.u32 %v3443, 4294901760
      %3445 = vmatprep.subr.mxu0 %v3444
      %v3446 = vand.u32 %v1505, 4294901760
      %v3447 = vsub.f32 %v1505, %v3446
      %v3448 = vand.u32 %v3447, 4294901760
      %v3449 = vsub.f32 %v3447, %v3448
      %v3450 = vand.u32 %v3449, 4294901760
      %3451 = vmatpush1.msra.mxu0 %v3450
      %v3452 = vand.u32 %v1513, 4294901760
      %v3453 = vsub.f32 %v1513, %v3452
      %v3454 = vand.u32 %v3453, 4294901760
      %v3455 = vsub.f32 %v3453, %v3454
      %v3456 = vand.u32 %v3455, 4294901760
      %3457 = vmatprep.subr.mxu0 %v3456
      %v3458 = vand.u32 %v1512, 4294901760
      %v3459 = vsub.f32 %v1512, %v3458
      %v3460 = vand.u32 %v3459, 4294901760
      %v3461 = vsub.f32 %v3459, %v3460
      %v3462 = vand.u32 %v3461, 4294901760
      %3463 = vmatpush1.msra.mxu0 %v3462
      %v3464 = vand.u32 %v1520, 4294901760
      %v3465 = vsub.f32 %v1520, %v3464
      %v3466 = vand.u32 %v3465, 4294901760
      %v3467 = vsub.f32 %v3465, %v3466
      %v3468 = vand.u32 %v3467, 4294901760
      %3469 = vmatprep.subr.mxu0 %v3468
      %v3470 = vand.u32 %v1519, 4294901760
      %v3471 = vsub.f32 %v1519, %v3470
      %v3472 = vand.u32 %v3471, 4294901760
      %v3473 = vsub.f32 %v3471, %v3472
      %v3474 = vand.u32 %v3473, 4294901760
      %3475 = vmatpush1.msra.mxu0 %v3474
      %v3476 = vand.u32 %v1527, 4294901760
      %v3477 = vsub.f32 %v1527, %v3476
      %v3478 = vand.u32 %v3477, 4294901760
      %v3479 = vsub.f32 %v3477, %v3478
      %v3480 = vand.u32 %v3479, 4294901760
      %3481 = vmatprep.subr.mxu0 %v3480
      %v3482 = vand.u32 %v1526, 4294901760
      %v3483 = vsub.f32 %v1526, %v3482
      %v3484 = vand.u32 %v3483, 4294901760
      %v3485 = vsub.f32 %v3483, %v3484
      %v3486 = vand.u32 %v3485, 4294901760
      %3487 = vmatpush1.msra.mxu0 %v3486
      %v3488 = vand.u32 %v1534, 4294901760
      %v3489 = vsub.f32 %v1534, %v3488
      %v3490 = vand.u32 %v3489, 4294901760
      %v3491 = vsub.f32 %v3489, %v3490
      %v3492 = vand.u32 %v3491, 4294901760
      %3493 = vmatprep.subr.mxu0 %v3492
      %v3494 = vand.u32 %v1533, 4294901760
      %v3495 = vsub.f32 %v1533, %v3494
      %v3496 = vand.u32 %v3495, 4294901760
      %v3497 = vsub.f32 %v3495, %v3496
      %v3498 = vand.u32 %v3497, 4294901760
      %3499 = vmatpush1.msra.mxu0 %v3498
      %v3500 = vand.u32 %v1541, 4294901760
      %v3501 = vsub.f32 %v1541, %v3500
      %v3502 = vand.u32 %v3501, 4294901760
      %v3503 = vsub.f32 %v3501, %v3502
      %v3504 = vand.u32 %v3503, 4294901760
      %3505 = vmatprep.subr.mxu0 %v3504
      %v3506 = vand.u32 %v1540, 4294901760
      %v3507 = vsub.f32 %v1540, %v3506
      %v3508 = vand.u32 %v3507, 4294901760
      %v3509 = vsub.f32 %v3507, %v3508
      %v3510 = vand.u32 %v3509, 4294901760
      %3511 = vmatpush1.msra.mxu0 %v3510
      %v3512 = vand.u32 %v1548, 4294901760
      %v3513 = vsub.f32 %v1548, %v3512
      %v3514 = vand.u32 %v3513, 4294901760
      %v3515 = vsub.f32 %v3513, %v3514
      %v3516 = vand.u32 %v3515, 4294901760
      %3517 = vmatprep.subr.mxu0 %v3516
      %v3518 = vand.u32 %v1547, 4294901760
      %v3519 = vsub.f32 %v1547, %v3518
      %v3520 = vand.u32 %v3519, 4294901760
      %v3521 = vsub.f32 %v3519, %v3520
      %v3522 = vand.u32 %v3521, 4294901760
      %3523 = vmatpush1.msra.mxu0 %v3522
      %v3524 = vand.u32 %v1555, 4294901760
      %v3525 = vsub.f32 %v1555, %v3524
      %v3526 = vand.u32 %v3525, 4294901760
      %v3527 = vsub.f32 %v3525, %v3526
      %v3528 = vand.u32 %v3527, 4294901760
      %3529 = vmatprep.subr.mxu0 %v3528
      %v3530 = vand.u32 %v1554, 4294901760
      %v3531 = vsub.f32 %v1554, %v3530
      %v3532 = vand.u32 %v3531, 4294901760
      %v3533 = vsub.f32 %v3531, %v3532
      %v3534 = vand.u32 %v3533, 4294901760
      %3535 = vmatpush1.msra.mxu0 %v3534
      %v3536 = vand.u32 %v1562, 4294901760
      %v3537 = vsub.f32 %v1562, %v3536
      %v3538 = vand.u32 %v3537, 4294901760
      %v3539 = vsub.f32 %v3537, %v3538
      %v3540 = vand.u32 %v3539, 4294901760
      %3541 = vmatprep.subr.mxu0 %v3540
      %v3542 = vand.u32 %v1561, 4294901760
      %v3543 = vsub.f32 %v1561, %v3542
      %v3544 = vand.u32 %v3543, 4294901760
      %v3545 = vsub.f32 %v3543, %v3544
      %v3546 = vand.u32 %v3545, 4294901760
      %3547 = vmatpush1.msra.mxu0 %v3546
      %v3548 = vand.u32 %v1569, 4294901760
      %v3549 = vsub.f32 %v1569, %v3548
      %v3550 = vand.u32 %v3549, 4294901760
      %v3551 = vsub.f32 %v3549, %v3550
      %v3552 = vand.u32 %v3551, 4294901760
      %3553 = vmatprep.subr.mxu0 %v3552
      %v3554 = vand.u32 %v1568, 4294901760
      %v3555 = vsub.f32 %v1568, %v3554
      %v3556 = vand.u32 %v3555, 4294901760
      %v3557 = vsub.f32 %v3555, %v3556
      %v3558 = vand.u32 %v3557, 4294901760
      %3559 = vmatpush1.msra.mxu0 %v3558
      %v3560 = vand.u32 %v1576, 4294901760
      %v3561 = vsub.f32 %v1576, %v3560
      %v3562 = vand.u32 %v3561, 4294901760
      %v3563 = vsub.f32 %v3561, %v3562
      %v3564 = vand.u32 %v3563, 4294901760
      %3565 = vmatprep.subr.mxu0 %v3564
      %v3566 = vand.u32 %v1575, 4294901760
      %v3567 = vsub.f32 %v1575, %v3566
      %v3568 = vand.u32 %v3567, 4294901760
      %v3569 = vsub.f32 %v3567, %v3568
      %v3570 = vand.u32 %v3569, 4294901760
      %3571 = vmatpush1.msra.mxu0 %v3570
      %3572 = vmatprep.subr.mxu0 0.0
      %3573 = vmatpush1.msra.mxu0 0.0
      %3574 = vmatprep.subr.mxu0 0.0
      %3575 = vmatpush1.msra.mxu0 0.0
      %3576 = vmatprep.subr.mxu0 0.0
      %3577 = vmatpush1.msra.mxu0 0.0
      %3578 = vmatprep.subr.mxu0 0.0
      %3579 = vmatpush1.msra.mxu0 0.0
      %3580 = vmatprep.subr.mxu0 0.0
      %3581 = vmatpush1.msra.mxu0 0.0
      %3582 = vmatprep.subr.mxu0 0.0
      %3583 = vmatpush1.msra.mxu0 0.0
      %3584 = vmatprep.subr.mxu0 0.0
      %3585 = vmatpush1.msra.mxu0 0.0
      %3586 = vmatprep.subr.mxu0 0.0
      %3587 = vmatpush1.msra.mxu0 0.0
      %3588 = vmatprep.subr.mxu0 0.0
      %3589 = vmatpush1.msra.mxu0 0.0
      %3590 = vmatprep.subr.mxu0 0.0
      %3591 = vmatpush1.msra.mxu0 0.0
      %3592 = vmatprep.subr.mxu0 0.0
      %3593 = vmatpush1.msra.mxu0 0.0
      %3594 = vmatprep.subr.mxu0 0.0
      %3595 = vmatpush1.msra.mxu0 0.0
      %3596 = vmatprep.subr.mxu0 0.0
      %3597 = vmatpush1.msra.mxu0 0.0
      %3598 = vmatprep.subr.mxu0 0.0
      %3599 = vmatpush1.msra.mxu0 0.0
      %3600 = vmatprep.subr.mxu0 0.0
      %3601 = vmatpush1.msra.mxu0 0.0
      %3602 = vmatprep.subr.mxu0 0.0
      %3603 = vmatpush1.msra.mxu0 0.0
      %3604 = vmatprep.subr.mxu0 0.0
      %3605 = vmatpush1.msra.mxu0 0.0
      %3606 = vmatprep.subr.mxu0 0.0
      %3607 = vmatpush1.msra.mxu0 0.0
      %3608 = vmatprep.mubr.f32.mxu0 0.0
      %v3609 = vand.u32 %v1580, 4294901760
      %3610 = vmatmul.mubr.f32.gmra.mrb[0].mxu0 %v3609
      %v3611 = vpop.f32.mrb[0].mxu0
      %v3612 = vadd.f32 %v3389, %v3611
      %v3613 = vpop.f32.mrb[0].mxu0
      %v3614 = vadd.f32 %v3391, %v3613
      %3615 = vmatprep.mubr.f32.mxu0 0.0
      %v3616 = vand.u32 %v1583, 4294901760
      %3617 = vmatmul.mubr.f32.gmra.mrb[0].mxu0 %v3616
      %v3618 = vpop.f32.mrb[0].mxu0
      %v3619 = vadd.f32 %v3400, %v3618
      %v3620 = vpop.f32.mrb[0].mxu0
      %v3621 = vadd.f32 %v3402, %v3620
      %3622 = vdwg.mxu0
      %v3623 = vand.u32 %v1485, 4294901760
      %v3624 = vsub.f32 %v1485, %v3623
      %3625 = vmatprep.subr.mxu0 %v3624
      %v3626 = vand.u32 %v1484, 4294901760
      %v3627 = vsub.f32 %v1484, %v3626
      %3628 = vmatpush1.msra.mxu0 %v3627
      %v3629 = vand.u32 %v1492, 4294901760
      %v3630 = vsub.f32 %v1492, %v3629
      %3631 = vmatprep.subr.mxu0 %v3630
      %v3632 = vand.u32 %v1491, 4294901760
      %v3633 = vsub.f32 %v1491, %v3632
      %3634 = vmatpush1.msra.mxu0 %v3633
      %v3635 = vand.u32 %v1499, 4294901760
      %v3636 = vsub.f32 %v1499, %v3635
      %3637 = vmatprep.subr.mxu0 %v3636
      %v3638 = vand.u32 %v1498, 4294901760
      %v3639 = vsub.f32 %v1498, %v3638
      %3640 = vmatpush1.msra.mxu0 %v3639
      %v3641 = vand.u32 %v1506, 4294901760
      %v3642 = vsub.f32 %v1506, %v3641
      %3643 = vmatprep.subr.mxu0 %v3642
      %v3644 = vand.u32 %v1505, 4294901760
      %v3645 = vsub.f32 %v1505, %v3644
      %3646 = vmatpush1.msra.mxu0 %v3645
      %v3647 = vand.u32 %v1513, 4294901760
      %v3648 = vsub.f32 %v1513, %v3647
      %3649 = vmatprep.subr.mxu0 %v3648
      %v3650 = vand.u32 %v1512, 4294901760
      %v3651 = vsub.f32 %v1512, %v3650
      %3652 = vmatpush1.msra.mxu0 %v3651
      %v3653 = vand.u32 %v1520, 4294901760
      %v3654 = vsub.f32 %v1520, %v3653
      %3655 = vmatprep.subr.mxu0 %v3654
      %v3656 = vand.u32 %v1519, 4294901760
      %v3657 = vsub.f32 %v1519, %v3656
      %3658 = vmatpush1.msra.mxu0 %v3657
      %v3659 = vand.u32 %v1527, 4294901760
      %v3660 = vsub.f32 %v1527, %v3659
      %3661 = vmatprep.subr.mxu0 %v3660
      %v3662 = vand.u32 %v1526, 4294901760
      %v3663 = vsub.f32 %v1526, %v3662
      %3664 = vmatpush1.msra.mxu0 %v3663
      %v3665 = vand.u32 %v1534, 4294901760
      %v3666 = vsub.f32 %v1534, %v3665
      %3667 = vmatprep.subr.mxu0 %v3666
      %v3668 = vand.u32 %v1533, 4294901760
      %v3669 = vsub.f32 %v1533, %v3668
      %3670 = vmatpush1.msra.mxu0 %v3669
      %v3671 = vand.u32 %v1541, 4294901760
      %v3672 = vsub.f32 %v1541, %v3671
      %3673 = vmatprep.subr.mxu0 %v3672
      %v3674 = vand.u32 %v1540, 4294901760
      %v3675 = vsub.f32 %v1540, %v3674
      %3676 = vmatpush1.msra.mxu0 %v3675
      %v3677 = vand.u32 %v1548, 4294901760
      %v3678 = vsub.f32 %v1548, %v3677
      %3679 = vmatprep.subr.mxu0 %v3678
      %v3680 = vand.u32 %v1547, 4294901760
      %v3681 = vsub.f32 %v1547, %v3680
      %3682 = vmatpush1.msra.mxu0 %v3681
      %v3683 = vand.u32 %v1555, 4294901760
      %v3684 = vsub.f32 %v1555, %v3683
      %3685 = vmatprep.subr.mxu0 %v3684
      %v3686 = vand.u32 %v1554, 4294901760
      %v3687 = vsub.f32 %v1554, %v3686
      %3688 = vmatpush1.msra.mxu0 %v3687
      %v3689 = vand.u32 %v1562, 4294901760
      %v3690 = vsub.f32 %v1562, %v3689
      %3691 = vmatprep.subr.mxu0 %v3690
      %v3692 = vand.u32 %v1561, 4294901760
      %v3693 = vsub.f32 %v1561, %v3692
      %3694 = vmatpush1.msra.mxu0 %v3693
      %v3695 = vand.u32 %v1569, 4294901760
      %v3696 = vsub.f32 %v1569, %v3695
      %3697 = vmatprep.subr.mxu0 %v3696
      %v3698 = vand.u32 %v1568, 4294901760
      %v3699 = vsub.f32 %v1568, %v3698
      %3700 = vmatpush1.msra.mxu0 %v3699
      %v3701 = vand.u32 %v1576, 4294901760
      %v3702 = vsub.f32 %v1576, %v3701
      %3703 = vmatprep.subr.mxu0 %v3702
      %v3704 = vand.u32 %v1575, 4294901760
      %v3705 = vsub.f32 %v1575, %v3704
      %3706 = vmatpush1.msra.mxu0 %v3705
      %3707 = vmatprep.subr.mxu0 0.0
      %3708 = vmatpush1.msra.mxu0 0.0
      %3709 = vmatprep.subr.mxu0 0.0
      %3710 = vmatpush1.msra.mxu0 0.0
      %3711 = vmatprep.subr.mxu0 0.0
      %3712 = vmatpush1.msra.mxu0 0.0
      %3713 = vmatprep.subr.mxu0 0.0
      %3714 = vmatpush1.msra.mxu0 0.0
      %3715 = vmatprep.subr.mxu0 0.0
      %3716 = vmatpush1.msra.mxu0 0.0
      %3717 = vmatprep.subr.mxu0 0.0
      %3718 = vmatpush1.msra.mxu0 0.0
      %3719 = vmatprep.subr.mxu0 0.0
      %3720 = vmatpush1.msra.mxu0 0.0
      %3721 = vmatprep.subr.mxu0 0.0
      %3722 = vmatpush1.msra.mxu0 0.0
      %3723 = vmatprep.subr.mxu0 0.0
      %3724 = vmatpush1.msra.mxu0 0.0
      %3725 = vmatprep.subr.mxu0 0.0
      %3726 = vmatpush1.msra.mxu0 0.0
      %3727 = vmatprep.subr.mxu0 0.0
      %3728 = vmatpush1.msra.mxu0 0.0
      %3729 = vmatprep.subr.mxu0 0.0
      %3730 = vmatpush1.msra.mxu0 0.0
      %3731 = vmatprep.subr.mxu0 0.0
      %3732 = vmatpush1.msra.mxu0 0.0
      %3733 = vmatprep.subr.mxu0 0.0
      %3734 = vmatpush1.msra.mxu0 0.0
      %3735 = vmatprep.subr.mxu0 0.0
      %3736 = vmatpush1.msra.mxu0 0.0
      %3737 = vmatprep.subr.mxu0 0.0
      %3738 = vmatpush1.msra.mxu0 0.0
      %3739 = vmatprep.subr.mxu0 0.0
      %3740 = vmatpush1.msra.mxu0 0.0
      %3741 = vmatprep.subr.mxu0 0.0
      %3742 = vmatpush1.msra.mxu0 0.0
      %3743 = vmatprep.mubr.f32.mxu0 0.0
      %v3744 = vand.u32 %v1580, 4294901760
      %v3745 = vsub.f32 %v1580, %v3744
      %3746 = vmatmul.mubr.f32.gmra.mrb[0].mxu0 %v3745
      %v3747 = vpop.f32.mrb[0].mxu0
      %v3748 = vadd.f32 %v3612, %v3747
      %v3749 = vpop.f32.mrb[0].mxu0
      %v3750 = vadd.f32 %v3614, %v3749
      %3751 = vmatprep.mubr.f32.mxu0 0.0
      %v3752 = vand.u32 %v1583, 4294901760
      %v3753 = vsub.f32 %v1583, %v3752
      %3754 = vmatmul.mubr.f32.gmra.mrb[0].mxu0 %v3753
      %v3755 = vpop.f32.mrb[0].mxu0
      %v3756 = vadd.f32 %v3619, %v3755
      %v3757 = vpop.f32.mrb[0].mxu0
      %v3758 = vadd.f32 %v3621, %v3757
      %3759 = vdwg.mxu0
      %v3760 = vand.u32 %v1485, 4294901760
      %3761 = vmatprep.subr.mxu0 %v3760
      %v3762 = vand.u32 %v1484, 4294901760
      %3763 = vmatpush1.msra.mxu0 %v3762
      %v3764 = vand.u32 %v1492, 4294901760
      %3765 = vmatprep.subr.mxu0 %v3764
      %v3766 = vand.u32 %v1491, 4294901760
      %3767 = vmatpush1.msra.mxu0 %v3766
      %v3768 = vand.u32 %v1499, 4294901760
      %3769 = vmatprep.subr.mxu0 %v3768
      %v3770 = vand.u32 %v1498, 4294901760
      %3771 = vmatpush1.msra.mxu0 %v3770
      %v3772 = vand.u32 %v1506, 4294901760
      %3773 = vmatprep.subr.mxu0 %v3772
      %v3774 = vand.u32 %v1505, 4294901760
      %3775 = vmatpush1.msra.mxu0 %v3774
      %v3776 = vand.u32 %v1513, 4294901760
      %3777 = vmatprep.subr.mxu0 %v3776
      %v3778 = vand.u32 %v1512, 4294901760
      %3779 = vmatpush1.msra.mxu0 %v3778
      %v3780 = vand.u32 %v1520, 4294901760
      %3781 = vmatprep.subr.mxu0 %v3780
      %v3782 = vand.u32 %v1519, 4294901760
      %3783 = vmatpush1.msra.mxu0 %v3782
      %v3784 = vand.u32 %v1527, 4294901760
      %3785 = vmatprep.subr.mxu0 %v3784
      %v3786 = vand.u32 %v1526, 4294901760
      %3787 = vmatpush1.msra.mxu0 %v3786
      %v3788 = vand.u32 %v1534, 4294901760
      %3789 = vmatprep.subr.mxu0 %v3788
      %v3790 = vand.u32 %v1533, 4294901760
      %3791 = vmatpush1.msra.mxu0 %v3790
      %v3792 = vand.u32 %v1541, 4294901760
      %3793 = vmatprep.subr.mxu0 %v3792
      %v3794 = vand.u32 %v1540, 4294901760
      %3795 = vmatpush1.msra.mxu0 %v3794
      %v3796 = vand.u32 %v1548, 4294901760
      %3797 = vmatprep.subr.mxu0 %v3796
      %v3798 = vand.u32 %v1547, 4294901760
      %3799 = vmatpush1.msra.mxu0 %v3798
      %v3800 = vand.u32 %v1555, 4294901760
      %3801 = vmatprep.subr.mxu0 %v3800
      %v3802 = vand.u32 %v1554, 4294901760
      %3803 = vmatpush1.msra.mxu0 %v3802
      %v3804 = vand.u32 %v1562, 4294901760
      %3805 = vmatprep.subr.mxu0 %v3804
      %v3806 = vand.u32 %v1561, 4294901760
      %3807 = vmatpush1.msra.mxu0 %v3806
      %v3808 = vand.u32 %v1569, 4294901760
      %3809 = vmatprep.subr.mxu0 %v3808
      %v3810 = vand.u32 %v1568, 4294901760
      %3811 = vmatpush1.msra.mxu0 %v3810
      %v3812 = vand.u32 %v1576, 4294901760
      %3813 = vmatprep.subr.mxu0 %v3812
      %v3814 = vand.u32 %v1575, 4294901760
      %3815 = vmatpush1.msra.mxu0 %v3814
      %3816 = vmatprep.subr.mxu0 0.0
      %3817 = vmatpush1.msra.mxu0 0.0
      %3818 = vmatprep.subr.mxu0 0.0
      %3819 = vmatpush1.msra.mxu0 0.0
      %3820 = vmatprep.subr.mxu0 0.0
      %3821 = vmatpush1.msra.mxu0 0.0
      %3822 = vmatprep.subr.mxu0 0.0
      %3823 = vmatpush1.msra.mxu0 0.0
      %3824 = vmatprep.subr.mxu0 0.0
      %3825 = vmatpush1.msra.mxu0 0.0
      %3826 = vmatprep.subr.mxu0 0.0
      %3827 = vmatpush1.msra.mxu0 0.0
      %3828 = vmatprep.subr.mxu0 0.0
      %3829 = vmatpush1.msra.mxu0 0.0
      %3830 = vmatprep.subr.mxu0 0.0
      %3831 = vmatpush1.msra.mxu0 0.0
      %3832 = vmatprep.subr.mxu0 0.0
      %3833 = vmatpush1.msra.mxu0 0.0
      %3834 = vmatprep.subr.mxu0 0.0
      %3835 = vmatpush1.msra.mxu0 0.0
      %3836 = vmatprep.subr.mxu0 0.0
      %3837 = vmatpush1.msra.mxu0 0.0
      %3838 = vmatprep.subr.mxu0 0.0
      %3839 = vmatpush1.msra.mxu0 0.0
      %3840 = vmatprep.subr.mxu0 0.0
      %3841 = vmatpush1.msra.mxu0 0.0
      %3842 = vmatprep.subr.mxu0 0.0
      %3843 = vmatpush1.msra.mxu0 0.0
      %3844 = vmatprep.subr.mxu0 0.0
      %3845 = vmatpush1.msra.mxu0 0.0
      %3846 = vmatprep.subr.mxu0 0.0
      %3847 = vmatpush1.msra.mxu0 0.0
      %3848 = vmatprep.subr.mxu0 0.0
      %3849 = vmatpush1.msra.mxu0 0.0
      %3850 = vmatprep.subr.mxu0 0.0
      %3851 = vmatpush1.msra.mxu0 0.0
      %3852 = vmatprep.mubr.f32.mxu0 0.0
      %v3853 = vand.u32 %v1580, 4294901760
      %v3854 = vsub.f32 %v1580, %v3853
      %v3855 = vand.u32 %v3854, 4294901760
      %3856 = vmatmul.mubr.f32.gmra.mrb[0].mxu0 %v3855
      %v3857 = vpop.f32.mrb[0].mxu0
      %v3858 = vadd.f32 %v3748, %v3857
      %v3859 = vpop.f32.mrb[0].mxu0
      %v3860 = vadd.f32 %v3750, %v3859
      %3861 = vmatprep.mubr.f32.mxu0 0.0
      %v3862 = vand.u32 %v1583, 4294901760
      %v3863 = vsub.f32 %v1583, %v3862
      %v3864 = vand.u32 %v3863, 4294901760
      %3865 = vmatmul.mubr.f32.gmra.mrb[0].mxu0 %v3864
      %v3866 = vpop.f32.mrb[0].mxu0
      %v3867 = vadd.f32 %v3756, %v3866
      %v3868 = vpop.f32.mrb[0].mxu0
      %v3869 = vadd.f32 %v3758, %v3868
      %3870 = vdwg.mxu0
      %v3871 = vand.u32 %v1485, 4294901760
      %v3872 = vsub.f32 %v1485, %v3871
      %v3873 = vand.u32 %v3872, 4294901760
      %3874 = vmatprep.subr.mxu0 %v3873
      %v3875 = vand.u32 %v1484, 4294901760
      %v3876 = vsub.f32 %v1484, %v3875
      %v3877 = vand.u32 %v3876, 4294901760
      %3878 = vmatpush1.msra.mxu0 %v3877
      %v3879 = vand.u32 %v1492, 4294901760
      %v3880 = vsub.f32 %v1492, %v3879
      %v3881 = vand.u32 %v3880, 4294901760
      %3882 = vmatprep.subr.mxu0 %v3881
      %v3883 = vand.u32 %v1491, 4294901760
      %v3884 = vsub.f32 %v1491, %v3883
      %v3885 = vand.u32 %v3884, 4294901760
      %3886 = vmatpush1.msra.mxu0 %v3885
      %v3887 = vand.u32 %v1499, 4294901760
      %v3888 = vsub.f32 %v1499, %v3887
      %v3889 = vand.u32 %v3888, 4294901760
      %3890 = vmatprep.subr.mxu0 %v3889
      %v3891 = vand.u32 %v1498, 4294901760
      %v3892 = vsub.f32 %v1498, %v3891
      %v3893 = vand.u32 %v3892, 4294901760
      %3894 = vmatpush1.msra.mxu0 %v3893
      %v3895 = vand.u32 %v1506, 4294901760
      %v3896 = vsub.f32 %v1506, %v3895
      %v3897 = vand.u32 %v3896, 4294901760
      %3898 = vmatprep.subr.mxu0 %v3897
      %v3899 = vand.u32 %v1505, 4294901760
      %v3900 = vsub.f32 %v1505, %v3899
      %v3901 = vand.u32 %v3900, 4294901760
      %3902 = vmatpush1.msra.mxu0 %v3901
      %v3903 = vand.u32 %v1513, 4294901760
      %v3904 = vsub.f32 %v1513, %v3903
      %v3905 = vand.u32 %v3904, 4294901760
      %3906 = vmatprep.subr.mxu0 %v3905
      %v3907 = vand.u32 %v1512, 4294901760
      %v3908 = vsub.f32 %v1512, %v3907
      %v3909 = vand.u32 %v3908, 4294901760
      %3910 = vmatpush1.msra.mxu0 %v3909
      %v3911 = vand.u32 %v1520, 4294901760
      %v3912 = vsub.f32 %v1520, %v3911
      %v3913 = vand.u32 %v3912, 4294901760
      %3914 = vmatprep.subr.mxu0 %v3913
      %v3915 = vand.u32 %v1519, 4294901760
      %v3916 = vsub.f32 %v1519, %v3915
      %v3917 = vand.u32 %v3916, 4294901760
      %3918 = vmatpush1.msra.mxu0 %v3917
      %v3919 = vand.u32 %v1527, 4294901760
      %v3920 = vsub.f32 %v1527, %v3919
      %v3921 = vand.u32 %v3920, 4294901760
      %3922 = vmatprep.subr.mxu0 %v3921
      %v3923 = vand.u32 %v1526, 4294901760
      %v3924 = vsub.f32 %v1526, %v3923
      %v3925 = vand.u32 %v3924, 4294901760
      %3926 = vmatpush1.msra.mxu0 %v3925
      %v3927 = vand.u32 %v1534, 4294901760
      %v3928 = vsub.f32 %v1534, %v3927
      %v3929 = vand.u32 %v3928, 4294901760
      %3930 = vmatprep.subr.mxu0 %v3929
      %v3931 = vand.u32 %v1533, 4294901760
      %v3932 = vsub.f32 %v1533, %v3931
      %v3933 = vand.u32 %v3932, 4294901760
      %3934 = vmatpush1.msra.mxu0 %v3933
      %v3935 = vand.u32 %v1541, 4294901760
      %v3936 = vsub.f32 %v1541, %v3935
      %v3937 = vand.u32 %v3936, 4294901760
      %3938 = vmatprep.subr.mxu0 %v3937
      %v3939 = vand.u32 %v1540, 4294901760
      %v3940 = vsub.f32 %v1540, %v3939
      %v3941 = vand.u32 %v3940, 4294901760
      %3942 = vmatpush1.msra.mxu0 %v3941
      %v3943 = vand.u32 %v1548, 4294901760
      %v3944 = vsub.f32 %v1548, %v3943
      %v3945 = vand.u32 %v3944, 4294901760
      %3946 = vmatprep.subr.mxu0 %v3945
      %v3947 = vand.u32 %v1547, 4294901760
      %v3948 = vsub.f32 %v1547, %v3947
      %v3949 = vand.u32 %v3948, 4294901760
      %3950 = vmatpush1.msra.mxu0 %v3949
      %v3951 = vand.u32 %v1555, 4294901760
      %v3952 = vsub.f32 %v1555, %v3951
      %v3953 = vand.u32 %v3952, 4294901760
      %3954 = vmatprep.subr.mxu0 %v3953
      %v3955 = vand.u32 %v1554, 4294901760
      %v3956 = vsub.f32 %v1554, %v3955
      %v3957 = vand.u32 %v3956, 4294901760
      %3958 = vmatpush1.msra.mxu0 %v3957
      %v3959 = vand.u32 %v1562, 4294901760
      %v3960 = vsub.f32 %v1562, %v3959
      %v3961 = vand.u32 %v3960, 4294901760
      %3962 = vmatprep.subr.mxu0 %v3961
      %v3963 = vand.u32 %v1561, 4294901760
      %v3964 = vsub.f32 %v1561, %v3963
      %v3965 = vand.u32 %v3964, 4294901760
      %3966 = vmatpush1.msra.mxu0 %v3965
      %v3967 = vand.u32 %v1569, 4294901760
      %v3968 = vsub.f32 %v1569, %v3967
      %v3969 = vand.u32 %v3968, 4294901760
      %3970 = vmatprep.subr.mxu0 %v3969
      %v3971 = vand.u32 %v1568, 4294901760
      %v3972 = vsub.f32 %v1568, %v3971
      %v3973 = vand.u32 %v3972, 4294901760
      %3974 = vmatpush1.msra.mxu0 %v3973
      %v3975 = vand.u32 %v1576, 4294901760
      %v3976 = vsub.f32 %v1576, %v3975
      %v3977 = vand.u32 %v3976, 4294901760
      %3978 = vmatprep.subr.mxu0 %v3977
      %v3979 = vand.u32 %v1575, 4294901760
      %v3980 = vsub.f32 %v1575, %v3979
      %v3981 = vand.u32 %v3980, 4294901760
      %3982 = vmatpush1.msra.mxu0 %v3981
      %3983 = vmatprep.subr.mxu0 0.0
      %3984 = vmatpush1.msra.mxu0 0.0
      %3985 = vmatprep.subr.mxu0 0.0
      %3986 = vmatpush1.msra.mxu0 0.0
      %3987 = vmatprep.subr.mxu0 0.0
      %3988 = vmatpush1.msra.mxu0 0.0
      %3989 = vmatprep.subr.mxu0 0.0
      %3990 = vmatpush1.msra.mxu0 0.0
      %3991 = vmatprep.subr.mxu0 0.0
      %3992 = vmatpush1.msra.mxu0 0.0
      %3993 = vmatprep.subr.mxu0 0.0
      %3994 = vmatpush1.msra.mxu0 0.0
      %3995 = vmatprep.subr.mxu0 0.0
      %3996 = vmatpush1.msra.mxu0 0.0
      %3997 = vmatprep.subr.mxu0 0.0
      %3998 = vmatpush1.msra.mxu0 0.0
      %3999 = vmatprep.subr.mxu0 0.0
      %4000 = vmatpush1.msra.mxu0 0.0
      %4001 = vmatprep.subr.mxu0 0.0
      %4002 = vmatpush1.msra.mxu0 0.0
      %4003 = vmatprep.subr.mxu0 0.0
      %4004 = vmatpush1.msra.mxu0 0.0
      %4005 = vmatprep.subr.mxu0 0.0
      %4006 = vmatpush1.msra.mxu0 0.0
      %4007 = vmatprep.subr.mxu0 0.0
      %4008 = vmatpush1.msra.mxu0 0.0
      %4009 = vmatprep.subr.mxu0 0.0
      %4010 = vmatpush1.msra.mxu0 0.0
      %4011 = vmatprep.subr.mxu0 0.0
      %4012 = vmatpush1.msra.mxu0 0.0
      %4013 = vmatprep.subr.mxu0 0.0
      %4014 = vmatpush1.msra.mxu0 0.0
      %4015 = vmatprep.subr.mxu0 0.0
      %4016 = vmatpush1.msra.mxu0 0.0
      %4017 = vmatprep.subr.mxu0 0.0
      %4018 = vmatpush1.msra.mxu0 0.0
      %4019 = vmatprep.mubr.f32.mxu0 0.0
      %v4020 = vand.u32 %v1580, 4294901760
      %4021 = vmatmul.mubr.f32.gmra.mrb[0].mxu0 %v4020
      %v4022 = vpop.f32.mrb[0].mxu0
      %v4023 = vadd.f32 %v3858, %v4022
      %v4024 = vpop.f32.mrb[0].mxu0
      %v4025 = vadd.f32 %v3860, %v4024
      %4026 = vmatprep.mubr.f32.mxu0 0.0
      %v4027 = vand.u32 %v1583, 4294901760
      %4028 = vmatmul.mubr.f32.gmra.mrb[0].mxu0 %v4027
      %v4029 = vpop.f32.mrb[0].mxu0
      %v4030 = vadd.f32 %v3867, %v4029
      %v4031 = vpop.f32.mrb[0].mxu0
      %v4032 = vadd.f32 %v3869, %v4031
      %4033 = vdwg.mxu0
      %v4034 = vand.u32 %v1485, 4294901760
      %4035 = vmatprep.subr.mxu0 %v4034
      %v4036 = vand.u32 %v1484, 4294901760
      %4037 = vmatpush1.msra.mxu0 %v4036
      %v4038 = vand.u32 %v1492, 4294901760
      %4039 = vmatprep.subr.mxu0 %v4038
      %v4040 = vand.u32 %v1491, 4294901760
      %4041 = vmatpush1.msra.mxu0 %v4040
      %v4042 = vand.u32 %v1499, 4294901760
      %4043 = vmatprep.subr.mxu0 %v4042
      %v4044 = vand.u32 %v1498, 4294901760
      %4045 = vmatpush1.msra.mxu0 %v4044
      %v4046 = vand.u32 %v1506, 4294901760
      %4047 = vmatprep.subr.mxu0 %v4046
      %v4048 = vand.u32 %v1505, 4294901760
      %4049 = vmatpush1.msra.mxu0 %v4048
      %v4050 = vand.u32 %v1513, 4294901760
      %4051 = vmatprep.subr.mxu0 %v4050
      %v4052 = vand.u32 %v1512, 4294901760
      %4053 = vmatpush1.msra.mxu0 %v4052
      %v4054 = vand.u32 %v1520, 4294901760
      %4055 = vmatprep.subr.mxu0 %v4054
      %v4056 = vand.u32 %v1519, 4294901760
      %4057 = vmatpush1.msra.mxu0 %v4056
      %v4058 = vand.u32 %v1527, 4294901760
      %4059 = vmatprep.subr.mxu0 %v4058
      %v4060 = vand.u32 %v1526, 4294901760
      %4061 = vmatpush1.msra.mxu0 %v4060
      %v4062 = vand.u32 %v1534, 4294901760
      %4063 = vmatprep.subr.mxu0 %v4062
      %v4064 = vand.u32 %v1533, 4294901760
      %4065 = vmatpush1.msra.mxu0 %v4064
      %v4066 = vand.u32 %v1541, 4294901760
      %4067 = vmatprep.subr.mxu0 %v4066
      %v4068 = vand.u32 %v1540, 4294901760
      %4069 = vmatpush1.msra.mxu0 %v4068
      %v4070 = vand.u32 %v1548, 4294901760
      %4071 = vmatprep.subr.mxu0 %v4070
      %v4072 = vand.u32 %v1547, 4294901760
      %4073 = vmatpush1.msra.mxu0 %v4072
      %v4074 = vand.u32 %v1555, 4294901760
      %4075 = vmatprep.subr.mxu0 %v4074
      %v4076 = vand.u32 %v1554, 4294901760
      %4077 = vmatpush1.msra.mxu0 %v4076
      %v4078 = vand.u32 %v1562, 4294901760
      %4079 = vmatprep.subr.mxu0 %v4078
      %v4080 = vand.u32 %v1561, 4294901760
      %4081 = vmatpush1.msra.mxu0 %v4080
      %v4082 = vand.u32 %v1569, 4294901760
      %4083 = vmatprep.subr.mxu0 %v4082
      %v4084 = vand.u32 %v1568, 4294901760
      %4085 = vmatpush1.msra.mxu0 %v4084
      %v4086 = vand.u32 %v1576, 4294901760
      %4087 = vmatprep.subr.mxu0 %v4086
      %v4088 = vand.u32 %v1575, 4294901760
      %4089 = vmatpush1.msra.mxu0 %v4088
      %4090 = vmatprep.subr.mxu0 0.0
      %4091 = vmatpush1.msra.mxu0 0.0
      %4092 = vmatprep.subr.mxu0 0.0
      %4093 = vmatpush1.msra.mxu0 0.0
      %4094 = vmatprep.subr.mxu0 0.0
      %4095 = vmatpush1.msra.mxu0 0.0
      %4096 = vmatprep.subr.mxu0 0.0
      %4097 = vmatpush1.msra.mxu0 0.0
      %4098 = vmatprep.subr.mxu0 0.0
      %4099 = vmatpush1.msra.mxu0 0.0
      %4100 = vmatprep.subr.mxu0 0.0
      %4101 = vmatpush1.msra.mxu0 0.0
      %4102 = vmatprep.subr.mxu0 0.0
      %4103 = vmatpush1.msra.mxu0 0.0
      %4104 = vmatprep.subr.mxu0 0.0
      %4105 = vmatpush1.msra.mxu0 0.0
      %4106 = vmatprep.subr.mxu0 0.0
      %4107 = vmatpush1.msra.mxu0 0.0
      %4108 = vmatprep.subr.mxu0 0.0
      %4109 = vmatpush1.msra.mxu0 0.0
      %4110 = vmatprep.subr.mxu0 0.0
      %4111 = vmatpush1.msra.mxu0 0.0
      %4112 = vmatprep.subr.mxu0 0.0
      %4113 = vmatpush1.msra.mxu0 0.0
      %4114 = vmatprep.subr.mxu0 0.0
      %4115 = vmatpush1.msra.mxu0 0.0
      %4116 = vmatprep.subr.mxu0 0.0
      %4117 = vmatpush1.msra.mxu0 0.0
      %4118 = vmatprep.subr.mxu0 0.0
      %4119 = vmatpush1.msra.mxu0 0.0
      %4120 = vmatprep.subr.mxu0 0.0
      %4121 = vmatpush1.msra.mxu0 0.0
      %4122 = vmatprep.subr.mxu0 0.0
      %4123 = vmatpush1.msra.mxu0 0.0
      %4124 = vmatprep.subr.mxu0 0.0
      %4125 = vmatpush1.msra.mxu0 0.0
      %4126 = vmatprep.mubr.f32.mxu0 0.0
      %v4127 = vand.u32 %v1580, 4294901760
      %4128 = vmatmul.mubr.f32.gmra.mrb[0].mxu0 %v4127
      %v4129 = vpop.f32.mrb[0].mxu0
      %v4130 = vadd.f32 %v4023, %v4129
      %v4131 = vpop.f32.mrb[0].mxu0
      %v4132 = vadd.f32 %v4025, %v4131
      %4133 = vmatprep.mubr.f32.mxu0 0.0
      %v4134 = vand.u32 %v1583, 4294901760
      %4135 = vmatmul.mubr.f32.gmra.mrb[0].mxu0 %v4134
      %v4136 = vpop.f32.mrb[0].mxu0
      %v4137 = vadd.f32 %v4030, %v4136
      %v4138 = vpop.f32.mrb[0].mxu0
      %v4139 = vadd.f32 %v4032, %v4138
      %4140 = vdwg.mxu0
      %4141 = vmatprep.subr.mxu0 0.0
      %v4142 = vand.u32 %v1486, 4294901760
      %4143 = vmatpush1.msra.mxu0 %v4142
      %4144 = vmatprep.subr.mxu0 0.0
      %v4145 = vand.u32 %v1493, 4294901760
      %4146 = vmatpush1.msra.mxu0 %v4145
      %4147 = vmatprep.subr.mxu0 0.0
      %v4148 = vand.u32 %v1500, 4294901760
      %4149 = vmatpush1.msra.mxu0 %v4148
      %4150 = vmatprep.subr.mxu0 0.0
      %v4151 = vand.u32 %v1507, 4294901760
      %4152 = vmatpush1.msra.mxu0 %v4151
      %4153 = vmatprep.subr.mxu0 0.0
      %v4154 = vand.u32 %v1514, 4294901760
      %4155 = vmatpush1.msra.mxu0 %v4154
      %4156 = vmatprep.subr.mxu0 0.0
      %v4157 = vand.u32 %v1521, 4294901760
      %4158 = vmatpush1.msra.mxu0 %v4157
      %4159 = vmatprep.subr.mxu0 0.0
      %v4160 = vand.u32 %v1528, 4294901760
      %4161 = vmatpush1.msra.mxu0 %v4160
      %4162 = vmatprep.subr.mxu0 0.0
      %v4163 = vand.u32 %v1535, 4294901760
      %4164 = vmatpush1.msra.mxu0 %v4163
      %4165 = vmatprep.subr.mxu0 0.0
      %v4166 = vand.u32 %v1542, 4294901760
      %4167 = vmatpush1.msra.mxu0 %v4166
      %4168 = vmatprep.subr.mxu0 0.0
      %v4169 = vand.u32 %v1549, 4294901760
      %4170 = vmatpush1.msra.mxu0 %v4169
      %4171 = vmatprep.subr.mxu0 0.0
      %v4172 = vand.u32 %v1556, 4294901760
      %4173 = vmatpush1.msra.mxu0 %v4172
      %4174 = vmatprep.subr.mxu0 0.0
      %v4175 = vand.u32 %v1563, 4294901760
      %4176 = vmatpush1.msra.mxu0 %v4175
      %4177 = vmatprep.subr.mxu0 0.0
      %v4178 = vand.u32 %v1570, 4294901760
      %4179 = vmatpush1.msra.mxu0 %v4178
      %4180 = vmatprep.subr.mxu0 0.0
      %v4181 = vand.u32 %v1577, 4294901760
      %4182 = vmatpush1.msra.mxu0 %v4181
      %4183 = vmatprep.subr.mxu0 0.0
      %4184 = vmatpush1.msra.mxu0 0.0
      %4185 = vmatprep.subr.mxu0 0.0
      %4186 = vmatpush1.msra.mxu0 0.0
      %4187 = vmatprep.subr.mxu0 0.0
      %4188 = vmatpush1.msra.mxu0 0.0
      %4189 = vmatprep.subr.mxu0 0.0
      %4190 = vmatpush1.msra.mxu0 0.0
      %4191 = vmatprep.subr.mxu0 0.0
      %4192 = vmatpush1.msra.mxu0 0.0
      %4193 = vmatprep.subr.mxu0 0.0
      %4194 = vmatpush1.msra.mxu0 0.0
      %4195 = vmatprep.subr.mxu0 0.0
      %4196 = vmatpush1.msra.mxu0 0.0
      %4197 = vmatprep.subr.mxu0 0.0
      %4198 = vmatpush1.msra.mxu0 0.0
      %4199 = vmatprep.subr.mxu0 0.0
      %4200 = vmatpush1.msra.mxu0 0.0
      %4201 = vmatprep.subr.mxu0 0.0
      %4202 = vmatpush1.msra.mxu0 0.0
      %4203 = vmatprep.subr.mxu0 0.0
      %4204 = vmatpush1.msra.mxu0 0.0
      %4205 = vmatprep.subr.mxu0 0.0
      %4206 = vmatpush1.msra.mxu0 0.0
      %4207 = vmatprep.subr.mxu0 0.0
      %4208 = vmatpush1.msra.mxu0 0.0
      %4209 = vmatprep.subr.mxu0 0.0
      %4210 = vmatpush1.msra.mxu0 0.0
      %4211 = vmatprep.subr.mxu0 0.0
      %4212 = vmatpush1.msra.mxu0 0.0
      %4213 = vmatprep.subr.mxu0 0.0
      %4214 = vmatpush1.msra.mxu0 0.0
      %4215 = vmatprep.subr.mxu0 0.0
      %4216 = vmatpush1.msra.mxu0 0.0
      %4217 = vmatprep.subr.mxu0 0.0
      %4218 = vmatpush1.msra.mxu0 0.0
      %4219 = vmatprep.mubr.f32.mxu0 0.0
      %v4220 = vand.u32 %v1580, 4294901760
      %v4221 = vsub.f32 %v1580, %v4220
      %v4222 = vand.u32 %v4221, 4294901760
      %v4223 = vsub.f32 %v4221, %v4222
      %v4224 = vand.u32 %v4223, 4294901760
      %4225 = vmatmul.mubr.f32.gmra.mrb[0].mxu0 %v4224
      %v4226 = vpop.f32.mrb[0].mxu0
      %v4227 = vadd.f32 0.0, %v4226
      %v4228 = vpop.f32.mrb[0].mxu0
      %4229 = vmatprep.mubr.f32.mxu0 0.0
      %v4230 = vand.u32 %v1583, 4294901760
      %v4231 = vsub.f32 %v1583, %v4230
      %v4232 = vand.u32 %v4231, 4294901760
      %v4233 = vsub.f32 %v4231, %v4232
      %v4234 = vand.u32 %v4233, 4294901760
      %4235 = vmatmul.mubr.f32.gmra.mrb[0].mxu0 %v4234
      %v4236 = vpop.f32.mrb[0].mxu0
      %v4237 = vadd.f32 0.0, %v4236
      %v4238 = vpop.f32.mrb[0].mxu0
      %4239 = vdwg.mxu0
      %4240 = vmatprep.subr.mxu0 0.0
      %v4241 = vand.u32 %v1486, 4294901760
      %v4242 = vsub.f32 %v1486, %v4241
      %v4243 = vand.u32 %v4242, 4294901760
      %v4244 = vsub.f32 %v4242, %v4243
      %v4245 = vand.u32 %v4244, 4294901760
      %4246 = vmatpush1.msra.mxu0 %v4245
      %4247 = vmatprep.subr.mxu0 0.0
      %v4248 = vand.u32 %v1493, 4294901760
      %v4249 = vsub.f32 %v1493, %v4248
      %v4250 = vand.u32 %v4249, 4294901760
      %v4251 = vsub.f32 %v4249, %v4250
      %v4252 = vand.u32 %v4251, 4294901760
      %4253 = vmatpush1.msra.mxu0 %v4252
      %4254 = vmatprep.subr.mxu0 0.0
      %v4255 = vand.u32 %v1500, 4294901760
      %v4256 = vsub.f32 %v1500, %v4255
      %v4257 = vand.u32 %v4256, 4294901760
      %v4258 = vsub.f32 %v4256, %v4257
      %v4259 = vand.u32 %v4258, 4294901760
      %4260 = vmatpush1.msra.mxu0 %v4259
      %4261 = vmatprep.subr.mxu0 0.0
      %v4262 = vand.u32 %v1507, 4294901760
      %v4263 = vsub.f32 %v1507, %v4262
      %v4264 = vand.u32 %v4263, 4294901760
      %v4265 = vsub.f32 %v4263, %v4264
      %v4266 = vand.u32 %v4265, 4294901760
      %4267 = vmatpush1.msra.mxu0 %v4266
      %4268 = vmatprep.subr.mxu0 0.0
      %v4269 = vand.u32 %v1514, 4294901760
      %v4270 = vsub.f32 %v1514, %v4269
      %v4271 = vand.u32 %v4270, 4294901760
      %v4272 = vsub.f32 %v4270, %v4271
      %v4273 = vand.u32 %v4272, 4294901760
      %4274 = vmatpush1.msra.mxu0 %v4273
      %4275 = vmatprep.subr.mxu0 0.0
      %v4276 = vand.u32 %v1521, 4294901760
      %v4277 = vsub.f32 %v1521, %v4276
      %v4278 = vand.u32 %v4277, 4294901760
      %v4279 = vsub.f32 %v4277, %v4278
      %v4280 = vand.u32 %v4279, 4294901760
      %4281 = vmatpush1.msra.mxu0 %v4280
      %4282 = vmatprep.subr.mxu0 0.0
      %v4283 = vand.u32 %v1528, 4294901760
      %v4284 = vsub.f32 %v1528, %v4283
      %v4285 = vand.u32 %v4284, 4294901760
      %v4286 = vsub.f32 %v4284, %v4285
      %v4287 = vand.u32 %v4286, 4294901760
      %4288 = vmatpush1.msra.mxu0 %v4287
      %4289 = vmatprep.subr.mxu0 0.0
      %v4290 = vand.u32 %v1535, 4294901760
      %v4291 = vsub.f32 %v1535, %v4290
      %v4292 = vand.u32 %v4291, 4294901760
      %v4293 = vsub.f32 %v4291, %v4292
      %v4294 = vand.u32 %v4293, 4294901760
      %4295 = vmatpush1.msra.mxu0 %v4294
      %4296 = vmatprep.subr.mxu0 0.0
      %v4297 = vand.u32 %v1542, 4294901760
      %v4298 = vsub.f32 %v1542, %v4297
      %v4299 = vand.u32 %v4298, 4294901760
      %v4300 = vsub.f32 %v4298, %v4299
      %v4301 = vand.u32 %v4300, 4294901760
      %4302 = vmatpush1.msra.mxu0 %v4301
      %4303 = vmatprep.subr.mxu0 0.0
      %v4304 = vand.u32 %v1549, 4294901760
      %v4305 = vsub.f32 %v1549, %v4304
      %v4306 = vand.u32 %v4305, 4294901760
      %v4307 = vsub.f32 %v4305, %v4306
      %v4308 = vand.u32 %v4307, 4294901760
      %4309 = vmatpush1.msra.mxu0 %v4308
      %4310 = vmatprep.subr.mxu0 0.0
      %v4311 = vand.u32 %v1556, 4294901760
      %v4312 = vsub.f32 %v1556, %v4311
      %v4313 = vand.u32 %v4312, 4294901760
      %v4314 = vsub.f32 %v4312, %v4313
      %v4315 = vand.u32 %v4314, 4294901760
      %4316 = vmatpush1.msra.mxu0 %v4315
      %4317 = vmatprep.subr.mxu0 0.0
      %v4318 = vand.u32 %v1563, 4294901760
      %v4319 = vsub.f32 %v1563, %v4318
      %v4320 = vand.u32 %v4319, 4294901760
      %v4321 = vsub.f32 %v4319, %v4320
      %v4322 = vand.u32 %v4321, 4294901760
      %4323 = vmatpush1.msra.mxu0 %v4322
      %4324 = vmatprep.subr.mxu0 0.0
      %v4325 = vand.u32 %v1570, 4294901760
      %v4326 = vsub.f32 %v1570, %v4325
      %v4327 = vand.u32 %v4326, 4294901760
      %v4328 = vsub.f32 %v4326, %v4327
      %v4329 = vand.u32 %v4328, 4294901760
      %4330 = vmatpush1.msra.mxu0 %v4329
      %4331 = vmatprep.subr.mxu0 0.0
      %v4332 = vand.u32 %v1577, 4294901760
      %v4333 = vsub.f32 %v1577, %v4332
      %v4334 = vand.u32 %v4333, 4294901760
      %v4335 = vsub.f32 %v4333, %v4334
      %v4336 = vand.u32 %v4335, 4294901760
      %4337 = vmatpush1.msra.mxu0 %v4336
      %4338 = vmatprep.subr.mxu0 0.0
      %4339 = vmatpush1.msra.mxu0 0.0
      %4340 = vmatprep.subr.mxu0 0.0
      %4341 = vmatpush1.msra.mxu0 0.0
      %4342 = vmatprep.subr.mxu0 0.0
      %4343 = vmatpush1.msra.mxu0 0.0
      %4344 = vmatprep.subr.mxu0 0.0
      %4345 = vmatpush1.msra.mxu0 0.0
      %4346 = vmatprep.subr.mxu0 0.0
      %4347 = vmatpush1.msra.mxu0 0.0
      %4348 = vmatprep.subr.mxu0 0.0
      %4349 = vmatpush1.msra.mxu0 0.0
      %4350 = vmatprep.subr.mxu0 0.0
      %4351 = vmatpush1.msra.mxu0 0.0
      %4352 = vmatprep.subr.mxu0 0.0
      %4353 = vmatpush1.msra.mxu0 0.0
      %4354 = vmatprep.subr.mxu0 0.0
      %4355 = vmatpush1.msra.mxu0 0.0
      %4356 = vmatprep.subr.mxu0 0.0
      %4357 = vmatpush1.msra.mxu0 0.0
      %4358 = vmatprep.subr.mxu0 0.0
      %4359 = vmatpush1.msra.mxu0 0.0
      %4360 = vmatprep.subr.mxu0 0.0
      %4361 = vmatpush1.msra.mxu0 0.0
      %4362 = vmatprep.subr.mxu0 0.0
      %4363 = vmatpush1.msra.mxu0 0.0
      %4364 = vmatprep.subr.mxu0 0.0
      %4365 = vmatpush1.msra.mxu0 0.0
      %4366 = vmatprep.subr.mxu0 0.0
      %4367 = vmatpush1.msra.mxu0 0.0
      %4368 = vmatprep.subr.mxu0 0.0
      %4369 = vmatpush1.msra.mxu0 0.0
      %4370 = vmatprep.subr.mxu0 0.0
      %4371 = vmatpush1.msra.mxu0 0.0
      %4372 = vmatprep.subr.mxu0 0.0
      %4373 = vmatpush1.msra.mxu0 0.0
      %4374 = vmatprep.mubr.f32.mxu0 0.0
      %v4375 = vand.u32 %v1580, 4294901760
      %4376 = vmatmul.mubr.f32.gmra.mrb[0].mxu0 %v4375
      %v4377 = vpop.f32.mrb[0].mxu0
      %v4378 = vadd.f32 %v4227, %v4377
      %v4379 = vpop.f32.mrb[0].mxu0
      %4380 = vmatprep.mubr.f32.mxu0 0.0
      %v4381 = vand.u32 %v1583, 4294901760
      %4382 = vmatmul.mubr.f32.gmra.mrb[0].mxu0 %v4381
      %v4383 = vpop.f32.mrb[0].mxu0
      %v4384 = vadd.f32 %v4237, %v4383
      %v4385 = vpop.f32.mrb[0].mxu0
      %4386 = vdwg.mxu0
      %4387 = vmatprep.subr.mxu0 0.0
      %v4388 = vand.u32 %v1486, 4294901760
      %v4389 = vsub.f32 %v1486, %v4388
      %4390 = vmatpush1.msra.mxu0 %v4389
      %4391 = vmatprep.subr.mxu0 0.0
      %v4392 = vand.u32 %v1493, 4294901760
      %v4393 = vsub.f32 %v1493, %v4392
      %4394 = vmatpush1.msra.mxu0 %v4393
      %4395 = vmatprep.subr.mxu0 0.0
      %v4396 = vand.u32 %v1500, 4294901760
      %v4397 = vsub.f32 %v1500, %v4396
      %4398 = vmatpush1.msra.mxu0 %v4397
      %4399 = vmatprep.subr.mxu0 0.0
      %v4400 = vand.u32 %v1507, 4294901760
      %v4401 = vsub.f32 %v1507, %v4400
      %4402 = vmatpush1.msra.mxu0 %v4401
      %4403 = vmatprep.subr.mxu0 0.0
      %v4404 = vand.u32 %v1514, 4294901760
      %v4405 = vsub.f32 %v1514, %v4404
      %4406 = vmatpush1.msra.mxu0 %v4405
      %4407 = vmatprep.subr.mxu0 0.0
      %v4408 = vand.u32 %v1521, 4294901760
      %v4409 = vsub.f32 %v1521, %v4408
      %4410 = vmatpush1.msra.mxu0 %v4409
      %4411 = vmatprep.subr.mxu0 0.0
      %v4412 = vand.u32 %v1528, 4294901760
      %v4413 = vsub.f32 %v1528, %v4412
      %4414 = vmatpush1.msra.mxu0 %v4413
      %4415 = vmatprep.subr.mxu0 0.0
      %v4416 = vand.u32 %v1535, 4294901760
      %v4417 = vsub.f32 %v1535, %v4416
      %4418 = vmatpush1.msra.mxu0 %v4417
      %4419 = vmatprep.subr.mxu0 0.0
      %v4420 = vand.u32 %v1542, 4294901760
      %v4421 = vsub.f32 %v1542, %v4420
      %4422 = vmatpush1.msra.mxu0 %v4421
      %4423 = vmatprep.subr.mxu0 0.0
      %v4424 = vand.u32 %v1549, 4294901760
      %v4425 = vsub.f32 %v1549, %v4424
      %4426 = vmatpush1.msra.mxu0 %v4425
      %4427 = vmatprep.subr.mxu0 0.0
      %v4428 = vand.u32 %v1556, 4294901760
      %v4429 = vsub.f32 %v1556, %v4428
      %4430 = vmatpush1.msra.mxu0 %v4429
      %4431 = vmatprep.subr.mxu0 0.0
      %v4432 = vand.u32 %v1563, 4294901760
      %v4433 = vsub.f32 %v1563, %v4432
      %4434 = vmatpush1.msra.mxu0 %v4433
      %4435 = vmatprep.subr.mxu0 0.0
      %v4436 = vand.u32 %v1570, 4294901760
      %v4437 = vsub.f32 %v1570, %v4436
      %4438 = vmatpush1.msra.mxu0 %v4437
      %4439 = vmatprep.subr.mxu0 0.0
      %v4440 = vand.u32 %v1577, 4294901760
      %v4441 = vsub.f32 %v1577, %v4440
      %4442 = vmatpush1.msra.mxu0 %v4441
      %4443 = vmatprep.subr.mxu0 0.0
      %4444 = vmatpush1.msra.mxu0 0.0
      %4445 = vmatprep.subr.mxu0 0.0
      %4446 = vmatpush1.msra.mxu0 0.0
      %4447 = vmatprep.subr.mxu0 0.0
      %4448 = vmatpush1.msra.mxu0 0.0
      %4449 = vmatprep.subr.mxu0 0.0
      %4450 = vmatpush1.msra.mxu0 0.0
      %4451 = vmatprep.subr.mxu0 0.0
      %4452 = vmatpush1.msra.mxu0 0.0
      %4453 = vmatprep.subr.mxu0 0.0
      %4454 = vmatpush1.msra.mxu0 0.0
      %4455 = vmatprep.subr.mxu0 0.0
      %4456 = vmatpush1.msra.mxu0 0.0
      %4457 = vmatprep.subr.mxu0 0.0
      %4458 = vmatpush1.msra.mxu0 0.0
      %4459 = vmatprep.subr.mxu0 0.0
      %4460 = vmatpush1.msra.mxu0 0.0
      %4461 = vmatprep.subr.mxu0 0.0
      %4462 = vmatpush1.msra.mxu0 0.0
      %4463 = vmatprep.subr.mxu0 0.0
      %4464 = vmatpush1.msra.mxu0 0.0
      %4465 = vmatprep.subr.mxu0 0.0
      %4466 = vmatpush1.msra.mxu0 0.0
      %4467 = vmatprep.subr.mxu0 0.0
      %4468 = vmatpush1.msra.mxu0 0.0
      %4469 = vmatprep.subr.mxu0 0.0
      %4470 = vmatpush1.msra.mxu0 0.0
      %4471 = vmatprep.subr.mxu0 0.0
      %4472 = vmatpush1.msra.mxu0 0.0
      %4473 = vmatprep.subr.mxu0 0.0
      %4474 = vmatpush1.msra.mxu0 0.0
      %4475 = vmatprep.subr.mxu0 0.0
      %4476 = vmatpush1.msra.mxu0 0.0
      %4477 = vmatprep.subr.mxu0 0.0
      %4478 = vmatpush1.msra.mxu0 0.0
      %4479 = vmatprep.mubr.f32.mxu0 0.0
      %v4480 = vand.u32 %v1580, 4294901760
      %v4481 = vsub.f32 %v1580, %v4480
      %4482 = vmatmul.mubr.f32.gmra.mrb[0].mxu0 %v4481
      %v4483 = vpop.f32.mrb[0].mxu0
      %v4484 = vadd.f32 %v4378, %v4483
      %v4485 = vpop.f32.mrb[0].mxu0
      %4486 = vmatprep.mubr.f32.mxu0 0.0
      %v4487 = vand.u32 %v1583, 4294901760
      %v4488 = vsub.f32 %v1583, %v4487
      %4489 = vmatmul.mubr.f32.gmra.mrb[0].mxu0 %v4488
      %v4490 = vpop.f32.mrb[0].mxu0
      %v4491 = vadd.f32 %v4384, %v4490
      %v4492 = vpop.f32.mrb[0].mxu0
      %4493 = vdwg.mxu0
      %4494 = vmatprep.subr.mxu0 0.0
      %v4495 = vand.u32 %v1486, 4294901760
      %4496 = vmatpush1.msra.mxu0 %v4495
      %4497 = vmatprep.subr.mxu0 0.0
      %v4498 = vand.u32 %v1493, 4294901760
      %4499 = vmatpush1.msra.mxu0 %v4498
      %4500 = vmatprep.subr.mxu0 0.0
      %v4501 = vand.u32 %v1500, 4294901760
      %4502 = vmatpush1.msra.mxu0 %v4501
      %4503 = vmatprep.subr.mxu0 0.0
      %v4504 = vand.u32 %v1507, 4294901760
      %4505 = vmatpush1.msra.mxu0 %v4504
      %4506 = vmatprep.subr.mxu0 0.0
      %v4507 = vand.u32 %v1514, 4294901760
      %4508 = vmatpush1.msra.mxu0 %v4507
      %4509 = vmatprep.subr.mxu0 0.0
      %v4510 = vand.u32 %v1521, 4294901760
      %4511 = vmatpush1.msra.mxu0 %v4510
      %4512 = vmatprep.subr.mxu0 0.0
      %v4513 = vand.u32 %v1528, 4294901760
      %4514 = vmatpush1.msra.mxu0 %v4513
      %4515 = vmatprep.subr.mxu0 0.0
      %v4516 = vand.u32 %v1535, 4294901760
      %4517 = vmatpush1.msra.mxu0 %v4516
      %4518 = vmatprep.subr.mxu0 0.0
      %v4519 = vand.u32 %v1542, 4294901760
      %4520 = vmatpush1.msra.mxu0 %v4519
      %4521 = vmatprep.subr.mxu0 0.0
      %v4522 = vand.u32 %v1549, 4294901760
      %4523 = vmatpush1.msra.mxu0 %v4522
      %4524 = vmatprep.subr.mxu0 0.0
      %v4525 = vand.u32 %v1556, 4294901760
      %4526 = vmatpush1.msra.mxu0 %v4525
      %4527 = vmatprep.subr.mxu0 0.0
      %v4528 = vand.u32 %v1563, 4294901760
      %4529 = vmatpush1.msra.mxu0 %v4528
      %4530 = vmatprep.subr.mxu0 0.0
      %v4531 = vand.u32 %v1570, 4294901760
      %4532 = vmatpush1.msra.mxu0 %v4531
      %4533 = vmatprep.subr.mxu0 0.0
      %v4534 = vand.u32 %v1577, 4294901760
      %4535 = vmatpush1.msra.mxu0 %v4534
      %4536 = vmatprep.subr.mxu0 0.0
      %4537 = vmatpush1.msra.mxu0 0.0
      %4538 = vmatprep.subr.mxu0 0.0
      %4539 = vmatpush1.msra.mxu0 0.0
      %4540 = vmatprep.subr.mxu0 0.0
      %4541 = vmatpush1.msra.mxu0 0.0
      %4542 = vmatprep.subr.mxu0 0.0
      %4543 = vmatpush1.msra.mxu0 0.0
      %4544 = vmatprep.subr.mxu0 0.0
      %4545 = vmatpush1.msra.mxu0 0.0
      %4546 = vmatprep.subr.mxu0 0.0
      %4547 = vmatpush1.msra.mxu0 0.0
      %4548 = vmatprep.subr.mxu0 0.0
      %4549 = vmatpush1.msra.mxu0 0.0
      %4550 = vmatprep.subr.mxu0 0.0
      %4551 = vmatpush1.msra.mxu0 0.0
      %4552 = vmatprep.subr.mxu0 0.0
      %4553 = vmatpush1.msra.mxu0 0.0
      %4554 = vmatprep.subr.mxu0 0.0
      %4555 = vmatpush1.msra.mxu0 0.0
      %4556 = vmatprep.subr.mxu0 0.0
      %4557 = vmatpush1.msra.mxu0 0.0
      %4558 = vmatprep.subr.mxu0 0.0
      %4559 = vmatpush1.msra.mxu0 0.0
      %4560 = vmatprep.subr.mxu0 0.0
      %4561 = vmatpush1.msra.mxu0 0.0
      %4562 = vmatprep.subr.mxu0 0.0
      %4563 = vmatpush1.msra.mxu0 0.0
      %4564 = vmatprep.subr.mxu0 0.0
      %4565 = vmatpush1.msra.mxu0 0.0
      %4566 = vmatprep.subr.mxu0 0.0
      %4567 = vmatpush1.msra.mxu0 0.0
      %4568 = vmatprep.subr.mxu0 0.0
      %4569 = vmatpush1.msra.mxu0 0.0
      %4570 = vmatprep.subr.mxu0 0.0
      %4571 = vmatpush1.msra.mxu0 0.0
      %4572 = vmatprep.mubr.f32.mxu0 0.0
      %v4573 = vand.u32 %v1580, 4294901760
      %v4574 = vsub.f32 %v1580, %v4573
      %v4575 = vand.u32 %v4574, 4294901760
      %4576 = vmatmul.mubr.f32.gmra.mrb[0].mxu0 %v4575
      %v4577 = vpop.f32.mrb[0].mxu0
      %v4578 = vadd.f32 %v4484, %v4577
      %v4579 = vpop.f32.mrb[0].mxu0
      %4580 = vmatprep.mubr.f32.mxu0 0.0
      %v4581 = vand.u32 %v1583, 4294901760
      %v4582 = vsub.f32 %v1583, %v4581
      %v4583 = vand.u32 %v4582, 4294901760
      %4584 = vmatmul.mubr.f32.gmra.mrb[0].mxu0 %v4583
      %v4585 = vpop.f32.mrb[0].mxu0
      %v4586 = vadd.f32 %v4491, %v4585
      %v4587 = vpop.f32.mrb[0].mxu0
      %4588 = vdwg.mxu0
      %4589 = vmatprep.subr.mxu0 0.0
      %v4590 = vand.u32 %v1486, 4294901760
      %v4591 = vsub.f32 %v1486, %v4590
      %v4592 = vand.u32 %v4591, 4294901760
      %4593 = vmatpush1.msra.mxu0 %v4592
      %4594 = vmatprep.subr.mxu0 0.0
      %v4595 = vand.u32 %v1493, 4294901760
      %v4596 = vsub.f32 %v1493, %v4595
      %v4597 = vand.u32 %v4596, 4294901760
      %4598 = vmatpush1.msra.mxu0 %v4597
      %4599 = vmatprep.subr.mxu0 0.0
      %v4600 = vand.u32 %v1500, 4294901760
      %v4601 = vsub.f32 %v1500, %v4600
      %v4602 = vand.u32 %v4601, 4294901760
      %4603 = vmatpush1.msra.mxu0 %v4602
      %4604 = vmatprep.subr.mxu0 0.0
      %v4605 = vand.u32 %v1507, 4294901760
      %v4606 = vsub.f32 %v1507, %v4605
      %v4607 = vand.u32 %v4606, 4294901760
      %4608 = vmatpush1.msra.mxu0 %v4607
      %4609 = vmatprep.subr.mxu0 0.0
      %v4610 = vand.u32 %v1514, 4294901760
      %v4611 = vsub.f32 %v1514, %v4610
      %v4612 = vand.u32 %v4611, 4294901760
      %4613 = vmatpush1.msra.mxu0 %v4612
      %4614 = vmatprep.subr.mxu0 0.0
      %v4615 = vand.u32 %v1521, 4294901760
      %v4616 = vsub.f32 %v1521, %v4615
      %v4617 = vand.u32 %v4616, 4294901760
      %4618 = vmatpush1.msra.mxu0 %v4617
      %4619 = vmatprep.subr.mxu0 0.0
      %v4620 = vand.u32 %v1528, 4294901760
      %v4621 = vsub.f32 %v1528, %v4620
      %v4622 = vand.u32 %v4621, 4294901760
      %4623 = vmatpush1.msra.mxu0 %v4622
      %4624 = vmatprep.subr.mxu0 0.0
      %v4625 = vand.u32 %v1535, 4294901760
      %v4626 = vsub.f32 %v1535, %v4625
      %v4627 = vand.u32 %v4626, 4294901760
      %4628 = vmatpush1.msra.mxu0 %v4627
      %4629 = vmatprep.subr.mxu0 0.0
      %v4630 = vand.u32 %v1542, 4294901760
      %v4631 = vsub.f32 %v1542, %v4630
      %v4632 = vand.u32 %v4631, 4294901760
      %4633 = vmatpush1.msra.mxu0 %v4632
      %4634 = vmatprep.subr.mxu0 0.0
      %v4635 = vand.u32 %v1549, 4294901760
      %v4636 = vsub.f32 %v1549, %v4635
      %v4637 = vand.u32 %v4636, 4294901760
      %4638 = vmatpush1.msra.mxu0 %v4637
      %4639 = vmatprep.subr.mxu0 0.0
      %v4640 = vand.u32 %v1556, 4294901760
      %v4641 = vsub.f32 %v1556, %v4640
      %v4642 = vand.u32 %v4641, 4294901760
      %4643 = vmatpush1.msra.mxu0 %v4642
      %4644 = vmatprep.subr.mxu0 0.0
      %v4645 = vand.u32 %v1563, 4294901760
      %v4646 = vsub.f32 %v1563, %v4645
      %v4647 = vand.u32 %v4646, 4294901760
      %4648 = vmatpush1.msra.mxu0 %v4647
      %4649 = vmatprep.subr.mxu0 0.0
      %v4650 = vand.u32 %v1570, 4294901760
      %v4651 = vsub.f32 %v1570, %v4650
      %v4652 = vand.u32 %v4651, 4294901760
      %4653 = vmatpush1.msra.mxu0 %v4652
      %4654 = vmatprep.subr.mxu0 0.0
      %v4655 = vand.u32 %v1577, 4294901760
      %v4656 = vsub.f32 %v1577, %v4655
      %v4657 = vand.u32 %v4656, 4294901760
      %4658 = vmatpush1.msra.mxu0 %v4657
      %4659 = vmatprep.subr.mxu0 0.0
      %4660 = vmatpush1.msra.mxu0 0.0
      %4661 = vmatprep.subr.mxu0 0.0
      %4662 = vmatpush1.msra.mxu0 0.0
      %4663 = vmatprep.subr.mxu0 0.0
      %4664 = vmatpush1.msra.mxu0 0.0
      %4665 = vmatprep.subr.mxu0 0.0
      %4666 = vmatpush1.msra.mxu0 0.0
      %4667 = vmatprep.subr.mxu0 0.0
      %4668 = vmatpush1.msra.mxu0 0.0
      %4669 = vmatprep.subr.mxu0 0.0
      %4670 = vmatpush1.msra.mxu0 0.0
      %4671 = vmatprep.subr.mxu0 0.0
      %4672 = vmatpush1.msra.mxu0 0.0
      %4673 = vmatprep.subr.mxu0 0.0
      %4674 = vmatpush1.msra.mxu0 0.0
      %4675 = vmatprep.subr.mxu0 0.0
      %4676 = vmatpush1.msra.mxu0 0.0
      %4677 = vmatprep.subr.mxu0 0.0
      %4678 = vmatpush1.msra.mxu0 0.0
      %4679 = vmatprep.subr.mxu0 0.0
      %4680 = vmatpush1.msra.mxu0 0.0
      %4681 = vmatprep.subr.mxu0 0.0
      %4682 = vmatpush1.msra.mxu0 0.0
      %4683 = vmatprep.subr.mxu0 0.0
      %4684 = vmatpush1.msra.mxu0 0.0
      %4685 = vmatprep.subr.mxu0 0.0
      %4686 = vmatpush1.msra.mxu0 0.0
      %4687 = vmatprep.subr.mxu0 0.0
      %4688 = vmatpush1.msra.mxu0 0.0
      %4689 = vmatprep.subr.mxu0 0.0
      %4690 = vmatpush1.msra.mxu0 0.0
      %4691 = vmatprep.subr.mxu0 0.0
      %4692 = vmatpush1.msra.mxu0 0.0
      %4693 = vmatprep.subr.mxu0 0.0
      %4694 = vmatpush1.msra.mxu0 0.0
      %4695 = vmatprep.mubr.f32.mxu0 0.0
      %v4696 = vand.u32 %v1580, 4294901760
      %4697 = vmatmul.mubr.f32.gmra.mrb[0].mxu0 %v4696
      %v4698 = vpop.f32.mrb[0].mxu0
      %v4699 = vadd.f32 %v4578, %v4698
      %v4700 = vpop.f32.mrb[0].mxu0
      %4701 = vmatprep.mubr.f32.mxu0 0.0
      %v4702 = vand.u32 %v1583, 4294901760
      %4703 = vmatmul.mubr.f32.gmra.mrb[0].mxu0 %v4702
      %v4704 = vpop.f32.mrb[0].mxu0
      %v4705 = vadd.f32 %v4586, %v4704
      %v4706 = vpop.f32.mrb[0].mxu0
      %4707 = vdwg.mxu0
      %4708 = vmatprep.subr.mxu0 0.0
      %v4709 = vand.u32 %v1486, 4294901760
      %4710 = vmatpush1.msra.mxu0 %v4709
      %4711 = vmatprep.subr.mxu0 0.0
      %v4712 = vand.u32 %v1493, 4294901760
      %4713 = vmatpush1.msra.mxu0 %v4712
      %4714 = vmatprep.subr.mxu0 0.0
      %v4715 = vand.u32 %v1500, 4294901760
      %4716 = vmatpush1.msra.mxu0 %v4715
      %4717 = vmatprep.subr.mxu0 0.0
      %v4718 = vand.u32 %v1507, 4294901760
      %4719 = vmatpush1.msra.mxu0 %v4718
      %4720 = vmatprep.subr.mxu0 0.0
      %v4721 = vand.u32 %v1514, 4294901760
      %4722 = vmatpush1.msra.mxu0 %v4721
      %4723 = vmatprep.subr.mxu0 0.0
      %v4724 = vand.u32 %v1521, 4294901760
      %4725 = vmatpush1.msra.mxu0 %v4724
      %4726 = vmatprep.subr.mxu0 0.0
      %v4727 = vand.u32 %v1528, 4294901760
      %4728 = vmatpush1.msra.mxu0 %v4727
      %4729 = vmatprep.subr.mxu0 0.0
      %v4730 = vand.u32 %v1535, 4294901760
      %4731 = vmatpush1.msra.mxu0 %v4730
      %4732 = vmatprep.subr.mxu0 0.0
      %v4733 = vand.u32 %v1542, 4294901760
      %4734 = vmatpush1.msra.mxu0 %v4733
      %4735 = vmatprep.subr.mxu0 0.0
      %v4736 = vand.u32 %v1549, 4294901760
      %4737 = vmatpush1.msra.mxu0 %v4736
      %4738 = vmatprep.subr.mxu0 0.0
      %v4739 = vand.u32 %v1556, 4294901760
      %4740 = vmatpush1.msra.mxu0 %v4739
      %4741 = vmatprep.subr.mxu0 0.0
      %v4742 = vand.u32 %v1563, 4294901760
      %4743 = vmatpush1.msra.mxu0 %v4742
      %4744 = vmatprep.subr.mxu0 0.0
      %v4745 = vand.u32 %v1570, 4294901760
      %4746 = vmatpush1.msra.mxu0 %v4745
      %4747 = vmatprep.subr.mxu0 0.0
      %v4748 = vand.u32 %v1577, 4294901760
      %4749 = vmatpush1.msra.mxu0 %v4748
      %4750 = vmatprep.subr.mxu0 0.0
      %4751 = vmatpush1.msra.mxu0 0.0
      %4752 = vmatprep.subr.mxu0 0.0
      %4753 = vmatpush1.msra.mxu0 0.0
      %4754 = vmatprep.subr.mxu0 0.0
      %4755 = vmatpush1.msra.mxu0 0.0
      %4756 = vmatprep.subr.mxu0 0.0
      %4757 = vmatpush1.msra.mxu0 0.0
      %4758 = vmatprep.subr.mxu0 0.0
      %4759 = vmatpush1.msra.mxu0 0.0
      %4760 = vmatprep.subr.mxu0 0.0
      %4761 = vmatpush1.msra.mxu0 0.0
      %4762 = vmatprep.subr.mxu0 0.0
      %4763 = vmatpush1.msra.mxu0 0.0
      %4764 = vmatprep.subr.mxu0 0.0
      %4765 = vmatpush1.msra.mxu0 0.0
      %4766 = vmatprep.subr.mxu0 0.0
      %4767 = vmatpush1.msra.mxu0 0.0
      %4768 = vmatprep.subr.mxu0 0.0
      %4769 = vmatpush1.msra.mxu0 0.0
      %4770 = vmatprep.subr.mxu0 0.0
      %4771 = vmatpush1.msra.mxu0 0.0
      %4772 = vmatprep.subr.mxu0 0.0
      %4773 = vmatpush1.msra.mxu0 0.0
      %4774 = vmatprep.subr.mxu0 0.0
      %4775 = vmatpush1.msra.mxu0 0.0
      %4776 = vmatprep.subr.mxu0 0.0
      %4777 = vmatpush1.msra.mxu0 0.0
      %4778 = vmatprep.subr.mxu0 0.0
      %4779 = vmatpush1.msra.mxu0 0.0
      %4780 = vmatprep.subr.mxu0 0.0
      %4781 = vmatpush1.msra.mxu0 0.0
      %4782 = vmatprep.subr.mxu0 0.0
      %4783 = vmatpush1.msra.mxu0 0.0
      %4784 = vmatprep.subr.mxu0 0.0
      %4785 = vmatpush1.msra.mxu0 0.0
      %4786 = vmatprep.mubr.f32.mxu0 0.0
      %v4787 = vand.u32 %v1580, 4294901760
      %4788 = vmatmul.mubr.f32.gmra.mrb[0].mxu0 %v4787
      %v4789 = vpop.f32.mrb[0].mxu0
      %v4790 = vadd.f32 %v4699, %v4789
      %v4791 = vpop.f32.mrb[0].mxu0
      %4792 = vmatprep.mubr.f32.mxu0 0.0
      %v4793 = vand.u32 %v1583, 4294901760
      %4794 = vmatmul.mubr.f32.gmra.mrb[0].mxu0 %v4793
      %v4795 = vpop.f32.mrb[0].mxu0
      %v4796 = vadd.f32 %v4705, %v4795
      %v4797 = vpop.f32.mrb[0].mxu0
      %4798 = vdwg.mxu0
      %4799 = vst [vmem:[%s143] sm:$0xff] %v2426
      %4800 = vst [vmem:[%s143 + $0x8] sm:$0xff] %v2428
      %4801 = vst [vmem:[%s143 + $0x10] sm:$0xff] %v3278
      %4802 = vst [vmem:[%s143 + $0x18] sm:$0xff] %v3280
      %4803 = vst [vmem:[%s143 + $0x20] sm:$0xff] %v4130
      %4804 = vst [vmem:[%s143 + $0x28] sm:$0xff] %v4132
      %4805 = vst [vmem:[%s143 + $0x30] sm:$0xff] %v4790
      %4806 = vst [vmem:[%s143 + $0x38] sm:$0xff] %v2433
      %4807 = vst [vmem:[%s143 + $0x40] sm:$0xff] %v2435
      %4808 = vst [vmem:[%s143 + $0x48] sm:$0xff] %v3285
      %4809 = vst [vmem:[%s143 + $0x50] sm:$0xff] %v3287
      %4810 = vst [vmem:[%s143 + $0x58] sm:$0xff] %v4137
      %4811 = vst [vmem:[%s143 + $0x60] sm:$0xff] %v4139
      %4812 = vst [vmem:[%s143 + $0x68] sm:$0xff] %v4796
      %p4813 = scmp.lt.s32.totalorder %s13, 1
      %s4814 = scalar_select %p4813, %s13, 1
      %s4815 = smul.addr %s4814, 14
      %s4816 = smul.addr %s4815, 8
      %s4817 = scalar_lea.vmem %s2, %s4816
      // Predicated region
      $region29: #{upsample_checker_forward.1} parent=27 // pred_check
        %p4818 = pneg %p78
      $region30: #{upsample_checker_forward.1} parent=27 // pred_check_branch
        %4820 = sbr.rel (%p4818) target = $region32
      $region31: #{upsample_checker_forward.1} parent=27 // pred_region
        _
      $region32: #{upsample_checker_forward.1} parent=27 // pred_fallthru
        _
    $region28: #{upsample_checker_forward.1} parent=5 // pred_fallthru
      _
    %p4821 = scmp.le.s32.totalorder 2, %s8
    // Predicated region
    $region33: #{upsample_checker_forward.1} parent=5 // pred_check
      %p4822 = pneg %p4821
    $region34: #{upsample_checker_forward.1} parent=5 // pred_check_branch
      %4824 = sbr.rel (%p4822) target = $region36
    $region35: #{upsample_checker_forward.1} parent=5 // pred_region
      %s4825 = ssub.s32 %s8, 2
      // Predicated region
      $region37: #{upsample_checker_forward.1} parent=35 // pred_check
        %p4826 = pneg %p84
      $region38: #{upsample_checker_forward.1} parent=35 // pred_check_branch
        %4828 = sbr.rel (%p4826) target = $region40
      $region39: #{upsample_checker_forward.1} parent=35 // pred_region
        %p4829 = scmp.lt.s32.totalorder %s14, 1
        %s4830 = scalar_select %p4829, %s14, 1
        %s4831 = smul.addr %s4830, 14
        %s4832 = smul.addr %s4831, 8
        %s4833 = scalar_lea.vmem %s2, %s4832
      $region40: #{upsample_checker_forward.1} parent=35 // pred_fallthru
        _
    $region36: #{upsample_checker_forward.1} parent=5 // pred_fallthru
      _
  $region6: #{upsample_checker_forward.1} parent=0 // loop_footer
    %s12 = sadd.s32 1, %s8
  $region7: #{upsample_checker_forward.1} parent=0 // loop_footer_branch
    %7 = sbr.rel target = $region3
  $region8: #{upsample_checker_forward.1} parent=0 // loop_exit
    _

</llo_original>
